<compile_context>
chip_gen: v6e
topology: v6e:2x2x1
jax: 0.10.0
libtpu: 0.0.40
codegen_flags: <defaults>
</compile_context>

<pallas_src>
import functools

import jax
import jax.numpy as jnp
from jax.experimental import pallas as pl
from jax.experimental.pallas import tpu as pltpu

# ---------------------------------------------------------------------------
# Problem sizes (small, consistent with the nested-n-spheres setup)
# ---------------------------------------------------------------------------
BATCH = 64          # number of points
DATA_DIM = 4        # raw input dimension
AUGMENT_DIM = 2     # extra zero channels (ANODE-style augmentation)
D_AUG = DATA_DIM + AUGMENT_DIM
HIDDEN = 32         # hidden width of the ODE vector field MLP
OUT_DIM = 1         # prediction_layer: Linear(D_AUG, 1)
NUM_STEPS = 10      # fixed-step Euler integration steps (t in [0, 1])

FEAT_ROWS = 8       # sublane-padded feature rows (>= D_AUG + OUT_DIM)
LANES = 128         # lane width; batch is padded to a multiple of this
MAX_TILE_B = 512    # single grid step up to this many (padded) batch lanes


# ---------------------------------------------------------------------------
# Pallas kernel (batch on lanes, features on sublanes)
# ---------------------------------------------------------------------------
def _odenet_kernel(x_ref, w_ref, out_ref, *, num_steps, d_aug, hidden):
    """One batch tile: Euler ODE -> linear head -> one lane-dense packed store.

    x_ref   : (FEAT_ROWS, TB)  rows 0..data_dim-1 = x.T, remaining rows zero
                               (ANODE augmentation fused into the input DMA)
    w_ref   : (hidden, 2*d_aug+4) packed weights:
                cols [0, d_aug)        : W1.T   (col k = W1[k, :])
                cols [d_aug, 2*d_aug)  : W2     (col j = W2[:, j])
                col  2*d_aug           : b1
                col  2*d_aug + 1       : b2 (rows >= d_aug zero)
                col  2*d_aug + 2       : Wp (rows >= d_aug zero)
                col  2*d_aug + 3       : bp (row 0)
    out_ref : (FEAT_ROWS, TB)  rows 0..d_aug-1 = features, row d_aug = pred,
                               remaining rows zero
    """
    f32 = jnp.float32
    rows, tb = x_ref.shape
    dt = f32(1.0 / num_steps)
    c = 2 * d_aug

    w = w_ref[...]                                           # (hidden, 2*d_aug+4)

    # ---- loop-invariant hoists (weights splatted across the lane axis) -----
    w1_s = [jnp.broadcast_to(w[:, k:k + 1], (hidden, tb)) for k in range(d_aug)]
    b1_s = jnp.broadcast_to(w[:, c:c + 1], (hidden, tb))
    b2_s = jnp.broadcast_to(w[0:rows, c + 1:c + 2], (rows, tb))   # rows >= d_aug are 0
    wp_s = jnp.broadcast_to(w[0:rows, c + 2:c + 3], (rows, tb))   # rows >= d_aug are 0
    bp_s = jnp.broadcast_to(w[0:1, c + 3:c + 4], (1, tb))

    # One-hot row selectors (built once) to place per-feature results into the
    # (rows, tb) tile with plain VPU multiplies/adds (no concat, no scatter).
    row_ids = jax.lax.broadcasted_iota(jnp.int32, (rows, tb), 0)
    onehot = [jnp.where(row_ids == j, f32(1.0), f32(0.0)) for j in range(d_aug + 1)]

    # h0 = [x | zeros]: already assembled by the wrapper; rows >= d_aug stay 0.
    h = x_ref[...].astype(f32)                               # (rows, tb)

    # ---- fixed-step Euler: h <- h + dt * (W2^T relu(W1^T h + b1) + b2) ------
    # Fully unrolled (static trip count).  The W1 contraction (K = d_aug) is
    # pure FMAs on full-width (hidden, tb) tiles; the W2 contraction (K =
    # hidden) is d_aug sublane reductions per step.  No cross-lane XLU work.
    for _ in range(num_steps):
        z = b1_s
        for k in range(d_aug):                               # z = W1^T h + b1
            z = z + jnp.broadcast_to(h[k:k + 1, :], (hidden, tb)) * w1_s[k]
        z = jnp.maximum(z, 0.0)                              # ReLU

        upd = b2_s
        for j in range(d_aug):                               # upd = W2^T z + b2
            w2_col = jnp.broadcast_to(w[:, d_aug + j:d_aug + j + 1], (hidden, tb))
            r = jnp.sum(z * w2_col, axis=0, keepdims=True)   # (1, tb)
            upd = upd + jnp.broadcast_to(r, (rows, tb)) * onehot[j]
        h = h + dt * upd

    # ---- prediction head Linear(d_aug, 1): one weighted sublane reduction ---
    pred = jnp.sum(h * wp_s, axis=0, keepdims=True) + bp_s   # (1, tb)

    # ---- single lane-dense packed store: rows 0..d_aug-1 = h, row d_aug = pred
    out = h + jnp.broadcast_to(pred, (rows, tb)) * onehot[d_aug]
    out_ref[...] = out.astype(out_ref.dtype)


# ---------------------------------------------------------------------------
# Wrapper: pack params, transpose/pad x (fusing the ANODE aug), call the kernel
# ---------------------------------------------------------------------------
def odenet_forward(x, params, *, augment_dim=AUGMENT_DIM, return_features=False):
    """Mirrors ODENet.forward: augment -> odefunc (Euler) -> prediction_layer."""
    b, data_dim = x.shape
    w1, b1, w2, b2, wp, bp = params
    d_aug = data_dim + augment_dim
    hidden = w1.shape[1]
    assert w1.shape == (d_aug, hidden)
    assert hidden % 8 == 0
    assert d_aug + OUT_DIM <= FEAT_ROWS

    # One packed (hidden, 2*d_aug+4) parameter slab -> a single weight DMA.
    n_w_cols = 2 * d_aug + 4
    slab = jnp.zeros((hidden, n_w_cols), jnp.float32)
    slab = slab.at[:, 0:d_aug].set(w1.T)              # col k = W1[k, :]
    slab = slab.at[:, d_aug:2 * d_aug].set(w2)        # col j = W2[:, j]
    slab = slab.at[:, 2 * d_aug].set(b1[0])
    slab = slab.at[0:d_aug, 2 * d_aug + 1].set(b2[0])
    slab = slab.at[0:d_aug, 2 * d_aug + 2].set(wp[:, 0])
    slab = slab.at[0, 2 * d_aug + 3].set(bp[0, 0])

    # Batch on lanes: transpose x and pad.  Rows data_dim..FEAT_ROWS-1 are zero,
    # which both implements the ANODE augmentation and pads sublanes to 8.
    b_pad = pl.cdiv(b, LANES) * LANES
    tile_b = min(b_pad, MAX_TILE_B)
    b_pad = pl.cdiv(b_pad, tile_b) * tile_b
    grid = (b_pad // tile_b,)

    x_t = jnp.zeros((FEAT_ROWS, b_pad), jnp.float32)
    x_t = x_t.at[0:data_dim, 0:b].set(x.T.astype(jnp.float32))

    kernel = functools.partial(_odenet_kernel, num_steps=NUM_STEPS,
                               d_aug=d_aug, hidden=hidden)

    out = pl.pallas_call(
        kernel,
        out_shape=jax.ShapeDtypeStruct((FEAT_ROWS, b_pad), jnp.float32),
        grid=grid,
        in_specs=[
            pl.BlockSpec((FEAT_ROWS, tile_b), lambda i: (0, i)),   # x (batch-tiled)
            pl.BlockSpec((hidden, n_w_cols), lambda i: (0, 0)),    # packed weights
        ],
        out_specs=pl.BlockSpec((FEAT_ROWS, tile_b), lambda i: (0, i)),
        compiler_params=pltpu.CompilerParams(
            dimension_semantics=("parallel",)),
    )(x_t, slab)

    feats = out[0:d_aug, 0:b].T                    # (b, d_aug)
    pred = out[d_aug:d_aug + OUT_DIM, 0:b].T       # (b, OUT_DIM)
    if return_features:
        return feats, pred
    return pred


# ---------------------------------------------------------------------------
# Deterministic parameter init (shapes implied by the module's layers)
# ---------------------------------------------------------------------------
def init_params(key):
    k1, k2, k3 = jax.random.split(key, 3)
    w1 = jax.random.normal(k1, (D_AUG, HIDDEN), jnp.float32) * 0.2
    b1 = jnp.zeros((1, HIDDEN), jnp.float32)
    w2 = jax.random.normal(k2, (HIDDEN, D_AUG), jnp.float32) * 0.2
    b2 = jnp.zeros((1, D_AUG), jnp.float32)
    wp = jax.random.normal(k3, (D_AUG, OUT_DIM), jnp.float32) * 0.2
    bp = jnp.zeros((1, OUT_DIM), jnp.float32)
    return (w1, b1, w2, b2, wp, bp)


# ---------------------------------------------------------------------------
# Pure-JAX reference (exact-f32 matmuls to match the exact-f32 VPU kernel)
# ---------------------------------------------------------------------------
def odenet_reference(x, params, *, augment_dim=AUGMENT_DIM):
    b = x.shape[0]
    if augment_dim > 0:
        x = jnp.concatenate([x, jnp.zeros((b, augment_dim), x.dtype)], axis=1)
    w1, b1, w2, b2, wp, bp = params
    hp = jax.lax.Precision.HIGHEST
    h = x.astype(jnp.float32)
    dt = 1.0 / NUM_STEPS
    for _ in range(NUM_STEPS):
        z = jnp.maximum(jnp.dot(h, w1, precision=hp) + b1, 0.0)
        h = h + dt * (jnp.dot(z, w2, precision=hp) + b2)
    pred = jnp.dot(h, wp, precision=hp) + bp
    return h, pred


if __name__ == "__main__":
    key = jax.random.PRNGKey(0)
    kx, kp = jax.random.split(key)

    x = jax.random.normal(kx, (BATCH, DATA_DIM), jnp.float32)
    params = init_params(kp)

    feats, pred = odenet_forward(x, params, return_features=True)
    jax.block_until_ready((feats, pred))

    ref_feats, ref_pred = odenet_reference(x, params)
    assert feats.shape == (BATCH, D_AUG) and pred.shape == (BATCH, OUT_DIM)
    assert jnp.allclose(feats, ref_feats, atol=1e-4, rtol=1e-4)
    assert jnp.allclose(pred, ref_pred, atol=1e-4, rtol=1e-4)

    print("KERNEL_OK")
</pallas_src>

<mosaic_0001>
module attributes {stable_mosaic.version = 11 : i64} {
  func.func @_odenet_kernel(%arg0: i32, %arg1: memref<8x128xf32, #tpu.memory_space<vmem>>, %arg2: memref<32x16xf32, #tpu.memory_space<vmem>>, %arg3: memref<8x128xf32, #tpu.memory_space<vmem>>) attributes {dimension_semantics = [#tpu.dimension_semantics<parallel>], iteration_bounds = array<i64: 1>, scalar_prefetch = 0 : i64, scratch_operands = 0 : i64, tpu.core_type = #tpu.core_type<tc>, window_params = [{transform_indices = @transform_0, window_bounds = array<i64: 8, 128>}, {pipeline_mode = #tpu.pipeline_mode<synchronous>, transform_indices = @transform_1, window_bounds = array<i64: 32, 16>}, {transform_indices = @transform_2, window_bounds = array<i64: 8, 128>}]} {
    %c0 = arith.constant 0 : index
    %c0_0 = arith.constant 0 : index
    %0 = vector.load %arg2[%c0, %c0_0] : memref<32x16xf32, #tpu.memory_space<vmem>>, vector<32x16xf32>
    %1 = vector.extract_strided_slice %0 {offsets = [0, 0], sizes = [32, 1], strides = [1, 1]} : vector<32x16xf32> to vector<32x1xf32>
    %2 = vector.shape_cast %1 : vector<32x1xf32> to vector<32x1xf32>
    %3 = vector.broadcast %2 : vector<32x1xf32> to vector<32x128xf32>
    %4 = vector.extract_strided_slice %0 {offsets = [0, 1], sizes = [32, 1], strides = [1, 1]} : vector<32x16xf32> to vector<32x1xf32>
    %5 = vector.shape_cast %4 : vector<32x1xf32> to vector<32x1xf32>
    %6 = vector.broadcast %5 : vector<32x1xf32> to vector<32x128xf32>
    %7 = vector.extract_strided_slice %0 {offsets = [0, 2], sizes = [32, 1], strides = [1, 1]} : vector<32x16xf32> to vector<32x1xf32>
    %8 = vector.shape_cast %7 : vector<32x1xf32> to vector<32x1xf32>
    %9 = vector.broadcast %8 : vector<32x1xf32> to vector<32x128xf32>
    %10 = vector.extract_strided_slice %0 {offsets = [0, 3], sizes = [32, 1], strides = [1, 1]} : vector<32x16xf32> to vector<32x1xf32>
    %11 = vector.shape_cast %10 : vector<32x1xf32> to vector<32x1xf32>
    %12 = vector.broadcast %11 : vector<32x1xf32> to vector<32x128xf32>
    %13 = vector.extract_strided_slice %0 {offsets = [0, 4], sizes = [32, 1], strides = [1, 1]} : vector<32x16xf32> to vector<32x1xf32>
    %14 = vector.shape_cast %13 : vector<32x1xf32> to vector<32x1xf32>
    %15 = vector.broadcast %14 : vector<32x1xf32> to vector<32x128xf32>
    %16 = vector.extract_strided_slice %0 {offsets = [0, 5], sizes = [32, 1], strides = [1, 1]} : vector<32x16xf32> to vector<32x1xf32>
    %17 = vector.shape_cast %16 : vector<32x1xf32> to vector<32x1xf32>
    %18 = vector.broadcast %17 : vector<32x1xf32> to vector<32x128xf32>
    %19 = vector.extract_strided_slice %0 {offsets = [0, 12], sizes = [32, 1], strides = [1, 1]} : vector<32x16xf32> to vector<32x1xf32>
    %20 = vector.shape_cast %19 : vector<32x1xf32> to vector<32x1xf32>
    %21 = vector.broadcast %20 : vector<32x1xf32> to vector<32x128xf32>
    %22 = vector.extract_strided_slice %0 {offsets = [0, 13], sizes = [8, 1], strides = [1, 1]} : vector<32x16xf32> to vector<8x1xf32>
    %23 = vector.shape_cast %22 : vector<8x1xf32> to vector<8x1xf32>
    %24 = vector.broadcast %23 : vector<8x1xf32> to vector<8x128xf32>
    %25 = vector.extract_strided_slice %0 {offsets = [0, 14], sizes = [8, 1], strides = [1, 1]} : vector<32x16xf32> to vector<8x1xf32>
    %26 = vector.shape_cast %25 : vector<8x1xf32> to vector<8x1xf32>
    %27 = vector.broadcast %26 : vector<8x1xf32> to vector<8x128xf32>
    %28 = vector.extract_strided_slice %0 {offsets = [0, 15], sizes = [1, 1], strides = [1, 1]} : vector<32x16xf32> to vector<1x1xf32>
    %29 = vector.shape_cast %28 : vector<1x1xf32> to vector<1x1xf32>
    %30 = vector.broadcast %29 : vector<1x1xf32> to vector<1x128xf32>
    %31 = tpu.iota {dimensions = array<i32: 0>} : vector<8x128xi32>
    %c0_i32 = arith.constant 0 : i32
    %32 = vector.broadcast %c0_i32 : i32 to vector<8x128xi32>
    %33 = arith.cmpi eq, %31, %32 : vector<8x128xi32>
    %cst = arith.constant 1.000000e+00 : f32
    %cst_1 = arith.constant 0.000000e+00 : f32
    %34 = vector.broadcast %cst : f32 to vector<8x128xf32>
    %35 = vector.broadcast %cst_1 : f32 to vector<8x128xf32>
    %36 = arith.select %33, %34, %35 : vector<8x128xi1>, vector<8x128xf32>
    %c1_i32 = arith.constant 1 : i32
    %37 = vector.broadcast %c1_i32 : i32 to vector<8x128xi32>
    %38 = arith.cmpi eq, %31, %37 : vector<8x128xi32>
    %cst_2 = arith.constant 1.000000e+00 : f32
    %cst_3 = arith.constant 0.000000e+00 : f32
    %39 = vector.broadcast %cst_2 : f32 to vector<8x128xf32>
    %40 = vector.broadcast %cst_3 : f32 to vector<8x128xf32>
    %41 = arith.select %38, %39, %40 : vector<8x128xi1>, vector<8x128xf32>
    %c2_i32 = arith.constant 2 : i32
    %42 = vector.broadcast %c2_i32 : i32 to vector<8x128xi32>
    %43 = arith.cmpi eq, %31, %42 : vector<8x128xi32>
    %cst_4 = arith.constant 1.000000e+00 : f32
    %cst_5 = arith.constant 0.000000e+00 : f32
    %44 = vector.broadcast %cst_4 : f32 to vector<8x128xf32>
    %45 = vector.broadcast %cst_5 : f32 to vector<8x128xf32>
    %46 = arith.select %43, %44, %45 : vector<8x128xi1>, vector<8x128xf32>
    %c3_i32 = arith.constant 3 : i32
    %47 = vector.broadcast %c3_i32 : i32 to vector<8x128xi32>
    %48 = arith.cmpi eq, %31, %47 : vector<8x128xi32>
    %cst_6 = arith.constant 1.000000e+00 : f32
    %cst_7 = arith.constant 0.000000e+00 : f32
    %49 = vector.broadcast %cst_6 : f32 to vector<8x128xf32>
    %50 = vector.broadcast %cst_7 : f32 to vector<8x128xf32>
    %51 = arith.select %48, %49, %50 : vector<8x128xi1>, vector<8x128xf32>
    %c4_i32 = arith.constant 4 : i32
    %52 = vector.broadcast %c4_i32 : i32 to vector<8x128xi32>
    %53 = arith.cmpi eq, %31, %52 : vector<8x128xi32>
    %cst_8 = arith.constant 1.000000e+00 : f32
    %cst_9 = arith.constant 0.000000e+00 : f32
    %54 = vector.broadcast %cst_8 : f32 to vector<8x128xf32>
    %55 = vector.broadcast %cst_9 : f32 to vector<8x128xf32>
    %56 = arith.select %53, %54, %55 : vector<8x128xi1>, vector<8x128xf32>
    %c5_i32 = arith.constant 5 : i32
    %57 = vector.broadcast %c5_i32 : i32 to vector<8x128xi32>
    %58 = arith.cmpi eq, %31, %57 : vector<8x128xi32>
    %cst_10 = arith.constant 1.000000e+00 : f32
    %cst_11 = arith.constant 0.000000e+00 : f32
    %59 = vector.broadcast %cst_10 : f32 to vector<8x128xf32>
    %60 = vector.broadcast %cst_11 : f32 to vector<8x128xf32>
    %61 = arith.select %58, %59, %60 : vector<8x128xi1>, vector<8x128xf32>
    %c6_i32 = arith.constant 6 : i32
    %62 = vector.broadcast %c6_i32 : i32 to vector<8x128xi32>
    %63 = arith.cmpi eq, %31, %62 : vector<8x128xi32>
    %cst_12 = arith.constant 1.000000e+00 : f32
    %cst_13 = arith.constant 0.000000e+00 : f32
    %64 = vector.broadcast %cst_12 : f32 to vector<8x128xf32>
    %65 = vector.broadcast %cst_13 : f32 to vector<8x128xf32>
    %66 = arith.select %63, %64, %65 : vector<8x128xi1>, vector<8x128xf32>
    %c0_14 = arith.constant 0 : index
    %c0_15 = arith.constant 0 : index
    %67 = vector.load %arg1[%c0_14, %c0_15] : memref<8x128xf32, #tpu.memory_space<vmem>>, vector<8x128xf32>
    %68 = vector.extract_strided_slice %67 {offsets = [0, 0], sizes = [1, 128], strides = [1, 1]} : vector<8x128xf32> to vector<1x128xf32>
    %69 = vector.shape_cast %68 : vector<1x128xf32> to vector<1x128xf32>
    %70 = vector.broadcast %69 : vector<1x128xf32> to vector<32x128xf32>
    %71 = arith.mulf %70, %3 : vector<32x128xf32>
    %72 = arith.addf %21, %71 : vector<32x128xf32>
    %73 = vector.extract_strided_slice %67 {offsets = [1, 0], sizes = [1, 128], strides = [1, 1]} : vector<8x128xf32> to vector<1x128xf32>
    %74 = vector.shape_cast %73 : vector<1x128xf32> to vector<1x128xf32>
    %75 = vector.broadcast %74 : vector<1x128xf32> to vector<32x128xf32>
    %76 = arith.mulf %75, %6 : vector<32x128xf32>
    %77 = arith.addf %72, %76 : vector<32x128xf32>
    %78 = vector.extract_strided_slice %67 {offsets = [2, 0], sizes = [1, 128], strides = [1, 1]} : vector<8x128xf32> to vector<1x128xf32>
    %79 = vector.shape_cast %78 : vector<1x128xf32> to vector<1x128xf32>
    %80 = vector.broadcast %79 : vector<1x128xf32> to vector<32x128xf32>
    %81 = arith.mulf %80, %9 : vector<32x128xf32>
    %82 = arith.addf %77, %81 : vector<32x128xf32>
    %83 = vector.extract_strided_slice %67 {offsets = [3, 0], sizes = [1, 128], strides = [1, 1]} : vector<8x128xf32> to vector<1x128xf32>
    %84 = vector.shape_cast %83 : vector<1x128xf32> to vector<1x128xf32>
    %85 = vector.broadcast %84 : vector<1x128xf32> to vector<32x128xf32>
    %86 = arith.mulf %85, %12 : vector<32x128xf32>
    %87 = arith.addf %82, %86 : vector<32x128xf32>
    %88 = vector.extract_strided_slice %67 {offsets = [4, 0], sizes = [1, 128], strides = [1, 1]} : vector<8x128xf32> to vector<1x128xf32>
    %89 = vector.shape_cast %88 : vector<1x128xf32> to vector<1x128xf32>
    %90 = vector.broadcast %89 : vector<1x128xf32> to vector<32x128xf32>
    %91 = arith.mulf %90, %15 : vector<32x128xf32>
    %92 = arith.addf %87, %91 : vector<32x128xf32>
    %93 = vector.extract_strided_slice %67 {offsets = [5, 0], sizes = [1, 128], strides = [1, 1]} : vector<8x128xf32> to vector<1x128xf32>
    %94 = vector.shape_cast %93 : vector<1x128xf32> to vector<1x128xf32>
    %95 = vector.broadcast %94 : vector<1x128xf32> to vector<32x128xf32>
    %96 = arith.mulf %95, %18 : vector<32x128xf32>
    %97 = arith.addf %92, %96 : vector<32x128xf32>
    %cst_16 = arith.constant 0.000000e+00 : f32
    %98 = vector.broadcast %cst_16 : f32 to vector<32x128xf32>
    %99 = arith.maximumf %97, %98 : vector<32x128xf32>
    %100 = vector.extract_strided_slice %0 {offsets = [0, 6], sizes = [32, 1], strides = [1, 1]} : vector<32x16xf32> to vector<32x1xf32>
    %101 = vector.shape_cast %100 : vector<32x1xf32> to vector<32x1xf32>
    %102 = vector.broadcast %101 : vector<32x1xf32> to vector<32x128xf32>
    %103 = arith.mulf %99, %102 : vector<32x128xf32>
    %cst_17 = arith.constant dense<0.000000e+00> : vector<128xf32>
    %104 = vector.multi_reduction <add>, %103, %cst_17 [0] : vector<32x128xf32> to vector<128xf32>
    %105 = vector.shape_cast %104 : vector<128xf32> to vector<1x128xf32>
    %106 = vector.shape_cast %105 : vector<1x128xf32> to vector<1x128xf32>
    %107 = vector.broadcast %106 : vector<1x128xf32> to vector<8x128xf32>
    %108 = arith.mulf %107, %36 : vector<8x128xf32>
    %109 = arith.addf %24, %108 : vector<8x128xf32>
    %110 = vector.extract_strided_slice %0 {offsets = [0, 7], sizes = [32, 1], strides = [1, 1]} : vector<32x16xf32> to vector<32x1xf32>
    %111 = vector.shape_cast %110 : vector<32x1xf32> to vector<32x1xf32>
    %112 = vector.broadcast %111 : vector<32x1xf32> to vector<32x128xf32>
    %113 = arith.mulf %99, %112 : vector<32x128xf32>
    %cst_18 = arith.constant dense<0.000000e+00> : vector<128xf32>
    %114 = vector.multi_reduction <add>, %113, %cst_18 [0] : vector<32x128xf32> to vector<128xf32>
    %115 = vector.shape_cast %114 : vector<128xf32> to vector<1x128xf32>
    %116 = vector.shape_cast %115 : vector<1x128xf32> to vector<1x128xf32>
    %117 = vector.broadcast %116 : vector<1x128xf32> to vector<8x128xf32>
    %118 = arith.mulf %117, %41 : vector<8x128xf32>
    %119 = arith.addf %109, %118 : vector<8x128xf32>
    %120 = vector.extract_strided_slice %0 {offsets = [0, 8], sizes = [32, 1], strides = [1, 1]} : vector<32x16xf32> to vector<32x1xf32>
    %121 = vector.shape_cast %120 : vector<32x1xf32> to vector<32x1xf32>
    %122 = vector.broadcast %121 : vector<32x1xf32> to vector<32x128xf32>
    %123 = arith.mulf %99, %122 : vector<32x128xf32>
    %cst_19 = arith.constant dense<0.000000e+00> : vector<128xf32>
    %124 = vector.multi_reduction <add>, %123, %cst_19 [0] : vector<32x128xf32> to vector<128xf32>
    %125 = vector.shape_cast %124 : vector<128xf32> to vector<1x128xf32>
    %126 = vector.shape_cast %125 : vector<1x128xf32> to vector<1x128xf32>
    %127 = vector.broadcast %126 : vector<1x128xf32> to vector<8x128xf32>
    %128 = arith.mulf %127, %46 : vector<8x128xf32>
    %129 = arith.addf %119, %128 : vector<8x128xf32>
    %130 = vector.extract_strided_slice %0 {offsets = [0, 9], sizes = [32, 1], strides = [1, 1]} : vector<32x16xf32> to vector<32x1xf32>
    %131 = vector.shape_cast %130 : vector<32x1xf32> to vector<32x1xf32>
    %132 = vector.broadcast %131 : vector<32x1xf32> to vector<32x128xf32>
    %133 = arith.mulf %99, %132 : vector<32x128xf32>
    %cst_20 = arith.constant dense<0.000000e+00> : vector<128xf32>
    %134 = vector.multi_reduction <add>, %133, %cst_20 [0] : vector<32x128xf32> to vector<128xf32>
    %135 = vector.shape_cast %134 : vector<128xf32> to vector<1x128xf32>
    %136 = vector.shape_cast %135 : vector<1x128xf32> to vector<1x128xf32>
    %137 = vector.broadcast %136 : vector<1x128xf32> to vector<8x128xf32>
    %138 = arith.mulf %137, %51 : vector<8x128xf32>
    %139 = arith.addf %129, %138 : vector<8x128xf32>
    %140 = vector.extract_strided_slice %0 {offsets = [0, 10], sizes = [32, 1], strides = [1, 1]} : vector<32x16xf32> to vector<32x1xf32>
    %141 = vector.shape_cast %140 : vector<32x1xf32> to vector<32x1xf32>
    %142 = vector.broadcast %141 : vector<32x1xf32> to vector<32x128xf32>
    %143 = arith.mulf %99, %142 : vector<32x128xf32>
    %cst_21 = arith.constant dense<0.000000e+00> : vector<128xf32>
    %144 = vector.multi_reduction <add>, %143, %cst_21 [0] : vector<32x128xf32> to vector<128xf32>
    %145 = vector.shape_cast %144 : vector<128xf32> to vector<1x128xf32>
    %146 = vector.shape_cast %145 : vector<1x128xf32> to vector<1x128xf32>
    %147 = vector.broadcast %146 : vector<1x128xf32> to vector<8x128xf32>
    %148 = arith.mulf %147, %56 : vector<8x128xf32>
    %149 = arith.addf %139, %148 : vector<8x128xf32>
    %150 = vector.extract_strided_slice %0 {offsets = [0, 11], sizes = [32, 1], strides = [1, 1]} : vector<32x16xf32> to vector<32x1xf32>
    %151 = vector.shape_cast %150 : vector<32x1xf32> to vector<32x1xf32>
    %152 = vector.broadcast %151 : vector<32x1xf32> to vector<32x128xf32>
    %153 = arith.mulf %99, %152 : vector<32x128xf32>
    %cst_22 = arith.constant dense<0.000000e+00> : vector<128xf32>
    %154 = vector.multi_reduction <add>, %153, %cst_22 [0] : vector<32x128xf32> to vector<128xf32>
    %155 = vector.shape_cast %154 : vector<128xf32> to vector<1x128xf32>
    %156 = vector.shape_cast %155 : vector<1x128xf32> to vector<1x128xf32>
    %157 = vector.broadcast %156 : vector<1x128xf32> to vector<8x128xf32>
    %158 = arith.mulf %157, %61 : vector<8x128xf32>
    %159 = arith.addf %149, %158 : vector<8x128xf32>
    %cst_23 = arith.constant 1.000000e-01 : f32
    %160 = vector.broadcast %cst_23 : f32 to vector<8x128xf32>
    %161 = arith.mulf %160, %159 : vector<8x128xf32>
    %162 = arith.addf %67, %161 : vector<8x128xf32>
    %163 = vector.extract_strided_slice %162 {offsets = [0, 0], sizes = [1, 128], strides = [1, 1]} : vector<8x128xf32> to vector<1x128xf32>
    %164 = vector.shape_cast %163 : vector<1x128xf32> to vector<1x128xf32>
    %165 = vector.broadcast %164 : vector<1x128xf32> to vector<32x128xf32>
    %166 = arith.mulf %165, %3 : vector<32x128xf32>
    %167 = arith.addf %21, %166 : vector<32x128xf32>
    %168 = vector.extract_strided_slice %162 {offsets = [1, 0], sizes = [1, 128], strides = [1, 1]} : vector<8x128xf32> to vector<1x128xf32>
    %169 = vector.shape_cast %168 : vector<1x128xf32> to vector<1x128xf32>
    %170 = vector.broadcast %169 : vector<1x128xf32> to vector<32x128xf32>
    %171 = arith.mulf %170, %6 : vector<32x128xf32>
    %172 = arith.addf %167, %171 : vector<32x128xf32>
    %173 = vector.extract_strided_slice %162 {offsets = [2, 0], sizes = [1, 128], strides = [1, 1]} : vector<8x128xf32> to vector<1x128xf32>
    %174 = vector.shape_cast %173 : vector<1x128xf32> to vector<1x128xf32>
    %175 = vector.broadcast %174 : vector<1x128xf32> to vector<32x128xf32>
    %176 = arith.mulf %175, %9 : vector<32x128xf32>
    %177 = arith.addf %172, %176 : vector<32x128xf32>
    %178 = vector.extract_strided_slice %162 {offsets = [3, 0], sizes = [1, 128], strides = [1, 1]} : vector<8x128xf32> to vector<1x128xf32>
    %179 = vector.shape_cast %178 : vector<1x128xf32> to vector<1x128xf32>
    %180 = vector.broadcast %179 : vector<1x128xf32> to vector<32x128xf32>
    %181 = arith.mulf %180, %12 : vector<32x128xf32>
    %182 = arith.addf %177, %181 : vector<32x128xf32>
    %183 = vector.extract_strided_slice %162 {offsets = [4, 0], sizes = [1, 128], strides = [1, 1]} : vector<8x128xf32> to vector<1x128xf32>
    %184 = vector.shape_cast %183 : vector<1x128xf32> to vector<1x128xf32>
    %185 = vector.broadcast %184 : vector<1x128xf32> to vector<32x128xf32>
    %186 = arith.mulf %185, %15 : vector<32x128xf32>
    %187 = arith.addf %182, %186 : vector<32x128xf32>
    %188 = vector.extract_strided_slice %162 {offsets = [5, 0], sizes = [1, 128], strides = [1, 1]} : vector<8x128xf32> to vector<1x128xf32>
    %189 = vector.shape_cast %188 : vector<1x128xf32> to vector<1x128xf32>
    %190 = vector.broadcast %189 : vector<1x128xf32> to vector<32x128xf32>
    %191 = arith.mulf %190, %18 : vector<32x128xf32>
    %192 = arith.addf %187, %191 : vector<32x128xf32>
    %cst_24 = arith.constant 0.000000e+00 : f32
    %193 = vector.broadcast %cst_24 : f32 to vector<32x128xf32>
    %194 = arith.maximumf %192, %193 : vector<32x128xf32>
    %195 = vector.extract_strided_slice %0 {offsets = [0, 6], sizes = [32, 1], strides = [1, 1]} : vector<32x16xf32> to vector<32x1xf32>
    %196 = vector.shape_cast %195 : vector<32x1xf32> to vector<32x1xf32>
    %197 = vector.broadcast %196 : vector<32x1xf32> to vector<32x128xf32>
    %198 = arith.mulf %194, %197 : vector<32x128xf32>
    %cst_25 = arith.constant dense<0.000000e+00> : vector<128xf32>
    %199 = vector.multi_reduction <add>, %198, %cst_25 [0] : vector<32x128xf32> to vector<128xf32>
    %200 = vector.shape_cast %199 : vector<128xf32> to vector<1x128xf32>
    %201 = vector.shape_cast %200 : vector<1x128xf32> to vector<1x128xf32>
    %202 = vector.broadcast %201 : vector<1x128xf32> to vector<8x128xf32>
    %203 = arith.mulf %202, %36 : vector<8x128xf32>
    %204 = arith.addf %24, %203 : vector<8x128xf32>
    %205 = vector.extract_strided_slice %0 {offsets = [0, 7], sizes = [32, 1], strides = [1, 1]} : vector<32x16xf32> to vector<32x1xf32>
    %206 = vector.shape_cast %205 : vector<32x1xf32> to vector<32x1xf32>
    %207 = vector.broadcast %206 : vector<32x1xf32> to vector<32x128xf32>
    %208 = arith.mulf %194, %207 : vector<32x128xf32>
    %cst_26 = arith.constant dense<0.000000e+00> : vector<128xf32>
    %209 = vector.multi_reduction <add>, %208, %cst_26 [0] : vector<32x128xf32> to vector<128xf32>
    %210 = vector.shape_cast %209 : vector<128xf32> to vector<1x128xf32>
    %211 = vector.shape_cast %210 : vector<1x128xf32> to vector<1x128xf32>
    %212 = vector.broadcast %211 : vector<1x128xf32> to vector<8x128xf32>
    %213 = arith.mulf %212, %41 : vector<8x128xf32>
    %214 = arith.addf %204, %213 : vector<8x128xf32>
    %215 = vector.extract_strided_slice %0 {offsets = [0, 8], sizes = [32, 1], strides = [1, 1]} : vector<32x16xf32> to vector<32x1xf32>
    %216 = vector.shape_cast %215 : vector<32x1xf32> to vector<32x1xf32>
    %217 = vector.broadcast %216 : vector<32x1xf32> to vector<32x128xf32>
    %218 = arith.mulf %194, %217 : vector<32x128xf32>
    %cst_27 = arith.constant dense<0.000000e+00> : vector<128xf32>
    %219 = vector.multi_reduction <add>, %218, %cst_27 [0] : vector<32x128xf32> to vector<128xf32>
    %220 = vector.shape_cast %219 : vector<128xf32> to vector<1x128xf32>
    %221 = vector.shape_cast %220 : vector<1x128xf32> to vector<1x128xf32>
    %222 = vector.broadcast %221 : vector<1x128xf32> to vector<8x128xf32>
    %223 = arith.mulf %222, %46 : vector<8x128xf32>
    %224 = arith.addf %214, %223 : vector<8x128xf32>
    %225 = vector.extract_strided_slice %0 {offsets = [0, 9], sizes = [32, 1], strides = [1, 1]} : vector<32x16xf32> to vector<32x1xf32>
    %226 = vector.shape_cast %225 : vector<32x1xf32> to vector<32x1xf32>
    %227 = vector.broadcast %226 : vector<32x1xf32> to vector<32x128xf32>
    %228 = arith.mulf %194, %227 : vector<32x128xf32>
    %cst_28 = arith.constant dense<0.000000e+00> : vector<128xf32>
    %229 = vector.multi_reduction <add>, %228, %cst_28 [0] : vector<32x128xf32> to vector<128xf32>
    %230 = vector.shape_cast %229 : vector<128xf32> to vector<1x128xf32>
    %231 = vector.shape_cast %230 : vector<1x128xf32> to vector<1x128xf32>
    %232 = vector.broadcast %231 : vector<1x128xf32> to vector<8x128xf32>
    %233 = arith.mulf %232, %51 : vector<8x128xf32>
    %234 = arith.addf %224, %233 : vector<8x128xf32>
    %235 = vector.extract_strided_slice %0 {offsets = [0, 10], sizes = [32, 1], strides = [1, 1]} : vector<32x16xf32> to vector<32x1xf32>
    %236 = vector.shape_cast %235 : vector<32x1xf32> to vector<32x1xf32>
    %237 = vector.broadcast %236 : vector<32x1xf32> to vector<32x128xf32>
    %238 = arith.mulf %194, %237 : vector<32x128xf32>
    %cst_29 = arith.constant dense<0.000000e+00> : vector<128xf32>
    %239 = vector.multi_reduction <add>, %238, %cst_29 [0] : vector<32x128xf32> to vector<128xf32>
    %240 = vector.shape_cast %239 : vector<128xf32> to vector<1x128xf32>
    %241 = vector.shape_cast %240 : vector<1x128xf32> to vector<1x128xf32>
    %242 = vector.broadcast %241 : vector<1x128xf32> to vector<8x128xf32>
    %243 = arith.mulf %242, %56 : vector<8x128xf32>
    %244 = arith.addf %234, %243 : vector<8x128xf32>
    %245 = vector.extract_strided_slice %0 {offsets = [0, 11], sizes = [32, 1], strides = [1, 1]} : vector<32x16xf32> to vector<32x1xf32>
    %246 = vector.shape_cast %245 : vector<32x1xf32> to vector<32x1xf32>
    %247 = vector.broadcast %246 : vector<32x1xf32> to vector<32x128xf32>
    %248 = arith.mulf %194, %247 : vector<32x128xf32>
    %cst_30 = arith.constant dense<0.000000e+00> : vector<128xf32>
    %249 = vector.multi_reduction <add>, %248, %cst_30 [0] : vector<32x128xf32> to vector<128xf32>
    %250 = vector.shape_cast %249 : vector<128xf32> to vector<1x128xf32>
    %251 = vector.shape_cast %250 : vector<1x128xf32> to vector<1x128xf32>
    %252 = vector.broadcast %251 : vector<1x128xf32> to vector<8x128xf32>
    %253 = arith.mulf %252, %61 : vector<8x128xf32>
    %254 = arith.addf %244, %253 : vector<8x128xf32>
    %cst_31 = arith.constant 1.000000e-01 : f32
    %255 = vector.broadcast %cst_31 : f32 to vector<8x128xf32>
    %256 = arith.mulf %255, %254 : vector<8x128xf32>
    %257 = arith.addf %162, %256 : vector<8x128xf32>
    %258 = vector.extract_strided_slice %257 {offsets = [0, 0], sizes = [1, 128], strides = [1, 1]} : vector<8x128xf32> to vector<1x128xf32>
    %259 = vector.shape_cast %258 : vector<1x128xf32> to vector<1x128xf32>
    %260 = vector.broadcast %259 : vector<1x128xf32> to vector<32x128xf32>
    %261 = arith.mulf %260, %3 : vector<32x128xf32>
    %262 = arith.addf %21, %261 : vector<32x128xf32>
    %263 = vector.extract_strided_slice %257 {offsets = [1, 0], sizes = [1, 128], strides = [1, 1]} : vector<8x128xf32> to vector<1x128xf32>
    %264 = vector.shape_cast %263 : vector<1x128xf32> to vector<1x128xf32>
    %265 = vector.broadcast %264 : vector<1x128xf32> to vector<32x128xf32>
    %266 = arith.mulf %265, %6 : vector<32x128xf32>
    %267 = arith.addf %262, %266 : vector<32x128xf32>
    %268 = vector.extract_strided_slice %257 {offsets = [2, 0], sizes = [1, 128], strides = [1, 1]} : vector<8x128xf32> to vector<1x128xf32>
    %269 = vector.shape_cast %268 : vector<1x128xf32> to vector<1x128xf32>
    %270 = vector.broadcast %269 : vector<1x128xf32> to vector<32x128xf32>
    %271 = arith.mulf %270, %9 : vector<32x128xf32>
    %272 = arith.addf %267, %271 : vector<32x128xf32>
    %273 = vector.extract_strided_slice %257 {offsets = [3, 0], sizes = [1, 128], strides = [1, 1]} : vector<8x128xf32> to vector<1x128xf32>
    %274 = vector.shape_cast %273 : vector<1x128xf32> to vector<1x128xf32>
    %275 = vector.broadcast %274 : vector<1x128xf32> to vector<32x128xf32>
    %276 = arith.mulf %275, %12 : vector<32x128xf32>
    %277 = arith.addf %272, %276 : vector<32x128xf32>
    %278 = vector.extract_strided_slice %257 {offsets = [4, 0], sizes = [1, 128], strides = [1, 1]} : vector<8x128xf32> to vector<1x128xf32>
    %279 = vector.shape_cast %278 : vector<1x128xf32> to vector<1x128xf32>
    %280 = vector.broadcast %279 : vector<1x128xf32> to vector<32x128xf32>
    %281 = arith.mulf %280, %15 : vector<32x128xf32>
    %282 = arith.addf %277, %281 : vector<32x128xf32>
    %283 = vector.extract_strided_slice %257 {offsets = [5, 0], sizes = [1, 128], strides = [1, 1]} : vector<8x128xf32> to vector<1x128xf32>
    %284 = vector.shape_cast %283 : vector<1x128xf32> to vector<1x128xf32>
    %285 = vector.broadcast %284 : vector<1x128xf32> to vector<32x128xf32>
    %286 = arith.mulf %285, %18 : vector<32x128xf32>
    %287 = arith.addf %282, %286 : vector<32x128xf32>
    %cst_32 = arith.constant 0.000000e+00 : f32
    %288 = vector.broadcast %cst_32 : f32 to vector<32x128xf32>
    %289 = arith.maximumf %287, %288 : vector<32x128xf32>
    %290 = vector.extract_strided_slice %0 {offsets = [0, 6], sizes = [32, 1], strides = [1, 1]} : vector<32x16xf32> to vector<32x1xf32>
    %291 = vector.shape_cast %290 : vector<32x1xf32> to vector<32x1xf32>
    %292 = vector.broadcast %291 : vector<32x1xf32> to vector<32x128xf32>
    %293 = arith.mulf %289, %292 : vector<32x128xf32>
    %cst_33 = arith.constant dense<0.000000e+00> : vector<128xf32>
    %294 = vector.multi_reduction <add>, %293, %cst_33 [0] : vector<32x128xf32> to vector<128xf32>
    %295 = vector.shape_cast %294 : vector<128xf32> to vector<1x128xf32>
    %296 = vector.shape_cast %295 : vector<1x128xf32> to vector<1x128xf32>
    %297 = vector.broadcast %296 : vector<1x128xf32> to vector<8x128xf32>
    %298 = arith.mulf %297, %36 : vector<8x128xf32>
    %299 = arith.addf %24, %298 : vector<8x128xf32>
    %300 = vector.extract_strided_slice %0 {offsets = [0, 7], sizes = [32, 1], strides = [1, 1]} : vector<32x16xf32> to vector<32x1xf32>
    %301 = vector.shape_cast %300 : vector<32x1xf32> to vector<32x1xf32>
    %302 = vector.broadcast %301 : vector<32x1xf32> to vector<32x128xf32>
    %303 = arith.mulf %289, %302 : vector<32x128xf32>
    %cst_34 = arith.constant dense<0.000000e+00> : vector<128xf32>
    %304 = vector.multi_reduction <add>, %303, %cst_34 [0] : vector<32x128xf32> to vector<128xf32>
    %305 = vector.shape_cast %304 : vector<128xf32> to vector<1x128xf32>
    %306 = vector.shape_cast %305 : vector<1x128xf32> to vector<1x128xf32>
    %307 = vector.broadcast %306 : vector<1x128xf32> to vector<8x128xf32>
    %308 = arith.mulf %307, %41 : vector<8x128xf32>
    %309 = arith.addf %299, %308 : vector<8x128xf32>
    %310 = vector.extract_strided_slice %0 {offsets = [0, 8], sizes = [32, 1], strides = [1, 1]} : vector<32x16xf32> to vector<32x1xf32>
    %311 = vector.shape_cast %310 : vector<32x1xf32> to vector<32x1xf32>
    %312 = vector.broadcast %311 : vector<32x1xf32> to vector<32x128xf32>
    %313 = arith.mulf %289, %312 : vector<32x128xf32>
    %cst_35 = arith.constant dense<0.000000e+00> : vector<128xf32>
    %314 = vector.multi_reduction <add>, %313, %cst_35 [0] : vector<32x128xf32> to vector<128xf32>
    %315 = vector.shape_cast %314 : vector<128xf32> to vector<1x128xf32>
    %316 = vector.shape_cast %315 : vector<1x128xf32> to vector<1x128xf32>
    %317 = vector.broadcast %316 : vector<1x128xf32> to vector<8x128xf32>
    %318 = arith.mulf %317, %46 : vector<8x128xf32>
    %319 = arith.addf %309, %318 : vector<8x128xf32>
    %320 = vector.extract_strided_slice %0 {offsets = [0, 9], sizes = [32, 1], strides = [1, 1]} : vector<32x16xf32> to vector<32x1xf32>
    %321 = vector.shape_cast %320 : vector<32x1xf32> to vector<32x1xf32>
    %322 = vector.broadcast %321 : vector<32x1xf32> to vector<32x128xf32>
    %323 = arith.mulf %289, %322 : vector<32x128xf32>
    %cst_36 = arith.constant dense<0.000000e+00> : vector<128xf32>
    %324 = vector.multi_reduction <add>, %323, %cst_36 [0] : vector<32x128xf32> to vector<128xf32>
    %325 = vector.shape_cast %324 : vector<128xf32> to vector<1x128xf32>
    %326 = vector.shape_cast %325 : vector<1x128xf32> to vector<1x128xf32>
    %327 = vector.broadcast %326 : vector<1x128xf32> to vector<8x128xf32>
    %328 = arith.mulf %327, %51 : vector<8x128xf32>
    %329 = arith.addf %319, %328 : vector<8x128xf32>
    %330 = vector.extract_strided_slice %0 {offsets = [0, 10], sizes = [32, 1], strides = [1, 1]} : vector<32x16xf32> to vector<32x1xf32>
    %331 = vector.shape_cast %330 : vector<32x1xf32> to vector<32x1xf32>
    %332 = vector.broadcast %331 : vector<32x1xf32> to vector<32x128xf32>
    %333 = arith.mulf %289, %332 : vector<32x128xf32>
    %cst_37 = arith.constant dense<0.000000e+00> : vector<128xf32>
    %334 = vector.multi_reduction <add>, %333, %cst_37 [0] : vector<32x128xf32> to vector<128xf32>
    %335 = vector.shape_cast %334 : vector<128xf32> to vector<1x128xf32>
    %336 = vector.shape_cast %335 : vector<1x128xf32> to vector<1x128xf32>
    %337 = vector.broadcast %336 : vector<1x128xf32> to vector<8x128xf32>
    %338 = arith.mulf %337, %56 : vector<8x128xf32>
    %339 = arith.addf %329, %338 : vector<8x128xf32>
    %340 = vector.extract_strided_slice %0 {offsets = [0, 11], sizes = [32, 1], strides = [1, 1]} : vector<32x16xf32> to vector<32x1xf32>
    %341 = vector.shape_cast %340 : vector<32x1xf32> to vector<32x1xf32>
    %342 = vector.broadcast %341 : vector<32x1xf32> to vector<32x128xf32>
    %343 = arith.mulf %289, %342 : vector<32x128xf32>
    %cst_38 = arith.constant dense<0.000000e+00> : vector<128xf32>
    %344 = vector.multi_reduction <add>, %343, %cst_38 [0] : vector<32x128xf32> to vector<128xf32>
    %345 = vector.shape_cast %344 : vector<128xf32> to vector<1x128xf32>
    %346 = vector.shape_cast %345 : vector<1x128xf32> to vector<1x128xf32>
    %347 = vector.broadcast %346 : vector<1x128xf32> to vector<8x128xf32>
    %348 = arith.mulf %347, %61 : vector<8x128xf32>
    %349 = arith.addf %339, %348 : vector<8x128xf32>
    %cst_39 = arith.constant 1.000000e-01 : f32
    %350 = vector.broadcast %cst_39 : f32 to vector<8x128xf32>
    %351 = arith.mulf %350, %349 : vector<8x128xf32>
    %352 = arith.addf %257, %351 : vector<8x128xf32>
    %353 = vector.extract_strided_slice %352 {offsets = [0, 0], sizes = [1, 128], strides = [1, 1]} : vector<8x128xf32> to vector<1x128xf32>
    %354 = vector.shape_cast %353 : vector<1x128xf32> to vector<1x128xf32>
    %355 = vector.broadcast %354 : vector<1x128xf32> to vector<32x128xf32>
    %356 = arith.mulf %355, %3 : vector<32x128xf32>
    %357 = arith.addf %21, %356 : vector<32x128xf32>
    %358 = vector.extract_strided_slice %352 {offsets = [1, 0], sizes = [1, 128], strides = [1, 1]} : vector<8x128xf32> to vector<1x128xf32>
    %359 = vector.shape_cast %358 : vector<1x128xf32> to vector<1x128xf32>
    %360 = vector.broadcast %359 : vector<1x128xf32> to vector<32x128xf32>
    %361 = arith.mulf %360, %6 : vector<32x128xf32>
    %362 = arith.addf %357, %361 : vector<32x128xf32>
    %363 = vector.extract_strided_slice %352 {offsets = [2, 0], sizes = [1, 128], strides = [1, 1]} : vector<8x128xf32> to vector<1x128xf32>
    %364 = vector.shape_cast %363 : vector<1x128xf32> to vector<1x128xf32>
    %365 = vector.broadcast %364 : vector<1x128xf32> to vector<32x128xf32>
    %366 = arith.mulf %365, %9 : vector<32x128xf32>
    %367 = arith.addf %362, %366 : vector<32x128xf32>
    %368 = vector.extract_strided_slice %352 {offsets = [3, 0], sizes = [1, 128], strides = [1, 1]} : vector<8x128xf32> to vector<1x128xf32>
    %369 = vector.shape_cast %368 : vector<1x128xf32> to vector<1x128xf32>
    %370 = vector.broadcast %369 : vector<1x128xf32> to vector<32x128xf32>
    %371 = arith.mulf %370, %12 : vector<32x128xf32>
    %372 = arith.addf %367, %371 : vector<32x128xf32>
    %373 = vector.extract_strided_slice %352 {offsets = [4, 0], sizes = [1, 128], strides = [1, 1]} : vector<8x128xf32> to vector<1x128xf32>
    %374 = vector.shape_cast %373 : vector<1x128xf32> to vector<1x128xf32>
    %375 = vector.broadcast %374 : vector<1x128xf32> to vector<32x128xf32>
    %376 = arith.mulf %375, %15 : vector<32x128xf32>
    %377 = arith.addf %372, %376 : vector<32x128xf32>
    %378 = vector.extract_strided_slice %352 {offsets = [5, 0], sizes = [1, 128], strides = [1, 1]} : vector<8x128xf32> to vector<1x128xf32>
    %379 = vector.shape_cast %378 : vector<1x128xf32> to vector<1x128xf32>
    %380 = vector.broadcast %379 : vector<1x128xf32> to vector<32x128xf32>
    %381 = arith.mulf %380, %18 : vector<32x128xf32>
    %382 = arith.addf %377, %381 : vector<32x128xf32>
    %cst_40 = arith.constant 0.000000e+00 : f32
    %383 = vector.broadcast %cst_40 : f32 to vector<32x128xf32>
    %384 = arith.maximumf %382, %383 : vector<32x128xf32>
    %385 = vector.extract_strided_slice %0 {offsets = [0, 6], sizes = [32, 1], strides = [1, 1]} : vector<32x16xf32> to vector<32x1xf32>
    %386 = vector.shape_cast %385 : vector<32x1xf32> to vector<32x1xf32>
    %387 = vector.broadcast %386 : vector<32x1xf32> to vector<32x128xf32>
    %388 = arith.mulf %384, %387 : vector<32x128xf32>
    %cst_41 = arith.constant dense<0.000000e+00> : vector<128xf32>
    %389 = vector.multi_reduction <add>, %388, %cst_41 [0] : vector<32x128xf32> to vector<128xf32>
    %390 = vector.shape_cast %389 : vector<128xf32> to vector<1x128xf32>
    %391 = vector.shape_cast %390 : vector<1x128xf32> to vector<1x128xf32>
    %392 = vector.broadcast %391 : vector<1x128xf32> to vector<8x128xf32>
    %393 = arith.mulf %392, %36 : vector<8x128xf32>
    %394 = arith.addf %24, %393 : vector<8x128xf32>
    %395 = vector.extract_strided_slice %0 {offsets = [0, 7], sizes = [32, 1], strides = [1, 1]} : vector<32x16xf32> to vector<32x1xf32>
    %396 = vector.shape_cast %395 : vector<32x1xf32> to vector<32x1xf32>
    %397 = vector.broadcast %396 : vector<32x1xf32> to vector<32x128xf32>
    %398 = arith.mulf %384, %397 : vector<32x128xf32>
    %cst_42 = arith.constant dense<0.000000e+00> : vector<128xf32>
    %399 = vector.multi_reduction <add>, %398, %cst_42 [0] : vector<32x128xf32> to vector<128xf32>
    %400 = vector.shape_cast %399 : vector<128xf32> to vector<1x128xf32>
    %401 = vector.shape_cast %400 : vector<1x128xf32> to vector<1x128xf32>
    %402 = vector.broadcast %401 : vector<1x128xf32> to vector<8x128xf32>
    %403 = arith.mulf %402, %41 : vector<8x128xf32>
    %404 = arith.addf %394, %403 : vector<8x128xf32>
    %405 = vector.extract_strided_slice %0 {offsets = [0, 8], sizes = [32, 1], strides = [1, 1]} : vector<32x16xf32> to vector<32x1xf32>
    %406 = vector.shape_cast %405 : vector<32x1xf32> to vector<32x1xf32>
    %407 = vector.broadcast %406 : vector<32x1xf32> to vector<32x128xf32>
    %408 = arith.mulf %384, %407 : vector<32x128xf32>
    %cst_43 = arith.constant dense<0.000000e+00> : vector<128xf32>
    %409 = vector.multi_reduction <add>, %408, %cst_43 [0] : vector<32x128xf32> to vector<128xf32>
    %410 = vector.shape_cast %409 : vector<128xf32> to vector<1x128xf32>
    %411 = vector.shape_cast %410 : vector<1x128xf32> to vector<1x128xf32>
    %412 = vector.broadcast %411 : vector<1x128xf32> to vector<8x128xf32>
    %413 = arith.mulf %412, %46 : vector<8x128xf32>
    %414 = arith.addf %404, %413 : vector<8x128xf32>
    %415 = vector.extract_strided_slice %0 {offsets = [0, 9], sizes = [32, 1], strides = [1, 1]} : vector<32x16xf32> to vector<32x1xf32>
    %416 = vector.shape_cast %415 : vector<32x1xf32> to vector<32x1xf32>
    %417 = vector.broadcast %416 : vector<32x1xf32> to vector<32x128xf32>
    %418 = arith.mulf %384, %417 : vector<32x128xf32>
    %cst_44 = arith.constant dense<0.000000e+00> : vector<128xf32>
    %419 = vector.multi_reduction <add>, %418, %cst_44 [0] : vector<32x128xf32> to vector<128xf32>
    %420 = vector.shape_cast %419 : vector<128xf32> to vector<1x128xf32>
    %421 = vector.shape_cast %420 : vector<1x128xf32> to vector<1x128xf32>
    %422 = vector.broadcast %421 : vector<1x128xf32> to vector<8x128xf32>
    %423 = arith.mulf %422, %51 : vector<8x128xf32>
    %424 = arith.addf %414, %423 : vector<8x128xf32>
    %425 = vector.extract_strided_slice %0 {offsets = [0, 10], sizes = [32, 1], strides = [1, 1]} : vector<32x16xf32> to vector<32x1xf32>
    %426 = vector.shape_cast %425 : vector<32x1xf32> to vector<32x1xf32>
    %427 = vector.broadcast %426 : vector<32x1xf32> to vector<32x128xf32>
    %428 = arith.mulf %384, %427 : vector<32x128xf32>
    %cst_45 = arith.constant dense<0.000000e+00> : vector<128xf32>
    %429 = vector.multi_reduction <add>, %428, %cst_45 [0] : vector<32x128xf32> to vector<128xf32>
    %430 = vector.shape_cast %429 : vector<128xf32> to vector<1x128xf32>
    %431 = vector.shape_cast %430 : vector<1x128xf32> to vector<1x128xf32>
    %432 = vector.broadcast %431 : vector<1x128xf32> to vector<8x128xf32>
    %433 = arith.mulf %432, %56 : vector<8x128xf32>
    %434 = arith.addf %424, %433 : vector<8x128xf32>
    %435 = vector.extract_strided_slice %0 {offsets = [0, 11], sizes = [32, 1], strides = [1, 1]} : vector<32x16xf32> to vector<32x1xf32>
    %436 = vector.shape_cast %435 : vector<32x1xf32> to vector<32x1xf32>
    %437 = vector.broadcast %436 : vector<32x1xf32> to vector<32x128xf32>
    %438 = arith.mulf %384, %437 : vector<32x128xf32>
    %cst_46 = arith.constant dense<0.000000e+00> : vector<128xf32>
    %439 = vector.multi_reduction <add>, %438, %cst_46 [0] : vector<32x128xf32> to vector<128xf32>
    %440 = vector.shape_cast %439 : vector<128xf32> to vector<1x128xf32>
    %441 = vector.shape_cast %440 : vector<1x128xf32> to vector<1x128xf32>
    %442 = vector.broadcast %441 : vector<1x128xf32> to vector<8x128xf32>
    %443 = arith.mulf %442, %61 : vector<8x128xf32>
    %444 = arith.addf %434, %443 : vector<8x128xf32>
    %cst_47 = arith.constant 1.000000e-01 : f32
    %445 = vector.broadcast %cst_47 : f32 to vector<8x128xf32>
    %446 = arith.mulf %445, %444 : vector<8x128xf32>
    %447 = arith.addf %352, %446 : vector<8x128xf32>
    %448 = vector.extract_strided_slice %447 {offsets = [0, 0], sizes = [1, 128], strides = [1, 1]} : vector<8x128xf32> to vector<1x128xf32>
    %449 = vector.shape_cast %448 : vector<1x128xf32> to vector<1x128xf32>
    %450 = vector.broadcast %449 : vector<1x128xf32> to vector<32x128xf32>
    %451 = arith.mulf %450, %3 : vector<32x128xf32>
    %452 = arith.addf %21, %451 : vector<32x128xf32>
    %453 = vector.extract_strided_slice %447 {offsets = [1, 0], sizes = [1, 128], strides = [1, 1]} : vector<8x128xf32> to vector<1x128xf32>
    %454 = vector.shape_cast %453 : vector<1x128xf32> to vector<1x128xf32>
    %455 = vector.broadcast %454 : vector<1x128xf32> to vector<32x128xf32>
    %456 = arith.mulf %455, %6 : vector<32x128xf32>
    %457 = arith.addf %452, %456 : vector<32x128xf32>
    %458 = vector.extract_strided_slice %447 {offsets = [2, 0], sizes = [1, 128], strides = [1, 1]} : vector<8x128xf32> to vector<1x128xf32>
    %459 = vector.shape_cast %458 : vector<1x128xf32> to vector<1x128xf32>
    %460 = vector.broadcast %459 : vector<1x128xf32> to vector<32x128xf32>
    %461 = arith.mulf %460, %9 : vector<32x128xf32>
    %462 = arith.addf %457, %461 : vector<32x128xf32>
    %463 = vector.extract_strided_slice %447 {offsets = [3, 0], sizes = [1, 128], strides = [1, 1]} : vector<8x128xf32> to vector<1x128xf32>
    %464 = vector.shape_cast %463 : vector<1x128xf32> to vector<1x128xf32>
    %465 = vector.broadcast %464 : vector<1x128xf32> to vector<32x128xf32>
    %466 = arith.mulf %465, %12 : vector<32x128xf32>
    %467 = arith.addf %462, %466 : vector<32x128xf32>
    %468 = vector.extract_strided_slice %447 {offsets = [4, 0], sizes = [1, 128], strides = [1, 1]} : vector<8x128xf32> to vector<1x128xf32>
    %469 = vector.shape_cast %468 : vector<1x128xf32> to vector<1x128xf32>
    %470 = vector.broadcast %469 : vector<1x128xf32> to vector<32x128xf32>
    %471 = arith.mulf %470, %15 : vector<32x128xf32>
    %472 = arith.addf %467, %471 : vector<32x128xf32>
    %473 = vector.extract_strided_slice %447 {offsets = [5, 0], sizes = [1, 128], strides = [1, 1]} : vector<8x128xf32> to vector<1x128xf32>
    %474 = vector.shape_cast %473 : vector<1x128xf32> to vector<1x128xf32>
    %475 = vector.broadcast %474 : vector<1x128xf32> to vector<32x128xf32>
    %476 = arith.mulf %475, %18 : vector<32x128xf32>
    %477 = arith.addf %472, %476 : vector<32x128xf32>
    %cst_48 = arith.constant 0.000000e+00 : f32
    %478 = vector.broadcast %cst_48 : f32 to vector<32x128xf32>
    %479 = arith.maximumf %477, %478 : vector<32x128xf32>
    %480 = vector.extract_strided_slice %0 {offsets = [0, 6], sizes = [32, 1], strides = [1, 1]} : vector<32x16xf32> to vector<32x1xf32>
    %481 = vector.shape_cast %480 : vector<32x1xf32> to vector<32x1xf32>
    %482 = vector.broadcast %481 : vector<32x1xf32> to vector<32x128xf32>
    %483 = arith.mulf %479, %482 : vector<32x128xf32>
    %cst_49 = arith.constant dense<0.000000e+00> : vector<128xf32>
    %484 = vector.multi_reduction <add>, %483, %cst_49 [0] : vector<32x128xf32> to vector<128xf32>
    %485 = vector.shape_cast %484 : vector<128xf32> to vector<1x128xf32>
    %486 = vector.shape_cast %485 : vector<1x128xf32> to vector<1x128xf32>
    %487 = vector.broadcast %486 : vector<1x128xf32> to vector<8x128xf32>
    %488 = arith.mulf %487, %36 : vector<8x128xf32>
    %489 = arith.addf %24, %488 : vector<8x128xf32>
    %490 = vector.extract_strided_slice %0 {offsets = [0, 7], sizes = [32, 1], strides = [1, 1]} : vector<32x16xf32> to vector<32x1xf32>
    %491 = vector.shape_cast %490 : vector<32x1xf32> to vector<32x1xf32>
    %492 = vector.broadcast %491 : vector<32x1xf32> to vector<32x128xf32>
    %493 = arith.mulf %479, %492 : vector<32x128xf32>
    %cst_50 = arith.constant dense<0.000000e+00> : vector<128xf32>
    %494 = vector.multi_reduction <add>, %493, %cst_50 [0] : vector<32x128xf32> to vector<128xf32>
    %495 = vector.shape_cast %494 : vector<128xf32> to vector<1x128xf32>
    %496 = vector.shape_cast %495 : vector<1x128xf32> to vector<1x128xf32>
    %497 = vector.broadcast %496 : vector<1x128xf32> to vector<8x128xf32>
    %498 = arith.mulf %497, %41 : vector<8x128xf32>
    %499 = arith.addf %489, %498 : vector<8x128xf32>
    %500 = vector.extract_strided_slice %0 {offsets = [0, 8], sizes = [32, 1], strides = [1, 1]} : vector<32x16xf32> to vector<32x1xf32>
    %501 = vector.shape_cast %500 : vector<32x1xf32> to vector<32x1xf32>
    %502 = vector.broadcast %501 : vector<32x1xf32> to vector<32x128xf32>
    %503 = arith.mulf %479, %502 : vector<32x128xf32>
    %cst_51 = arith.constant dense<0.000000e+00> : vector<128xf32>
    %504 = vector.multi_reduction <add>, %503, %cst_51 [0] : vector<32x128xf32> to vector<128xf32>
    %505 = vector.shape_cast %504 : vector<128xf32> to vector<1x128xf32>
    %506 = vector.shape_cast %505 : vector<1x128xf32> to vector<1x128xf32>
    %507 = vector.broadcast %506 : vector<1x128xf32> to vector<8x128xf32>
    %508 = arith.mulf %507, %46 : vector<8x128xf32>
    %509 = arith.addf %499, %508 : vector<8x128xf32>
    %510 = vector.extract_strided_slice %0 {offsets = [0, 9], sizes = [32, 1], strides = [1, 1]} : vector<32x16xf32> to vector<32x1xf32>
    %511 = vector.shape_cast %510 : vector<32x1xf32> to vector<32x1xf32>
    %512 = vector.broadcast %511 : vector<32x1xf32> to vector<32x128xf32>
    %513 = arith.mulf %479, %512 : vector<32x128xf32>
    %cst_52 = arith.constant dense<0.000000e+00> : vector<128xf32>
    %514 = vector.multi_reduction <add>, %513, %cst_52 [0] : vector<32x128xf32> to vector<128xf32>
    %515 = vector.shape_cast %514 : vector<128xf32> to vector<1x128xf32>
    %516 = vector.shape_cast %515 : vector<1x128xf32> to vector<1x128xf32>
    %517 = vector.broadcast %516 : vector<1x128xf32> to vector<8x128xf32>
    %518 = arith.mulf %517, %51 : vector<8x128xf32>
    %519 = arith.addf %509, %518 : vector<8x128xf32>
    %520 = vector.extract_strided_slice %0 {offsets = [0, 10], sizes = [32, 1], strides = [1, 1]} : vector<32x16xf32> to vector<32x1xf32>
    %521 = vector.shape_cast %520 : vector<32x1xf32> to vector<32x1xf32>
    %522 = vector.broadcast %521 : vector<32x1xf32> to vector<32x128xf32>
    %523 = arith.mulf %479, %522 : vector<32x128xf32>
    %cst_53 = arith.constant dense<0.000000e+00> : vector<128xf32>
    %524 = vector.multi_reduction <add>, %523, %cst_53 [0] : vector<32x128xf32> to vector<128xf32>
    %525 = vector.shape_cast %524 : vector<128xf32> to vector<1x128xf32>
    %526 = vector.shape_cast %525 : vector<1x128xf32> to vector<1x128xf32>
    %527 = vector.broadcast %526 : vector<1x128xf32> to vector<8x128xf32>
    %528 = arith.mulf %527, %56 : vector<8x128xf32>
    %529 = arith.addf %519, %528 : vector<8x128xf32>
    %530 = vector.extract_strided_slice %0 {offsets = [0, 11], sizes = [32, 1], strides = [1, 1]} : vector<32x16xf32> to vector<32x1xf32>
    %531 = vector.shape_cast %530 : vector<32x1xf32> to vector<32x1xf32>
    %532 = vector.broadcast %531 : vector<32x1xf32> to vector<32x128xf32>
    %533 = arith.mulf %479, %532 : vector<32x128xf32>
    %cst_54 = arith.constant dense<0.000000e+00> : vector<128xf32>
    %534 = vector.multi_reduction <add>, %533, %cst_54 [0] : vector<32x128xf32> to vector<128xf32>
    %535 = vector.shape_cast %534 : vector<128xf32> to vector<1x128xf32>
    %536 = vector.shape_cast %535 : vector<1x128xf32> to vector<1x128xf32>
    %537 = vector.broadcast %536 : vector<1x128xf32> to vector<8x128xf32>
    %538 = arith.mulf %537, %61 : vector<8x128xf32>
    %539 = arith.addf %529, %538 : vector<8x128xf32>
    %cst_55 = arith.constant 1.000000e-01 : f32
    %540 = vector.broadcast %cst_55 : f32 to vector<8x128xf32>
    %541 = arith.mulf %540, %539 : vector<8x128xf32>
    %542 = arith.addf %447, %541 : vector<8x128xf32>
    %543 = vector.extract_strided_slice %542 {offsets = [0, 0], sizes = [1, 128], strides = [1, 1]} : vector<8x128xf32> to vector<1x128xf32>
    %544 = vector.shape_cast %543 : vector<1x128xf32> to vector<1x128xf32>
    %545 = vector.broadcast %544 : vector<1x128xf32> to vector<32x128xf32>
    %546 = arith.mulf %545, %3 : vector<32x128xf32>
    %547 = arith.addf %21, %546 : vector<32x128xf32>
    %548 = vector.extract_strided_slice %542 {offsets = [1, 0], sizes = [1, 128], strides = [1, 1]} : vector<8x128xf32> to vector<1x128xf32>
    %549 = vector.shape_cast %548 : vector<1x128xf32> to vector<1x128xf32>
    %550 = vector.broadcast %549 : vector<1x128xf32> to vector<32x128xf32>
    %551 = arith.mulf %550, %6 : vector<32x128xf32>
    %552 = arith.addf %547, %551 : vector<32x128xf32>
    %553 = vector.extract_strided_slice %542 {offsets = [2, 0], sizes = [1, 128], strides = [1, 1]} : vector<8x128xf32> to vector<1x128xf32>
    %554 = vector.shape_cast %553 : vector<1x128xf32> to vector<1x128xf32>
    %555 = vector.broadcast %554 : vector<1x128xf32> to vector<32x128xf32>
    %556 = arith.mulf %555, %9 : vector<32x128xf32>
    %557 = arith.addf %552, %556 : vector<32x128xf32>
    %558 = vector.extract_strided_slice %542 {offsets = [3, 0], sizes = [1, 128], strides = [1, 1]} : vector<8x128xf32> to vector<1x128xf32>
    %559 = vector.shape_cast %558 : vector<1x128xf32> to vector<1x128xf32>
    %560 = vector.broadcast %559 : vector<1x128xf32> to vector<32x128xf32>
    %561 = arith.mulf %560, %12 : vector<32x128xf32>
    %562 = arith.addf %557, %561 : vector<32x128xf32>
    %563 = vector.extract_strided_slice %542 {offsets = [4, 0], sizes = [1, 128], strides = [1, 1]} : vector<8x128xf32> to vector<1x128xf32>
    %564 = vector.shape_cast %563 : vector<1x128xf32> to vector<1x128xf32>
    %565 = vector.broadcast %564 : vector<1x128xf32> to vector<32x128xf32>
    %566 = arith.mulf %565, %15 : vector<32x128xf32>
    %567 = arith.addf %562, %566 : vector<32x128xf32>
    %568 = vector.extract_strided_slice %542 {offsets = [5, 0], sizes = [1, 128], strides = [1, 1]} : vector<8x128xf32> to vector<1x128xf32>
    %569 = vector.shape_cast %568 : vector<1x128xf32> to vector<1x128xf32>
    %570 = vector.broadcast %569 : vector<1x128xf32> to vector<32x128xf32>
    %571 = arith.mulf %570, %18 : vector<32x128xf32>
    %572 = arith.addf %567, %571 : vector<32x128xf32>
    %cst_56 = arith.constant 0.000000e+00 : f32
    %573 = vector.broadcast %cst_56 : f32 to vector<32x128xf32>
    %574 = arith.maximumf %572, %573 : vector<32x128xf32>
    %575 = vector.extract_strided_slice %0 {offsets = [0, 6], sizes = [32, 1], strides = [1, 1]} : vector<32x16xf32> to vector<32x1xf32>
    %576 = vector.shape_cast %575 : vector<32x1xf32> to vector<32x1xf32>
    %577 = vector.broadcast %576 : vector<32x1xf32> to vector<32x128xf32>
    %578 = arith.mulf %574, %577 : vector<32x128xf32>
    %cst_57 = arith.constant dense<0.000000e+00> : vector<128xf32>
    %579 = vector.multi_reduction <add>, %578, %cst_57 [0] : vector<32x128xf32> to vector<128xf32>
    %580 = vector.shape_cast %579 : vector<128xf32> to vector<1x128xf32>
    %581 = vector.shape_cast %580 : vector<1x128xf32> to vector<1x128xf32>
    %582 = vector.broadcast %581 : vector<1x128xf32> to vector<8x128xf32>
    %583 = arith.mulf %582, %36 : vector<8x128xf32>
    %584 = arith.addf %24, %583 : vector<8x128xf32>
    %585 = vector.extract_strided_slice %0 {offsets = [0, 7], sizes = [32, 1], strides = [1, 1]} : vector<32x16xf32> to vector<32x1xf32>
    %586 = vector.shape_cast %585 : vector<32x1xf32> to vector<32x1xf32>
    %587 = vector.broadcast %586 : vector<32x1xf32> to vector<32x128xf32>
    %588 = arith.mulf %574, %587 : vector<32x128xf32>
    %cst_58 = arith.constant dense<0.000000e+00> : vector<128xf32>
    %589 = vector.multi_reduction <add>, %588, %cst_58 [0] : vector<32x128xf32> to vector<128xf32>
    %590 = vector.shape_cast %589 : vector<128xf32> to vector<1x128xf32>
    %591 = vector.shape_cast %590 : vector<1x128xf32> to vector<1x128xf32>
    %592 = vector.broadcast %591 : vector<1x128xf32> to vector<8x128xf32>
    %593 = arith.mulf %592, %41 : vector<8x128xf32>
    %594 = arith.addf %584, %593 : vector<8x128xf32>
    %595 = vector.extract_strided_slice %0 {offsets = [0, 8], sizes = [32, 1], strides = [1, 1]} : vector<32x16xf32> to vector<32x1xf32>
    %596 = vector.shape_cast %595 : vector<32x1xf32> to vector<32x1xf32>
    %597 = vector.broadcast %596 : vector<32x1xf32> to vector<32x128xf32>
    %598 = arith.mulf %574, %597 : vector<32x128xf32>
    %cst_59 = arith.constant dense<0.000000e+00> : vector<128xf32>
    %599 = vector.multi_reduction <add>, %598, %cst_59 [0] : vector<32x128xf32> to vector<128xf32>
    %600 = vector.shape_cast %599 : vector<128xf32> to vector<1x128xf32>
    %601 = vector.shape_cast %600 : vector<1x128xf32> to vector<1x128xf32>
    %602 = vector.broadcast %601 : vector<1x128xf32> to vector<8x128xf32>
    %603 = arith.mulf %602, %46 : vector<8x128xf32>
    %604 = arith.addf %594, %603 : vector<8x128xf32>
    %605 = vector.extract_strided_slice %0 {offsets = [0, 9], sizes = [32, 1], strides = [1, 1]} : vector<32x16xf32> to vector<32x1xf32>
    %606 = vector.shape_cast %605 : vector<32x1xf32> to vector<32x1xf32>
    %607 = vector.broadcast %606 : vector<32x1xf32> to vector<32x128xf32>
    %608 = arith.mulf %574, %607 : vector<32x128xf32>
    %cst_60 = arith.constant dense<0.000000e+00> : vector<128xf32>
    %609 = vector.multi_reduction <add>, %608, %cst_60 [0] : vector<32x128xf32> to vector<128xf32>
    %610 = vector.shape_cast %609 : vector<128xf32> to vector<1x128xf32>
    %611 = vector.shape_cast %610 : vector<1x128xf32> to vector<1x128xf32>
    %612 = vector.broadcast %611 : vector<1x128xf32> to vector<8x128xf32>
    %613 = arith.mulf %612, %51 : vector<8x128xf32>
    %614 = arith.addf %604, %613 : vector<8x128xf32>
    %615 = vector.extract_strided_slice %0 {offsets = [0, 10], sizes = [32, 1], strides = [1, 1]} : vector<32x16xf32> to vector<32x1xf32>
    %616 = vector.shape_cast %615 : vector<32x1xf32> to vector<32x1xf32>
    %617 = vector.broadcast %616 : vector<32x1xf32> to vector<32x128xf32>
    %618 = arith.mulf %574, %617 : vector<32x128xf32>
    %cst_61 = arith.constant dense<0.000000e+00> : vector<128xf32>
    %619 = vector.multi_reduction <add>, %618, %cst_61 [0] : vector<32x128xf32> to vector<128xf32>
    %620 = vector.shape_cast %619 : vector<128xf32> to vector<1x128xf32>
    %621 = vector.shape_cast %620 : vector<1x128xf32> to vector<1x128xf32>
    %622 = vector.broadcast %621 : vector<1x128xf32> to vector<8x128xf32>
    %623 = arith.mulf %622, %56 : vector<8x128xf32>
    %624 = arith.addf %614, %623 : vector<8x128xf32>
    %625 = vector.extract_strided_slice %0 {offsets = [0, 11], sizes = [32, 1], strides = [1, 1]} : vector<32x16xf32> to vector<32x1xf32>
    %626 = vector.shape_cast %625 : vector<32x1xf32> to vector<32x1xf32>
    %627 = vector.broadcast %626 : vector<32x1xf32> to vector<32x128xf32>
    %628 = arith.mulf %574, %627 : vector<32x128xf32>
    %cst_62 = arith.constant dense<0.000000e+00> : vector<128xf32>
    %629 = vector.multi_reduction <add>, %628, %cst_62 [0] : vector<32x128xf32> to vector<128xf32>
    %630 = vector.shape_cast %629 : vector<128xf32> to vector<1x128xf32>
    %631 = vector.shape_cast %630 : vector<1x128xf32> to vector<1x128xf32>
    %632 = vector.broadcast %631 : vector<1x128xf32> to vector<8x128xf32>
    %633 = arith.mulf %632, %61 : vector<8x128xf32>
    %634 = arith.addf %624, %633 : vector<8x128xf32>
    %cst_63 = arith.constant 1.000000e-01 : f32
    %635 = vector.broadcast %cst_63 : f32 to vector<8x128xf32>
    %636 = arith.mulf %635, %634 : vector<8x128xf32>
    %637 = arith.addf %542, %636 : vector<8x128xf32>
    %638 = vector.extract_strided_slice %637 {offsets = [0, 0], sizes = [1, 128], strides = [1, 1]} : vector<8x128xf32> to vector<1x128xf32>
    %639 = vector.shape_cast %638 : vector<1x128xf32> to vector<1x128xf32>
    %640 = vector.broadcast %639 : vector<1x128xf32> to vector<32x128xf32>
    %641 = arith.mulf %640, %3 : vector<32x128xf32>
    %642 = arith.addf %21, %641 : vector<32x128xf32>
    %643 = vector.extract_strided_slice %637 {offsets = [1, 0], sizes = [1, 128], strides = [1, 1]} : vector<8x128xf32> to vector<1x128xf32>
    %644 = vector.shape_cast %643 : vector<1x128xf32> to vector<1x128xf32>
    %645 = vector.broadcast %644 : vector<1x128xf32> to vector<32x128xf32>
    %646 = arith.mulf %645, %6 : vector<32x128xf32>
    %647 = arith.addf %642, %646 : vector<32x128xf32>
    %648 = vector.extract_strided_slice %637 {offsets = [2, 0], sizes = [1, 128], strides = [1, 1]} : vector<8x128xf32> to vector<1x128xf32>
    %649 = vector.shape_cast %648 : vector<1x128xf32> to vector<1x128xf32>
    %650 = vector.broadcast %649 : vector<1x128xf32> to vector<32x128xf32>
    %651 = arith.mulf %650, %9 : vector<32x128xf32>
    %652 = arith.addf %647, %651 : vector<32x128xf32>
    %653 = vector.extract_strided_slice %637 {offsets = [3, 0], sizes = [1, 128], strides = [1, 1]} : vector<8x128xf32> to vector<1x128xf32>
    %654 = vector.shape_cast %653 : vector<1x128xf32> to vector<1x128xf32>
    %655 = vector.broadcast %654 : vector<1x128xf32> to vector<32x128xf32>
    %656 = arith.mulf %655, %12 : vector<32x128xf32>
    %657 = arith.addf %652, %656 : vector<32x128xf32>
    %658 = vector.extract_strided_slice %637 {offsets = [4, 0], sizes = [1, 128], strides = [1, 1]} : vector<8x128xf32> to vector<1x128xf32>
    %659 = vector.shape_cast %658 : vector<1x128xf32> to vector<1x128xf32>
    %660 = vector.broadcast %659 : vector<1x128xf32> to vector<32x128xf32>
    %661 = arith.mulf %660, %15 : vector<32x128xf32>
    %662 = arith.addf %657, %661 : vector<32x128xf32>
    %663 = vector.extract_strided_slice %637 {offsets = [5, 0], sizes = [1, 128], strides = [1, 1]} : vector<8x128xf32> to vector<1x128xf32>
    %664 = vector.shape_cast %663 : vector<1x128xf32> to vector<1x128xf32>
    %665 = vector.broadcast %664 : vector<1x128xf32> to vector<32x128xf32>
    %666 = arith.mulf %665, %18 : vector<32x128xf32>
    %667 = arith.addf %662, %666 : vector<32x128xf32>
    %cst_64 = arith.constant 0.000000e+00 : f32
    %668 = vector.broadcast %cst_64 : f32 to vector<32x128xf32>
    %669 = arith.maximumf %667, %668 : vector<32x128xf32>
    %670 = vector.extract_strided_slice %0 {offsets = [0, 6], sizes = [32, 1], strides = [1, 1]} : vector<32x16xf32> to vector<32x1xf32>
    %671 = vector.shape_cast %670 : vector<32x1xf32> to vector<32x1xf32>
    %672 = vector.broadcast %671 : vector<32x1xf32> to vector<32x128xf32>
    %673 = arith.mulf %669, %672 : vector<32x128xf32>
    %cst_65 = arith.constant dense<0.000000e+00> : vector<128xf32>
    %674 = vector.multi_reduction <add>, %673, %cst_65 [0] : vector<32x128xf32> to vector<128xf32>
    %675 = vector.shape_cast %674 : vector<128xf32> to vector<1x128xf32>
    %676 = vector.shape_cast %675 : vector<1x128xf32> to vector<1x128xf32>
    %677 = vector.broadcast %676 : vector<1x128xf32> to vector<8x128xf32>
    %678 = arith.mulf %677, %36 : vector<8x128xf32>
    %679 = arith.addf %24, %678 : vector<8x128xf32>
    %680 = vector.extract_strided_slice %0 {offsets = [0, 7], sizes = [32, 1], strides = [1, 1]} : vector<32x16xf32> to vector<32x1xf32>
    %681 = vector.shape_cast %680 : vector<32x1xf32> to vector<32x1xf32>
    %682 = vector.broadcast %681 : vector<32x1xf32> to vector<32x128xf32>
    %683 = arith.mulf %669, %682 : vector<32x128xf32>
    %cst_66 = arith.constant dense<0.000000e+00> : vector<128xf32>
    %684 = vector.multi_reduction <add>, %683, %cst_66 [0] : vector<32x128xf32> to vector<128xf32>
    %685 = vector.shape_cast %684 : vector<128xf32> to vector<1x128xf32>
    %686 = vector.shape_cast %685 : vector<1x128xf32> to vector<1x128xf32>
    %687 = vector.broadcast %686 : vector<1x128xf32> to vector<8x128xf32>
    %688 = arith.mulf %687, %41 : vector<8x128xf32>
    %689 = arith.addf %679, %688 : vector<8x128xf32>
    %690 = vector.extract_strided_slice %0 {offsets = [0, 8], sizes = [32, 1], strides = [1, 1]} : vector<32x16xf32> to vector<32x1xf32>
    %691 = vector.shape_cast %690 : vector<32x1xf32> to vector<32x1xf32>
    %692 = vector.broadcast %691 : vector<32x1xf32> to vector<32x128xf32>
    %693 = arith.mulf %669, %692 : vector<32x128xf32>
    %cst_67 = arith.constant dense<0.000000e+00> : vector<128xf32>
    %694 = vector.multi_reduction <add>, %693, %cst_67 [0] : vector<32x128xf32> to vector<128xf32>
    %695 = vector.shape_cast %694 : vector<128xf32> to vector<1x128xf32>
    %696 = vector.shape_cast %695 : vector<1x128xf32> to vector<1x128xf32>
    %697 = vector.broadcast %696 : vector<1x128xf32> to vector<8x128xf32>
    %698 = arith.mulf %697, %46 : vector<8x128xf32>
    %699 = arith.addf %689, %698 : vector<8x128xf32>
    %700 = vector.extract_strided_slice %0 {offsets = [0, 9], sizes = [32, 1], strides = [1, 1]} : vector<32x16xf32> to vector<32x1xf32>
    %701 = vector.shape_cast %700 : vector<32x1xf32> to vector<32x1xf32>
    %702 = vector.broadcast %701 : vector<32x1xf32> to vector<32x128xf32>
    %703 = arith.mulf %669, %702 : vector<32x128xf32>
    %cst_68 = arith.constant dense<0.000000e+00> : vector<128xf32>
    %704 = vector.multi_reduction <add>, %703, %cst_68 [0] : vector<32x128xf32> to vector<128xf32>
    %705 = vector.shape_cast %704 : vector<128xf32> to vector<1x128xf32>
    %706 = vector.shape_cast %705 : vector<1x128xf32> to vector<1x128xf32>
    %707 = vector.broadcast %706 : vector<1x128xf32> to vector<8x128xf32>
    %708 = arith.mulf %707, %51 : vector<8x128xf32>
    %709 = arith.addf %699, %708 : vector<8x128xf32>
    %710 = vector.extract_strided_slice %0 {offsets = [0, 10], sizes = [32, 1], strides = [1, 1]} : vector<32x16xf32> to vector<32x1xf32>
    %711 = vector.shape_cast %710 : vector<32x1xf32> to vector<32x1xf32>
    %712 = vector.broadcast %711 : vector<32x1xf32> to vector<32x128xf32>
    %713 = arith.mulf %669, %712 : vector<32x128xf32>
    %cst_69 = arith.constant dense<0.000000e+00> : vector<128xf32>
    %714 = vector.multi_reduction <add>, %713, %cst_69 [0] : vector<32x128xf32> to vector<128xf32>
    %715 = vector.shape_cast %714 : vector<128xf32> to vector<1x128xf32>
    %716 = vector.shape_cast %715 : vector<1x128xf32> to vector<1x128xf32>
    %717 = vector.broadcast %716 : vector<1x128xf32> to vector<8x128xf32>
    %718 = arith.mulf %717, %56 : vector<8x128xf32>
    %719 = arith.addf %709, %718 : vector<8x128xf32>
    %720 = vector.extract_strided_slice %0 {offsets = [0, 11], sizes = [32, 1], strides = [1, 1]} : vector<32x16xf32> to vector<32x1xf32>
    %721 = vector.shape_cast %720 : vector<32x1xf32> to vector<32x1xf32>
    %722 = vector.broadcast %721 : vector<32x1xf32> to vector<32x128xf32>
    %723 = arith.mulf %669, %722 : vector<32x128xf32>
    %cst_70 = arith.constant dense<0.000000e+00> : vector<128xf32>
    %724 = vector.multi_reduction <add>, %723, %cst_70 [0] : vector<32x128xf32> to vector<128xf32>
    %725 = vector.shape_cast %724 : vector<128xf32> to vector<1x128xf32>
    %726 = vector.shape_cast %725 : vector<1x128xf32> to vector<1x128xf32>
    %727 = vector.broadcast %726 : vector<1x128xf32> to vector<8x128xf32>
    %728 = arith.mulf %727, %61 : vector<8x128xf32>
    %729 = arith.addf %719, %728 : vector<8x128xf32>
    %cst_71 = arith.constant 1.000000e-01 : f32
    %730 = vector.broadcast %cst_71 : f32 to vector<8x128xf32>
    %731 = arith.mulf %730, %729 : vector<8x128xf32>
    %732 = arith.addf %637, %731 : vector<8x128xf32>
    %733 = vector.extract_strided_slice %732 {offsets = [0, 0], sizes = [1, 128], strides = [1, 1]} : vector<8x128xf32> to vector<1x128xf32>
    %734 = vector.shape_cast %733 : vector<1x128xf32> to vector<1x128xf32>
    %735 = vector.broadcast %734 : vector<1x128xf32> to vector<32x128xf32>
    %736 = arith.mulf %735, %3 : vector<32x128xf32>
    %737 = arith.addf %21, %736 : vector<32x128xf32>
    %738 = vector.extract_strided_slice %732 {offsets = [1, 0], sizes = [1, 128], strides = [1, 1]} : vector<8x128xf32> to vector<1x128xf32>
    %739 = vector.shape_cast %738 : vector<1x128xf32> to vector<1x128xf32>
    %740 = vector.broadcast %739 : vector<1x128xf32> to vector<32x128xf32>
    %741 = arith.mulf %740, %6 : vector<32x128xf32>
    %742 = arith.addf %737, %741 : vector<32x128xf32>
    %743 = vector.extract_strided_slice %732 {offsets = [2, 0], sizes = [1, 128], strides = [1, 1]} : vector<8x128xf32> to vector<1x128xf32>
    %744 = vector.shape_cast %743 : vector<1x128xf32> to vector<1x128xf32>
    %745 = vector.broadcast %744 : vector<1x128xf32> to vector<32x128xf32>
    %746 = arith.mulf %745, %9 : vector<32x128xf32>
    %747 = arith.addf %742, %746 : vector<32x128xf32>
    %748 = vector.extract_strided_slice %732 {offsets = [3, 0], sizes = [1, 128], strides = [1, 1]} : vector<8x128xf32> to vector<1x128xf32>
    %749 = vector.shape_cast %748 : vector<1x128xf32> to vector<1x128xf32>
    %750 = vector.broadcast %749 : vector<1x128xf32> to vector<32x128xf32>
    %751 = arith.mulf %750, %12 : vector<32x128xf32>
    %752 = arith.addf %747, %751 : vector<32x128xf32>
    %753 = vector.extract_strided_slice %732 {offsets = [4, 0], sizes = [1, 128], strides = [1, 1]} : vector<8x128xf32> to vector<1x128xf32>
    %754 = vector.shape_cast %753 : vector<1x128xf32> to vector<1x128xf32>
    %755 = vector.broadcast %754 : vector<1x128xf32> to vector<32x128xf32>
    %756 = arith.mulf %755, %15 : vector<32x128xf32>
    %757 = arith.addf %752, %756 : vector<32x128xf32>
    %758 = vector.extract_strided_slice %732 {offsets = [5, 0], sizes = [1, 128], strides = [1, 1]} : vector<8x128xf32> to vector<1x128xf32>
    %759 = vector.shape_cast %758 : vector<1x128xf32> to vector<1x128xf32>
    %760 = vector.broadcast %759 : vector<1x128xf32> to vector<32x128xf32>
    %761 = arith.mulf %760, %18 : vector<32x128xf32>
    %762 = arith.addf %757, %761 : vector<32x128xf32>
    %cst_72 = arith.constant 0.000000e+00 : f32
    %763 = vector.broadcast %cst_72 : f32 to vector<32x128xf32>
    %764 = arith.maximumf %762, %763 : vector<32x128xf32>
    %765 = vector.extract_strided_slice %0 {offsets = [0, 6], sizes = [32, 1], strides = [1, 1]} : vector<32x16xf32> to vector<32x1xf32>
    %766 = vector.shape_cast %765 : vector<32x1xf32> to vector<32x1xf32>
    %767 = vector.broadcast %766 : vector<32x1xf32> to vector<32x128xf32>
    %768 = arith.mulf %764, %767 : vector<32x128xf32>
    %cst_73 = arith.constant dense<0.000000e+00> : vector<128xf32>
    %769 = vector.multi_reduction <add>, %768, %cst_73 [0] : vector<32x128xf32> to vector<128xf32>
    %770 = vector.shape_cast %769 : vector<128xf32> to vector<1x128xf32>
    %771 = vector.shape_cast %770 : vector<1x128xf32> to vector<1x128xf32>
    %772 = vector.broadcast %771 : vector<1x128xf32> to vector<8x128xf32>
    %773 = arith.mulf %772, %36 : vector<8x128xf32>
    %774 = arith.addf %24, %773 : vector<8x128xf32>
    %775 = vector.extract_strided_slice %0 {offsets = [0, 7], sizes = [32, 1], strides = [1, 1]} : vector<32x16xf32> to vector<32x1xf32>
    %776 = vector.shape_cast %775 : vector<32x1xf32> to vector<32x1xf32>
    %777 = vector.broadcast %776 : vector<32x1xf32> to vector<32x128xf32>
    %778 = arith.mulf %764, %777 : vector<32x128xf32>
    %cst_74 = arith.constant dense<0.000000e+00> : vector<128xf32>
    %779 = vector.multi_reduction <add>, %778, %cst_74 [0] : vector<32x128xf32> to vector<128xf32>
    %780 = vector.shape_cast %779 : vector<128xf32> to vector<1x128xf32>
    %781 = vector.shape_cast %780 : vector<1x128xf32> to vector<1x128xf32>
    %782 = vector.broadcast %781 : vector<1x128xf32> to vector<8x128xf32>
    %783 = arith.mulf %782, %41 : vector<8x128xf32>
    %784 = arith.addf %774, %783 : vector<8x128xf32>
    %785 = vector.extract_strided_slice %0 {offsets = [0, 8], sizes = [32, 1], strides = [1, 1]} : vector<32x16xf32> to vector<32x1xf32>
    %786 = vector.shape_cast %785 : vector<32x1xf32> to vector<32x1xf32>
    %787 = vector.broadcast %786 : vector<32x1xf32> to vector<32x128xf32>
    %788 = arith.mulf %764, %787 : vector<32x128xf32>
    %cst_75 = arith.constant dense<0.000000e+00> : vector<128xf32>
    %789 = vector.multi_reduction <add>, %788, %cst_75 [0] : vector<32x128xf32> to vector<128xf32>
    %790 = vector.shape_cast %789 : vector<128xf32> to vector<1x128xf32>
    %791 = vector.shape_cast %790 : vector<1x128xf32> to vector<1x128xf32>
    %792 = vector.broadcast %791 : vector<1x128xf32> to vector<8x128xf32>
    %793 = arith.mulf %792, %46 : vector<8x128xf32>
    %794 = arith.addf %784, %793 : vector<8x128xf32>
    %795 = vector.extract_strided_slice %0 {offsets = [0, 9], sizes = [32, 1], strides = [1, 1]} : vector<32x16xf32> to vector<32x1xf32>
    %796 = vector.shape_cast %795 : vector<32x1xf32> to vector<32x1xf32>
    %797 = vector.broadcast %796 : vector<32x1xf32> to vector<32x128xf32>
    %798 = arith.mulf %764, %797 : vector<32x128xf32>
    %cst_76 = arith.constant dense<0.000000e+00> : vector<128xf32>
    %799 = vector.multi_reduction <add>, %798, %cst_76 [0] : vector<32x128xf32> to vector<128xf32>
    %800 = vector.shape_cast %799 : vector<128xf32> to vector<1x128xf32>
    %801 = vector.shape_cast %800 : vector<1x128xf32> to vector<1x128xf32>
    %802 = vector.broadcast %801 : vector<1x128xf32> to vector<8x128xf32>
    %803 = arith.mulf %802, %51 : vector<8x128xf32>
    %804 = arith.addf %794, %803 : vector<8x128xf32>
    %805 = vector.extract_strided_slice %0 {offsets = [0, 10], sizes = [32, 1], strides = [1, 1]} : vector<32x16xf32> to vector<32x1xf32>
    %806 = vector.shape_cast %805 : vector<32x1xf32> to vector<32x1xf32>
    %807 = vector.broadcast %806 : vector<32x1xf32> to vector<32x128xf32>
    %808 = arith.mulf %764, %807 : vector<32x128xf32>
    %cst_77 = arith.constant dense<0.000000e+00> : vector<128xf32>
    %809 = vector.multi_reduction <add>, %808, %cst_77 [0] : vector<32x128xf32> to vector<128xf32>
    %810 = vector.shape_cast %809 : vector<128xf32> to vector<1x128xf32>
    %811 = vector.shape_cast %810 : vector<1x128xf32> to vector<1x128xf32>
    %812 = vector.broadcast %811 : vector<1x128xf32> to vector<8x128xf32>
    %813 = arith.mulf %812, %56 : vector<8x128xf32>
    %814 = arith.addf %804, %813 : vector<8x128xf32>
    %815 = vector.extract_strided_slice %0 {offsets = [0, 11], sizes = [32, 1], strides = [1, 1]} : vector<32x16xf32> to vector<32x1xf32>
    %816 = vector.shape_cast %815 : vector<32x1xf32> to vector<32x1xf32>
    %817 = vector.broadcast %816 : vector<32x1xf32> to vector<32x128xf32>
    %818 = arith.mulf %764, %817 : vector<32x128xf32>
    %cst_78 = arith.constant dense<0.000000e+00> : vector<128xf32>
    %819 = vector.multi_reduction <add>, %818, %cst_78 [0] : vector<32x128xf32> to vector<128xf32>
    %820 = vector.shape_cast %819 : vector<128xf32> to vector<1x128xf32>
    %821 = vector.shape_cast %820 : vector<1x128xf32> to vector<1x128xf32>
    %822 = vector.broadcast %821 : vector<1x128xf32> to vector<8x128xf32>
    %823 = arith.mulf %822, %61 : vector<8x128xf32>
    %824 = arith.addf %814, %823 : vector<8x128xf32>
    %cst_79 = arith.constant 1.000000e-01 : f32
    %825 = vector.broadcast %cst_79 : f32 to vector<8x128xf32>
    %826 = arith.mulf %825, %824 : vector<8x128xf32>
    %827 = arith.addf %732, %826 : vector<8x128xf32>
    %828 = vector.extract_strided_slice %827 {offsets = [0, 0], sizes = [1, 128], strides = [1, 1]} : vector<8x128xf32> to vector<1x128xf32>
    %829 = vector.shape_cast %828 : vector<1x128xf32> to vector<1x128xf32>
    %830 = vector.broadcast %829 : vector<1x128xf32> to vector<32x128xf32>
    %831 = arith.mulf %830, %3 : vector<32x128xf32>
    %832 = arith.addf %21, %831 : vector<32x128xf32>
    %833 = vector.extract_strided_slice %827 {offsets = [1, 0], sizes = [1, 128], strides = [1, 1]} : vector<8x128xf32> to vector<1x128xf32>
    %834 = vector.shape_cast %833 : vector<1x128xf32> to vector<1x128xf32>
    %835 = vector.broadcast %834 : vector<1x128xf32> to vector<32x128xf32>
    %836 = arith.mulf %835, %6 : vector<32x128xf32>
    %837 = arith.addf %832, %836 : vector<32x128xf32>
    %838 = vector.extract_strided_slice %827 {offsets = [2, 0], sizes = [1, 128], strides = [1, 1]} : vector<8x128xf32> to vector<1x128xf32>
    %839 = vector.shape_cast %838 : vector<1x128xf32> to vector<1x128xf32>
    %840 = vector.broadcast %839 : vector<1x128xf32> to vector<32x128xf32>
    %841 = arith.mulf %840, %9 : vector<32x128xf32>
    %842 = arith.addf %837, %841 : vector<32x128xf32>
    %843 = vector.extract_strided_slice %827 {offsets = [3, 0], sizes = [1, 128], strides = [1, 1]} : vector<8x128xf32> to vector<1x128xf32>
    %844 = vector.shape_cast %843 : vector<1x128xf32> to vector<1x128xf32>
    %845 = vector.broadcast %844 : vector<1x128xf32> to vector<32x128xf32>
    %846 = arith.mulf %845, %12 : vector<32x128xf32>
    %847 = arith.addf %842, %846 : vector<32x128xf32>
    %848 = vector.extract_strided_slice %827 {offsets = [4, 0], sizes = [1, 128], strides = [1, 1]} : vector<8x128xf32> to vector<1x128xf32>
    %849 = vector.shape_cast %848 : vector<1x128xf32> to vector<1x128xf32>
    %850 = vector.broadcast %849 : vector<1x128xf32> to vector<32x128xf32>
    %851 = arith.mulf %850, %15 : vector<32x128xf32>
    %852 = arith.addf %847, %851 : vector<32x128xf32>
    %853 = vector.extract_strided_slice %827 {offsets = [5, 0], sizes = [1, 128], strides = [1, 1]} : vector<8x128xf32> to vector<1x128xf32>
    %854 = vector.shape_cast %853 : vector<1x128xf32> to vector<1x128xf32>
    %855 = vector.broadcast %854 : vector<1x128xf32> to vector<32x128xf32>
    %856 = arith.mulf %855, %18 : vector<32x128xf32>
    %857 = arith.addf %852, %856 : vector<32x128xf32>
    %cst_80 = arith.constant 0.000000e+00 : f32
    %858 = vector.broadcast %cst_80 : f32 to vector<32x128xf32>
    %859 = arith.maximumf %857, %858 : vector<32x128xf32>
    %860 = vector.extract_strided_slice %0 {offsets = [0, 6], sizes = [32, 1], strides = [1, 1]} : vector<32x16xf32> to vector<32x1xf32>
    %861 = vector.shape_cast %860 : vector<32x1xf32> to vector<32x1xf32>
    %862 = vector.broadcast %861 : vector<32x1xf32> to vector<32x128xf32>
    %863 = arith.mulf %859, %862 : vector<32x128xf32>
    %cst_81 = arith.constant dense<0.000000e+00> : vector<128xf32>
    %864 = vector.multi_reduction <add>, %863, %cst_81 [0] : vector<32x128xf32> to vector<128xf32>
    %865 = vector.shape_cast %864 : vector<128xf32> to vector<1x128xf32>
    %866 = vector.shape_cast %865 : vector<1x128xf32> to vector<1x128xf32>
    %867 = vector.broadcast %866 : vector<1x128xf32> to vector<8x128xf32>
    %868 = arith.mulf %867, %36 : vector<8x128xf32>
    %869 = arith.addf %24, %868 : vector<8x128xf32>
    %870 = vector.extract_strided_slice %0 {offsets = [0, 7], sizes = [32, 1], strides = [1, 1]} : vector<32x16xf32> to vector<32x1xf32>
    %871 = vector.shape_cast %870 : vector<32x1xf32> to vector<32x1xf32>
    %872 = vector.broadcast %871 : vector<32x1xf32> to vector<32x128xf32>
    %873 = arith.mulf %859, %872 : vector<32x128xf32>
    %cst_82 = arith.constant dense<0.000000e+00> : vector<128xf32>
    %874 = vector.multi_reduction <add>, %873, %cst_82 [0] : vector<32x128xf32> to vector<128xf32>
    %875 = vector.shape_cast %874 : vector<128xf32> to vector<1x128xf32>
    %876 = vector.shape_cast %875 : vector<1x128xf32> to vector<1x128xf32>
    %877 = vector.broadcast %876 : vector<1x128xf32> to vector<8x128xf32>
    %878 = arith.mulf %877, %41 : vector<8x128xf32>
    %879 = arith.addf %869, %878 : vector<8x128xf32>
    %880 = vector.extract_strided_slice %0 {offsets = [0, 8], sizes = [32, 1], strides = [1, 1]} : vector<32x16xf32> to vector<32x1xf32>
    %881 = vector.shape_cast %880 : vector<32x1xf32> to vector<32x1xf32>
    %882 = vector.broadcast %881 : vector<32x1xf32> to vector<32x128xf32>
    %883 = arith.mulf %859, %882 : vector<32x128xf32>
    %cst_83 = arith.constant dense<0.000000e+00> : vector<128xf32>
    %884 = vector.multi_reduction <add>, %883, %cst_83 [0] : vector<32x128xf32> to vector<128xf32>
    %885 = vector.shape_cast %884 : vector<128xf32> to vector<1x128xf32>
    %886 = vector.shape_cast %885 : vector<1x128xf32> to vector<1x128xf32>
    %887 = vector.broadcast %886 : vector<1x128xf32> to vector<8x128xf32>
    %888 = arith.mulf %887, %46 : vector<8x128xf32>
    %889 = arith.addf %879, %888 : vector<8x128xf32>
    %890 = vector.extract_strided_slice %0 {offsets = [0, 9], sizes = [32, 1], strides = [1, 1]} : vector<32x16xf32> to vector<32x1xf32>
    %891 = vector.shape_cast %890 : vector<32x1xf32> to vector<32x1xf32>
    %892 = vector.broadcast %891 : vector<32x1xf32> to vector<32x128xf32>
    %893 = arith.mulf %859, %892 : vector<32x128xf32>
    %cst_84 = arith.constant dense<0.000000e+00> : vector<128xf32>
    %894 = vector.multi_reduction <add>, %893, %cst_84 [0] : vector<32x128xf32> to vector<128xf32>
    %895 = vector.shape_cast %894 : vector<128xf32> to vector<1x128xf32>
    %896 = vector.shape_cast %895 : vector<1x128xf32> to vector<1x128xf32>
    %897 = vector.broadcast %896 : vector<1x128xf32> to vector<8x128xf32>
    %898 = arith.mulf %897, %51 : vector<8x128xf32>
    %899 = arith.addf %889, %898 : vector<8x128xf32>
    %900 = vector.extract_strided_slice %0 {offsets = [0, 10], sizes = [32, 1], strides = [1, 1]} : vector<32x16xf32> to vector<32x1xf32>
    %901 = vector.shape_cast %900 : vector<32x1xf32> to vector<32x1xf32>
    %902 = vector.broadcast %901 : vector<32x1xf32> to vector<32x128xf32>
    %903 = arith.mulf %859, %902 : vector<32x128xf32>
    %cst_85 = arith.constant dense<0.000000e+00> : vector<128xf32>
    %904 = vector.multi_reduction <add>, %903, %cst_85 [0] : vector<32x128xf32> to vector<128xf32>
    %905 = vector.shape_cast %904 : vector<128xf32> to vector<1x128xf32>
    %906 = vector.shape_cast %905 : vector<1x128xf32> to vector<1x128xf32>
    %907 = vector.broadcast %906 : vector<1x128xf32> to vector<8x128xf32>
    %908 = arith.mulf %907, %56 : vector<8x128xf32>
    %909 = arith.addf %899, %908 : vector<8x128xf32>
    %910 = vector.extract_strided_slice %0 {offsets = [0, 11], sizes = [32, 1], strides = [1, 1]} : vector<32x16xf32> to vector<32x1xf32>
    %911 = vector.shape_cast %910 : vector<32x1xf32> to vector<32x1xf32>
    %912 = vector.broadcast %911 : vector<32x1xf32> to vector<32x128xf32>
    %913 = arith.mulf %859, %912 : vector<32x128xf32>
    %cst_86 = arith.constant dense<0.000000e+00> : vector<128xf32>
    %914 = vector.multi_reduction <add>, %913, %cst_86 [0] : vector<32x128xf32> to vector<128xf32>
    %915 = vector.shape_cast %914 : vector<128xf32> to vector<1x128xf32>
    %916 = vector.shape_cast %915 : vector<1x128xf32> to vector<1x128xf32>
    %917 = vector.broadcast %916 : vector<1x128xf32> to vector<8x128xf32>
    %918 = arith.mulf %917, %61 : vector<8x128xf32>
    %919 = arith.addf %909, %918 : vector<8x128xf32>
    %cst_87 = arith.constant 1.000000e-01 : f32
    %920 = vector.broadcast %cst_87 : f32 to vector<8x128xf32>
    %921 = arith.mulf %920, %919 : vector<8x128xf32>
    %922 = arith.addf %827, %921 : vector<8x128xf32>
    %923 = vector.extract_strided_slice %922 {offsets = [0, 0], sizes = [1, 128], strides = [1, 1]} : vector<8x128xf32> to vector<1x128xf32>
    %924 = vector.shape_cast %923 : vector<1x128xf32> to vector<1x128xf32>
    %925 = vector.broadcast %924 : vector<1x128xf32> to vector<32x128xf32>
    %926 = arith.mulf %925, %3 : vector<32x128xf32>
    %927 = arith.addf %21, %926 : vector<32x128xf32>
    %928 = vector.extract_strided_slice %922 {offsets = [1, 0], sizes = [1, 128], strides = [1, 1]} : vector<8x128xf32> to vector<1x128xf32>
    %929 = vector.shape_cast %928 : vector<1x128xf32> to vector<1x128xf32>
    %930 = vector.broadcast %929 : vector<1x128xf32> to vector<32x128xf32>
    %931 = arith.mulf %930, %6 : vector<32x128xf32>
    %932 = arith.addf %927, %931 : vector<32x128xf32>
    %933 = vector.extract_strided_slice %922 {offsets = [2, 0], sizes = [1, 128], strides = [1, 1]} : vector<8x128xf32> to vector<1x128xf32>
    %934 = vector.shape_cast %933 : vector<1x128xf32> to vector<1x128xf32>
    %935 = vector.broadcast %934 : vector<1x128xf32> to vector<32x128xf32>
    %936 = arith.mulf %935, %9 : vector<32x128xf32>
    %937 = arith.addf %932, %936 : vector<32x128xf32>
    %938 = vector.extract_strided_slice %922 {offsets = [3, 0], sizes = [1, 128], strides = [1, 1]} : vector<8x128xf32> to vector<1x128xf32>
    %939 = vector.shape_cast %938 : vector<1x128xf32> to vector<1x128xf32>
    %940 = vector.broadcast %939 : vector<1x128xf32> to vector<32x128xf32>
    %941 = arith.mulf %940, %12 : vector<32x128xf32>
    %942 = arith.addf %937, %941 : vector<32x128xf32>
    %943 = vector.extract_strided_slice %922 {offsets = [4, 0], sizes = [1, 128], strides = [1, 1]} : vector<8x128xf32> to vector<1x128xf32>
    %944 = vector.shape_cast %943 : vector<1x128xf32> to vector<1x128xf32>
    %945 = vector.broadcast %944 : vector<1x128xf32> to vector<32x128xf32>
    %946 = arith.mulf %945, %15 : vector<32x128xf32>
    %947 = arith.addf %942, %946 : vector<32x128xf32>
    %948 = vector.extract_strided_slice %922 {offsets = [5, 0], sizes = [1, 128], strides = [1, 1]} : vector<8x128xf32> to vector<1x128xf32>
    %949 = vector.shape_cast %948 : vector<1x128xf32> to vector<1x128xf32>
    %950 = vector.broadcast %949 : vector<1x128xf32> to vector<32x128xf32>
    %951 = arith.mulf %950, %18 : vector<32x128xf32>
    %952 = arith.addf %947, %951 : vector<32x128xf32>
    %cst_88 = arith.constant 0.000000e+00 : f32
    %953 = vector.broadcast %cst_88 : f32 to vector<32x128xf32>
    %954 = arith.maximumf %952, %953 : vector<32x128xf32>
    %955 = vector.extract_strided_slice %0 {offsets = [0, 6], sizes = [32, 1], strides = [1, 1]} : vector<32x16xf32> to vector<32x1xf32>
    %956 = vector.shape_cast %955 : vector<32x1xf32> to vector<32x1xf32>
    %957 = vector.broadcast %956 : vector<32x1xf32> to vector<32x128xf32>
    %958 = arith.mulf %954, %957 : vector<32x128xf32>
    %cst_89 = arith.constant dense<0.000000e+00> : vector<128xf32>
    %959 = vector.multi_reduction <add>, %958, %cst_89 [0] : vector<32x128xf32> to vector<128xf32>
    %960 = vector.shape_cast %959 : vector<128xf32> to vector<1x128xf32>
    %961 = vector.shape_cast %960 : vector<1x128xf32> to vector<1x128xf32>
    %962 = vector.broadcast %961 : vector<1x128xf32> to vector<8x128xf32>
    %963 = arith.mulf %962, %36 : vector<8x128xf32>
    %964 = arith.addf %24, %963 : vector<8x128xf32>
    %965 = vector.extract_strided_slice %0 {offsets = [0, 7], sizes = [32, 1], strides = [1, 1]} : vector<32x16xf32> to vector<32x1xf32>
    %966 = vector.shape_cast %965 : vector<32x1xf32> to vector<32x1xf32>
    %967 = vector.broadcast %966 : vector<32x1xf32> to vector<32x128xf32>
    %968 = arith.mulf %954, %967 : vector<32x128xf32>
    %cst_90 = arith.constant dense<0.000000e+00> : vector<128xf32>
    %969 = vector.multi_reduction <add>, %968, %cst_90 [0] : vector<32x128xf32> to vector<128xf32>
    %970 = vector.shape_cast %969 : vector<128xf32> to vector<1x128xf32>
    %971 = vector.shape_cast %970 : vector<1x128xf32> to vector<1x128xf32>
    %972 = vector.broadcast %971 : vector<1x128xf32> to vector<8x128xf32>
    %973 = arith.mulf %972, %41 : vector<8x128xf32>
    %974 = arith.addf %964, %973 : vector<8x128xf32>
    %975 = vector.extract_strided_slice %0 {offsets = [0, 8], sizes = [32, 1], strides = [1, 1]} : vector<32x16xf32> to vector<32x1xf32>
    %976 = vector.shape_cast %975 : vector<32x1xf32> to vector<32x1xf32>
    %977 = vector.broadcast %976 : vector<32x1xf32> to vector<32x128xf32>
    %978 = arith.mulf %954, %977 : vector<32x128xf32>
    %cst_91 = arith.constant dense<0.000000e+00> : vector<128xf32>
    %979 = vector.multi_reduction <add>, %978, %cst_91 [0] : vector<32x128xf32> to vector<128xf32>
    %980 = vector.shape_cast %979 : vector<128xf32> to vector<1x128xf32>
    %981 = vector.shape_cast %980 : vector<1x128xf32> to vector<1x128xf32>
    %982 = vector.broadcast %981 : vector<1x128xf32> to vector<8x128xf32>
    %983 = arith.mulf %982, %46 : vector<8x128xf32>
    %984 = arith.addf %974, %983 : vector<8x128xf32>
    %985 = vector.extract_strided_slice %0 {offsets = [0, 9], sizes = [32, 1], strides = [1, 1]} : vector<32x16xf32> to vector<32x1xf32>
    %986 = vector.shape_cast %985 : vector<32x1xf32> to vector<32x1xf32>
    %987 = vector.broadcast %986 : vector<32x1xf32> to vector<32x128xf32>
    %988 = arith.mulf %954, %987 : vector<32x128xf32>
    %cst_92 = arith.constant dense<0.000000e+00> : vector<128xf32>
    %989 = vector.multi_reduction <add>, %988, %cst_92 [0] : vector<32x128xf32> to vector<128xf32>
    %990 = vector.shape_cast %989 : vector<128xf32> to vector<1x128xf32>
    %991 = vector.shape_cast %990 : vector<1x128xf32> to vector<1x128xf32>
    %992 = vector.broadcast %991 : vector<1x128xf32> to vector<8x128xf32>
    %993 = arith.mulf %992, %51 : vector<8x128xf32>
    %994 = arith.addf %984, %993 : vector<8x128xf32>
    %995 = vector.extract_strided_slice %0 {offsets = [0, 10], sizes = [32, 1], strides = [1, 1]} : vector<32x16xf32> to vector<32x1xf32>
    %996 = vector.shape_cast %995 : vector<32x1xf32> to vector<32x1xf32>
    %997 = vector.broadcast %996 : vector<32x1xf32> to vector<32x128xf32>
    %998 = arith.mulf %954, %997 : vector<32x128xf32>
    %cst_93 = arith.constant dense<0.000000e+00> : vector<128xf32>
    %999 = vector.multi_reduction <add>, %998, %cst_93 [0] : vector<32x128xf32> to vector<128xf32>
    %1000 = vector.shape_cast %999 : vector<128xf32> to vector<1x128xf32>
    %1001 = vector.shape_cast %1000 : vector<1x128xf32> to vector<1x128xf32>
    %1002 = vector.broadcast %1001 : vector<1x128xf32> to vector<8x128xf32>
    %1003 = arith.mulf %1002, %56 : vector<8x128xf32>
    %1004 = arith.addf %994, %1003 : vector<8x128xf32>
    %1005 = vector.extract_strided_slice %0 {offsets = [0, 11], sizes = [32, 1], strides = [1, 1]} : vector<32x16xf32> to vector<32x1xf32>
    %1006 = vector.shape_cast %1005 : vector<32x1xf32> to vector<32x1xf32>
    %1007 = vector.broadcast %1006 : vector<32x1xf32> to vector<32x128xf32>
    %1008 = arith.mulf %954, %1007 : vector<32x128xf32>
    %cst_94 = arith.constant dense<0.000000e+00> : vector<128xf32>
    %1009 = vector.multi_reduction <add>, %1008, %cst_94 [0] : vector<32x128xf32> to vector<128xf32>
    %1010 = vector.shape_cast %1009 : vector<128xf32> to vector<1x128xf32>
    %1011 = vector.shape_cast %1010 : vector<1x128xf32> to vector<1x128xf32>
    %1012 = vector.broadcast %1011 : vector<1x128xf32> to vector<8x128xf32>
    %1013 = arith.mulf %1012, %61 : vector<8x128xf32>
    %1014 = arith.addf %1004, %1013 : vector<8x128xf32>
    %cst_95 = arith.constant 1.000000e-01 : f32
    %1015 = vector.broadcast %cst_95 : f32 to vector<8x128xf32>
    %1016 = arith.mulf %1015, %1014 : vector<8x128xf32>
    %1017 = arith.addf %922, %1016 : vector<8x128xf32>
    %1018 = arith.mulf %1017, %27 : vector<8x128xf32>
    %cst_96 = arith.constant dense<0.000000e+00> : vector<128xf32>
    %1019 = vector.multi_reduction <add>, %1018, %cst_96 [0] : vector<8x128xf32> to vector<128xf32>
    %1020 = vector.shape_cast %1019 : vector<128xf32> to vector<1x128xf32>
    %1021 = arith.addf %1020, %30 : vector<1x128xf32>
    %1022 = vector.shape_cast %1021 : vector<1x128xf32> to vector<1x128xf32>
    %1023 = vector.broadcast %1022 : vector<1x128xf32> to vector<8x128xf32>
    %1024 = arith.mulf %1023, %66 : vector<8x128xf32>
    %1025 = arith.addf %1017, %1024 : vector<8x128xf32>
    %c0_97 = arith.constant 0 : index
    %c0_98 = arith.constant 0 : index
    %1026 = vector.load %arg3[%c0_97, %c0_98] : memref<8x128xf32, #tpu.memory_space<vmem>>, vector<8x128xf32>
    tpu.vector_store %arg3[%c0_97, %c0_98], %1025 {strides = array<i32>} : memref<8x128xf32, #tpu.memory_space<vmem>>, vector<8x128xf32>,
    return
  }
  func.func @transform_0(%arg0: i32) -> (i32, i32) {
    %c0_i32 = arith.constant 0 : i32
    %c0_i32_0 = arith.constant 0 : i32
    return %c0_i32, %arg0 : i32, i32
  }
  func.func @transform_1(%arg0: i32) -> (i32, i32) {
    %c0_i32 = arith.constant 0 : i32
    %c0_i32_0 = arith.constant 0 : i32
    %c0_i32_1 = arith.constant 0 : i32
    return %c0_i32, %c0_i32_0 : i32, i32
  }
  func.func @transform_2(%arg0: i32) -> (i32, i32) {
    %c0_i32 = arith.constant 0 : i32
    %c0_i32_0 = arith.constant 0 : i32
    return %c0_i32, %arg0 : i32, i32
  }
}

</mosaic_0001>

<llo_original>
// kernel: tpu_custom_call.1
$region0: #{tpu_custom_call.1}
  #allocation0 [shape = 'u32[]', space=smem, size = 0x4, offset = 0x4, fixed_abs, tag = 'smem constant byte address 0x4 - core index']
  #allocation1 [shape = 'u32[144,128]{1,0:T(1,128)}', space=vmem, size = 0x12000, scoped, tag = 'internal scratch']
  %s0 = inlined_call_operand.vmem [shape: f32[8,128], index: 0, kind: input, shape index: {}]
  %s1 = inlined_call_operand.vmem [shape: f32[32,16], index: 1, kind: input, shape index: {}]
  %s2 = inlined_call_operand.hbm [shape: f32[8,128], index: 2, kind: output, shape index: {}]
  %s3 = sld [smem:[#allocation0]]
  $region18: #{tpu_custom_call.1} parent=0
    _
  %s5 = ssub.s32 1, %s3
  %s6 = scalar_select 0, %s5, %s3
  $region1: #{tpu_custom_call.1} parent=0
    #allocation2 [shape = 'u8[4096]{0}', space=vmem, size = 0x1000, scoped, tag = 'output window, operand 0, single buffered']
    #allocation3 [shape = 's32[1]{0}', space=sflag, size = 0x4, scoped, tag = 'scoped memory for tpu_custom_call.1']
    %7 = vsyncpa [#allocation3], 0
    // Predicated region
    $region2: #{tpu_custom_call.1} parent=1 // pred_check
      _
    $region3: #{tpu_custom_call.1} parent=1 // pred_check_branch
      %9 = sbr.rel (0) target = $region5
    $region4: #{tpu_custom_call.1} parent=1 // pred_region
      _
    $region5: #{tpu_custom_call.1} parent=1 // pred_fallthru
      _
    // Predicated region
    $region6: #{tpu_custom_call.1} parent=1 // pred_check
      _
    $region7: #{tpu_custom_call.1} parent=1 // pred_check_branch
      %11 = sbr.rel (0) target = $region9
    $region8: #{tpu_custom_call.1} parent=1 // pred_region
      _
    $region9: #{tpu_custom_call.1} parent=1 // pred_fallthru
      _
    %v12 = vld [vmem:[%s1] sm:$0xff]
    %v13 = vld [vmem:[%s1 + $0x8] sm:$0xff]
    %v14 = vld [vmem:[%s1 + $0x10] sm:$0xff]
    %v15 = vld [vmem:[%s1 + $0x18] sm:$0xff]
    %17 = vset.pattern.permute.xlu0 0
    %18 = vperm.xlu0 %17, %v12
    %v19 = vpop.permute.xlu0 %18
    %22 = vset.pattern.permute.xlu0 0
    %23 = vperm.xlu0 %22, %v13
    %v24 = vpop.permute.xlu0 %23
    %27 = vset.pattern.permute.xlu0 0
    %28 = vperm.xlu0 %27, %v14
    %v29 = vpop.permute.xlu0 %28
    %32 = vset.pattern.permute.xlu0 0
    %33 = vperm.xlu0 %32, %v15
    %v34 = vpop.permute.xlu0 %33
    %36 = vset.pattern.permute.xlu0 1
    %37 = vperm.xlu0 %36, %v12
    %v38 = vpop.permute.xlu0 %37
    %40 = vset.pattern.permute.xlu0 1
    %41 = vperm.xlu0 %40, %v13
    %v42 = vpop.permute.xlu0 %41
    %44 = vset.pattern.permute.xlu0 1
    %45 = vperm.xlu0 %44, %v14
    %v46 = vpop.permute.xlu0 %45
    %48 = vset.pattern.permute.xlu0 1
    %49 = vperm.xlu0 %48, %v15
    %v50 = vpop.permute.xlu0 %49
    %52 = vset.pattern.permute.xlu0 2
    %53 = vperm.xlu0 %52, %v12
    %v54 = vpop.permute.xlu0 %53
    %56 = vset.pattern.permute.xlu0 2
    %57 = vperm.xlu0 %56, %v13
    %v58 = vpop.permute.xlu0 %57
    %60 = vset.pattern.permute.xlu0 2
    %61 = vperm.xlu0 %60, %v14
    %v62 = vpop.permute.xlu0 %61
    %64 = vset.pattern.permute.xlu0 2
    %65 = vperm.xlu0 %64, %v15
    %v66 = vpop.permute.xlu0 %65
    %68 = vset.pattern.permute.xlu0 3
    %69 = vperm.xlu0 %68, %v12
    %v70 = vpop.permute.xlu0 %69
    %72 = vset.pattern.permute.xlu0 3
    %73 = vperm.xlu0 %72, %v13
    %v74 = vpop.permute.xlu0 %73
    %76 = vset.pattern.permute.xlu0 3
    %77 = vperm.xlu0 %76, %v14
    %v78 = vpop.permute.xlu0 %77
    %80 = vset.pattern.permute.xlu0 3
    %81 = vperm.xlu0 %80, %v15
    %v82 = vpop.permute.xlu0 %81
    %84 = vset.pattern.permute.xlu0 4
    %85 = vperm.xlu0 %84, %v12
    %v86 = vpop.permute.xlu0 %85
    %88 = vset.pattern.permute.xlu0 4
    %89 = vperm.xlu0 %88, %v13
    %v90 = vpop.permute.xlu0 %89
    %92 = vset.pattern.permute.xlu0 4
    %93 = vperm.xlu0 %92, %v14
    %v94 = vpop.permute.xlu0 %93
    %96 = vset.pattern.permute.xlu0 4
    %97 = vperm.xlu0 %96, %v15
    %v98 = vpop.permute.xlu0 %97
    %100 = vset.pattern.permute.xlu0 5
    %101 = vperm.xlu0 %100, %v12
    %v102 = vpop.permute.xlu0 %101
    %104 = vset.pattern.permute.xlu0 5
    %105 = vperm.xlu0 %104, %v13
    %v106 = vpop.permute.xlu0 %105
    %108 = vset.pattern.permute.xlu0 5
    %109 = vperm.xlu0 %108, %v14
    %v110 = vpop.permute.xlu0 %109
    %112 = vset.pattern.permute.xlu0 5
    %113 = vperm.xlu0 %112, %v15
    %v114 = vpop.permute.xlu0 %113
    %116 = vset.pattern.permute.xlu0 12
    %117 = vperm.xlu0 %116, %v12
    %v118 = vpop.permute.xlu0 %117
    %120 = vset.pattern.permute.xlu0 12
    %121 = vperm.xlu0 %120, %v13
    %v122 = vpop.permute.xlu0 %121
    %124 = vset.pattern.permute.xlu0 12
    %125 = vperm.xlu0 %124, %v14
    %v126 = vpop.permute.xlu0 %125
    %128 = vset.pattern.permute.xlu0 12
    %129 = vperm.xlu0 %128, %v15
    %v130 = vpop.permute.xlu0 %129
    %132 = vset.pattern.permute.xlu0 13
    %133 = vperm.xlu0 %132, %v12
    %v134 = vpop.permute.xlu0 %133
    %136 = vset.pattern.permute.xlu0 14
    %137 = vperm.xlu0 %136, %v12
    %v138 = vpop.permute.xlu0 %137
    %140 = vset.pattern.permute.xlu0 15
    %141 = vperm.xlu0 %140, %v12
    %v142 = vpop.permute.xlu0 %141
    %v144 = vlaneseq
    %v145 = vshrl.u32 %v144, 7
    %vm146 = vcmp.eq.s32.totalorder %v145, 0
    %v147 = vsel %vm146, 1.0, 0.0
    %vm148 = vcmp.eq.s32.totalorder %v145, 1
    %v149 = vsel %vm148, 1.0, 0.0
    %vm150 = vcmp.eq.s32.totalorder %v145, 2
    %v151 = vsel %vm150, 1.0, 0.0
    %vm152 = vcmp.eq.s32.totalorder %v145, 3
    %v153 = vsel %vm152, 1.0, 0.0
    %vm154 = vcmp.eq.s32.totalorder %v145, 4
    %v155 = vsel %vm154, 1.0, 0.0
    %vm156 = vcmp.eq.s32.totalorder %v145, 5
    %v157 = vsel %vm156, 1.0, 0.0
    %vm158 = vcmp.eq.s32.totalorder %v145, 6
    %v159 = vsel %vm158, 1.0, 0.0
    %v160 = vld [vmem:[%s0] sm:$0xff]
    %v161 = vlaneseq
    %v162 = vshrl.u32 %v161, 7
    %v163 = vsub.s32 0, %v162
    %v164 = vrot.slane %v160, %v163
    %v165 = vmul.f32 %v164, %v19
    %v166 = vmul.f32 %v164, %v24
    %v167 = vmul.f32 %v164, %v29
    %v168 = vmul.f32 %v164, %v34
    %v169 = vadd.f32 %v118, %v165
    %v170 = vadd.f32 %v122, %v166
    %v171 = vadd.f32 %v126, %v167
    %v172 = vadd.f32 %v130, %v168
    %v173 = vlaneseq
    %v174 = vshrl.u32 %v173, 7
    %v175 = vsub.s32 1, %v174
    %v176 = vrot.slane %v160, %v175
    %v177 = vmul.f32 %v176, %v38
    %v178 = vmul.f32 %v176, %v42
    %v179 = vmul.f32 %v176, %v46
    %v180 = vmul.f32 %v176, %v50
    %v181 = vadd.f32 %v169, %v177
    %v182 = vadd.f32 %v170, %v178
    %v183 = vadd.f32 %v171, %v179
    %v184 = vadd.f32 %v172, %v180
    %v185 = vlaneseq
    %v186 = vshrl.u32 %v185, 7
    %v187 = vsub.s32 2, %v186
    %v188 = vrot.slane %v160, %v187
    %v189 = vmul.f32 %v188, %v54
    %v190 = vmul.f32 %v188, %v58
    %v191 = vmul.f32 %v188, %v62
    %v192 = vmul.f32 %v188, %v66
    %v193 = vadd.f32 %v181, %v189
    %v194 = vadd.f32 %v182, %v190
    %v195 = vadd.f32 %v183, %v191
    %v196 = vadd.f32 %v184, %v192
    %v197 = vlaneseq
    %v198 = vshrl.u32 %v197, 7
    %v199 = vsub.s32 3, %v198
    %v200 = vrot.slane %v160, %v199
    %v201 = vmul.f32 %v200, %v70
    %v202 = vmul.f32 %v200, %v74
    %v203 = vmul.f32 %v200, %v78
    %v204 = vmul.f32 %v200, %v82
    %v205 = vadd.f32 %v193, %v201
    %v206 = vadd.f32 %v194, %v202
    %v207 = vadd.f32 %v195, %v203
    %v208 = vadd.f32 %v196, %v204
    %v209 = vlaneseq
    %v210 = vshrl.u32 %v209, 7
    %v211 = vsub.s32 4, %v210
    %v212 = vrot.slane %v160, %v211
    %v213 = vmul.f32 %v212, %v86
    %v214 = vmul.f32 %v212, %v90
    %v215 = vmul.f32 %v212, %v94
    %v216 = vmul.f32 %v212, %v98
    %v217 = vadd.f32 %v205, %v213
    %v218 = vadd.f32 %v206, %v214
    %v219 = vadd.f32 %v207, %v215
    %v220 = vadd.f32 %v208, %v216
    %v221 = vlaneseq
    %v222 = vshrl.u32 %v221, 7
    %v223 = vsub.s32 5, %v222
    %v224 = vrot.slane %v160, %v223
    %v225 = vmul.f32 %v224, %v102
    %v226 = vmul.f32 %v224, %v106
    %v227 = vmul.f32 %v224, %v110
    %v228 = vmul.f32 %v224, %v114
    %v229 = vadd.f32 %v217, %v225
    %v230 = vadd.f32 %v218, %v226
    %v231 = vadd.f32 %v219, %v227
    %v232 = vadd.f32 %v220, %v228
    %v233 = vmax.f32 %v229, 0.0
    %v234 = vmax.f32 %v230, 0.0
    %v235 = vmax.f32 %v231, 0.0
    %v236 = vmax.f32 %v232, 0.0
    %237 = vset.pattern.permute.xlu0 6
    %238 = vperm.xlu0 %237, %v12
    %v239 = vpop.permute.xlu0 %238
    %241 = vset.pattern.permute.xlu0 6
    %242 = vperm.xlu0 %241, %v13
    %v243 = vpop.permute.xlu0 %242
    %245 = vset.pattern.permute.xlu0 6
    %246 = vperm.xlu0 %245, %v14
    %v247 = vpop.permute.xlu0 %246
    %249 = vset.pattern.permute.xlu0 6
    %250 = vperm.xlu0 %249, %v15
    %v251 = vpop.permute.xlu0 %250
    %v253 = vmul.f32 %v233, %v239
    %v254 = vmul.f32 %v234, %v243
    %v255 = vmul.f32 %v235, %v247
    %v256 = vmul.f32 %v236, %v251
    %v257 = vadd.f32 %v253, %v254
    %v258 = vadd.f32 %v257, %v255
    %v259 = vadd.f32 %v258, %v256
    %v260 = vrot.slane %v259, 4
    %v261 = vadd.f32 %v259, %v260
    %v262 = vrot.slane %v261, 2
    %v263 = vadd.f32 %v261, %v262
    %v264 = vrot.slane %v263, 1
    %v265 = vadd.f32 %v263, %v264
    %v266 = vmul.f32 %v265, %v147
    %v267 = vadd.f32 %v134, %v266
    %268 = vset.pattern.permute.xlu0 7
    %269 = vperm.xlu0 %268, %v12
    %v270 = vpop.permute.xlu0 %269
    %272 = vset.pattern.permute.xlu0 7
    %273 = vperm.xlu0 %272, %v13
    %v274 = vpop.permute.xlu0 %273
    %276 = vset.pattern.permute.xlu0 7
    %277 = vperm.xlu0 %276, %v14
    %v278 = vpop.permute.xlu0 %277
    %280 = vset.pattern.permute.xlu0 7
    %281 = vperm.xlu0 %280, %v15
    %v282 = vpop.permute.xlu0 %281
    %v284 = vmul.f32 %v233, %v270
    %v285 = vmul.f32 %v234, %v274
    %v286 = vmul.f32 %v235, %v278
    %v287 = vmul.f32 %v236, %v282
    %v288 = vadd.f32 %v284, %v285
    %v289 = vadd.f32 %v288, %v286
    %v290 = vadd.f32 %v289, %v287
    %v291 = vrot.slane %v290, 4
    %v292 = vadd.f32 %v290, %v291
    %v293 = vrot.slane %v292, 2
    %v294 = vadd.f32 %v292, %v293
    %v295 = vrot.slane %v294, 1
    %v296 = vadd.f32 %v294, %v295
    %v297 = vmul.f32 %v296, %v149
    %v298 = vadd.f32 %v267, %v297
    %299 = vset.pattern.permute.xlu0 8
    %300 = vperm.xlu0 %299, %v12
    %v301 = vpop.permute.xlu0 %300
    %303 = vset.pattern.permute.xlu0 8
    %304 = vperm.xlu0 %303, %v13
    %v305 = vpop.permute.xlu0 %304
    %307 = vset.pattern.permute.xlu0 8
    %308 = vperm.xlu0 %307, %v14
    %v309 = vpop.permute.xlu0 %308
    %311 = vset.pattern.permute.xlu0 8
    %312 = vperm.xlu0 %311, %v15
    %v313 = vpop.permute.xlu0 %312
    %v315 = vmul.f32 %v233, %v301
    %v316 = vmul.f32 %v234, %v305
    %v317 = vmul.f32 %v235, %v309
    %v318 = vmul.f32 %v236, %v313
    %v319 = vadd.f32 %v315, %v316
    %v320 = vadd.f32 %v319, %v317
    %v321 = vadd.f32 %v320, %v318
    %v322 = vrot.slane %v321, 4
    %v323 = vadd.f32 %v321, %v322
    %v324 = vrot.slane %v323, 2
    %v325 = vadd.f32 %v323, %v324
    %v326 = vrot.slane %v325, 1
    %v327 = vadd.f32 %v325, %v326
    %v328 = vmul.f32 %v327, %v151
    %v329 = vadd.f32 %v298, %v328
    %330 = vset.pattern.permute.xlu0 9
    %331 = vperm.xlu0 %330, %v12
    %v332 = vpop.permute.xlu0 %331
    %334 = vset.pattern.permute.xlu0 9
    %335 = vperm.xlu0 %334, %v13
    %v336 = vpop.permute.xlu0 %335
    %338 = vset.pattern.permute.xlu0 9
    %339 = vperm.xlu0 %338, %v14
    %v340 = vpop.permute.xlu0 %339
    %342 = vset.pattern.permute.xlu0 9
    %343 = vperm.xlu0 %342, %v15
    %v344 = vpop.permute.xlu0 %343
    %v346 = vmul.f32 %v233, %v332
    %v347 = vmul.f32 %v234, %v336
    %v348 = vmul.f32 %v235, %v340
    %v349 = vmul.f32 %v236, %v344
    %v350 = vadd.f32 %v346, %v347
    %v351 = vadd.f32 %v350, %v348
    %v352 = vadd.f32 %v351, %v349
    %v353 = vrot.slane %v352, 4
    %v354 = vadd.f32 %v352, %v353
    %v355 = vrot.slane %v354, 2
    %v356 = vadd.f32 %v354, %v355
    %v357 = vrot.slane %v356, 1
    %v358 = vadd.f32 %v356, %v357
    %v359 = vmul.f32 %v358, %v153
    %v360 = vadd.f32 %v329, %v359
    %361 = vset.pattern.permute.xlu0 10
    %362 = vperm.xlu0 %361, %v12
    %v363 = vpop.permute.xlu0 %362
    %365 = vset.pattern.permute.xlu0 10
    %366 = vperm.xlu0 %365, %v13
    %v367 = vpop.permute.xlu0 %366
    %369 = vset.pattern.permute.xlu0 10
    %370 = vperm.xlu0 %369, %v14
    %v371 = vpop.permute.xlu0 %370
    %373 = vset.pattern.permute.xlu0 10
    %374 = vperm.xlu0 %373, %v15
    %v375 = vpop.permute.xlu0 %374
    %v377 = vmul.f32 %v233, %v363
    %v378 = vmul.f32 %v234, %v367
    %v379 = vmul.f32 %v235, %v371
    %v380 = vmul.f32 %v236, %v375
    %v381 = vadd.f32 %v377, %v378
    %v382 = vadd.f32 %v381, %v379
    %v383 = vadd.f32 %v382, %v380
    %v384 = vrot.slane %v383, 4
    %v385 = vadd.f32 %v383, %v384
    %v386 = vrot.slane %v385, 2
    %v387 = vadd.f32 %v385, %v386
    %v388 = vrot.slane %v387, 1
    %v389 = vadd.f32 %v387, %v388
    %v390 = vmul.f32 %v389, %v155
    %v391 = vadd.f32 %v360, %v390
    %392 = vset.pattern.permute.xlu0 11
    %393 = vperm.xlu0 %392, %v12
    %v394 = vpop.permute.xlu0 %393
    %396 = vset.pattern.permute.xlu0 11
    %397 = vperm.xlu0 %396, %v13
    %v398 = vpop.permute.xlu0 %397
    %400 = vset.pattern.permute.xlu0 11
    %401 = vperm.xlu0 %400, %v14
    %v402 = vpop.permute.xlu0 %401
    %404 = vset.pattern.permute.xlu0 11
    %405 = vperm.xlu0 %404, %v15
    %v406 = vpop.permute.xlu0 %405
    %v408 = vmul.f32 %v233, %v394
    %v409 = vmul.f32 %v234, %v398
    %v410 = vmul.f32 %v235, %v402
    %v411 = vmul.f32 %v236, %v406
    %v412 = vadd.f32 %v408, %v409
    %v413 = vadd.f32 %v412, %v410
    %v414 = vadd.f32 %v413, %v411
    %v415 = vrot.slane %v414, 4
    %v416 = vadd.f32 %v414, %v415
    %v417 = vrot.slane %v416, 2
    %v418 = vadd.f32 %v416, %v417
    %v419 = vrot.slane %v418, 1
    %v420 = vadd.f32 %v418, %v419
    %v421 = vmul.f32 %v420, %v157
    %v422 = vadd.f32 %v391, %v421
    %v423 = vmul.f32 %v422, 0.1
    %v424 = vadd.f32 %v160, %v423
    %v425 = vlaneseq
    %v426 = vshrl.u32 %v425, 7
    %v427 = vsub.s32 0, %v426
    %v428 = vrot.slane %v424, %v427
    %v429 = vmul.f32 %v428, %v19
    %v430 = vmul.f32 %v428, %v24
    %v431 = vmul.f32 %v428, %v29
    %v432 = vmul.f32 %v428, %v34
    %v433 = vadd.f32 %v118, %v429
    %v434 = vadd.f32 %v122, %v430
    %v435 = vadd.f32 %v126, %v431
    %v436 = vadd.f32 %v130, %v432
    %v437 = vlaneseq
    %v438 = vshrl.u32 %v437, 7
    %v439 = vsub.s32 1, %v438
    %v440 = vrot.slane %v424, %v439
    %v441 = vmul.f32 %v440, %v38
    %v442 = vmul.f32 %v440, %v42
    %v443 = vmul.f32 %v440, %v46
    %v444 = vmul.f32 %v440, %v50
    %v445 = vadd.f32 %v433, %v441
    %v446 = vadd.f32 %v434, %v442
    %v447 = vadd.f32 %v435, %v443
    %v448 = vadd.f32 %v436, %v444
    %v449 = vlaneseq
    %v450 = vshrl.u32 %v449, 7
    %v451 = vsub.s32 2, %v450
    %v452 = vrot.slane %v424, %v451
    %v453 = vmul.f32 %v452, %v54
    %v454 = vmul.f32 %v452, %v58
    %v455 = vmul.f32 %v452, %v62
    %v456 = vmul.f32 %v452, %v66
    %v457 = vadd.f32 %v445, %v453
    %v458 = vadd.f32 %v446, %v454
    %v459 = vadd.f32 %v447, %v455
    %v460 = vadd.f32 %v448, %v456
    %v461 = vlaneseq
    %v462 = vshrl.u32 %v461, 7
    %v463 = vsub.s32 3, %v462
    %v464 = vrot.slane %v424, %v463
    %v465 = vmul.f32 %v464, %v70
    %v466 = vmul.f32 %v464, %v74
    %v467 = vmul.f32 %v464, %v78
    %v468 = vmul.f32 %v464, %v82
    %v469 = vadd.f32 %v457, %v465
    %v470 = vadd.f32 %v458, %v466
    %v471 = vadd.f32 %v459, %v467
    %v472 = vadd.f32 %v460, %v468
    %v473 = vlaneseq
    %v474 = vshrl.u32 %v473, 7
    %v475 = vsub.s32 4, %v474
    %v476 = vrot.slane %v424, %v475
    %v477 = vmul.f32 %v476, %v86
    %v478 = vmul.f32 %v476, %v90
    %v479 = vmul.f32 %v476, %v94
    %v480 = vmul.f32 %v476, %v98
    %v481 = vadd.f32 %v469, %v477
    %v482 = vadd.f32 %v470, %v478
    %v483 = vadd.f32 %v471, %v479
    %v484 = vadd.f32 %v472, %v480
    %v485 = vlaneseq
    %v486 = vshrl.u32 %v485, 7
    %v487 = vsub.s32 5, %v486
    %v488 = vrot.slane %v424, %v487
    %v489 = vmul.f32 %v488, %v102
    %v490 = vmul.f32 %v488, %v106
    %v491 = vmul.f32 %v488, %v110
    %v492 = vmul.f32 %v488, %v114
    %v493 = vadd.f32 %v481, %v489
    %v494 = vadd.f32 %v482, %v490
    %v495 = vadd.f32 %v483, %v491
    %v496 = vadd.f32 %v484, %v492
    %v497 = vmax.f32 %v493, 0.0
    %v498 = vmax.f32 %v494, 0.0
    %v499 = vmax.f32 %v495, 0.0
    %v500 = vmax.f32 %v496, 0.0
    %v501 = vmul.f32 %v497, %v239
    %v502 = vmul.f32 %v498, %v243
    %v503 = vmul.f32 %v499, %v247
    %v504 = vmul.f32 %v500, %v251
    %v505 = vadd.f32 %v501, %v502
    %v506 = vadd.f32 %v505, %v503
    %v507 = vadd.f32 %v506, %v504
    %v508 = vrot.slane %v507, 4
    %v509 = vadd.f32 %v507, %v508
    %v510 = vrot.slane %v509, 2
    %v511 = vadd.f32 %v509, %v510
    %v512 = vrot.slane %v511, 1
    %v513 = vadd.f32 %v511, %v512
    %v514 = vmul.f32 %v513, %v147
    %v515 = vadd.f32 %v134, %v514
    %v516 = vmul.f32 %v497, %v270
    %v517 = vmul.f32 %v498, %v274
    %v518 = vmul.f32 %v499, %v278
    %v519 = vmul.f32 %v500, %v282
    %v520 = vadd.f32 %v516, %v517
    %v521 = vadd.f32 %v520, %v518
    %v522 = vadd.f32 %v521, %v519
    %v523 = vrot.slane %v522, 4
    %v524 = vadd.f32 %v522, %v523
    %v525 = vrot.slane %v524, 2
    %v526 = vadd.f32 %v524, %v525
    %v527 = vrot.slane %v526, 1
    %v528 = vadd.f32 %v526, %v527
    %v529 = vmul.f32 %v528, %v149
    %v530 = vadd.f32 %v515, %v529
    %v531 = vmul.f32 %v497, %v301
    %v532 = vmul.f32 %v498, %v305
    %v533 = vmul.f32 %v499, %v309
    %v534 = vmul.f32 %v500, %v313
    %v535 = vadd.f32 %v531, %v532
    %v536 = vadd.f32 %v535, %v533
    %v537 = vadd.f32 %v536, %v534
    %v538 = vrot.slane %v537, 4
    %v539 = vadd.f32 %v537, %v538
    %v540 = vrot.slane %v539, 2
    %v541 = vadd.f32 %v539, %v540
    %v542 = vrot.slane %v541, 1
    %v543 = vadd.f32 %v541, %v542
    %v544 = vmul.f32 %v543, %v151
    %v545 = vadd.f32 %v530, %v544
    %v546 = vmul.f32 %v497, %v332
    %v547 = vmul.f32 %v498, %v336
    %v548 = vmul.f32 %v499, %v340
    %v549 = vmul.f32 %v500, %v344
    %v550 = vadd.f32 %v546, %v547
    %v551 = vadd.f32 %v550, %v548
    %v552 = vadd.f32 %v551, %v549
    %v553 = vrot.slane %v552, 4
    %v554 = vadd.f32 %v552, %v553
    %v555 = vrot.slane %v554, 2
    %v556 = vadd.f32 %v554, %v555
    %v557 = vrot.slane %v556, 1
    %v558 = vadd.f32 %v556, %v557
    %v559 = vmul.f32 %v558, %v153
    %v560 = vadd.f32 %v545, %v559
    %v561 = vmul.f32 %v497, %v363
    %v562 = vmul.f32 %v498, %v367
    %v563 = vmul.f32 %v499, %v371
    %v564 = vmul.f32 %v500, %v375
    %v565 = vadd.f32 %v561, %v562
    %v566 = vadd.f32 %v565, %v563
    %v567 = vadd.f32 %v566, %v564
    %v568 = vrot.slane %v567, 4
    %v569 = vadd.f32 %v567, %v568
    %v570 = vrot.slane %v569, 2
    %v571 = vadd.f32 %v569, %v570
    %v572 = vrot.slane %v571, 1
    %v573 = vadd.f32 %v571, %v572
    %v574 = vmul.f32 %v573, %v155
    %v575 = vadd.f32 %v560, %v574
    %v576 = vmul.f32 %v497, %v394
    %v577 = vmul.f32 %v498, %v398
    %v578 = vmul.f32 %v499, %v402
    %v579 = vmul.f32 %v500, %v406
    %v580 = vadd.f32 %v576, %v577
    %v581 = vadd.f32 %v580, %v578
    %v582 = vadd.f32 %v581, %v579
    %v583 = vrot.slane %v582, 4
    %v584 = vadd.f32 %v582, %v583
    %v585 = vrot.slane %v584, 2
    %v586 = vadd.f32 %v584, %v585
    %v587 = vrot.slane %v586, 1
    %v588 = vadd.f32 %v586, %v587
    %v589 = vmul.f32 %v588, %v157
    %v590 = vadd.f32 %v575, %v589
    %v591 = vmul.f32 %v590, 0.1
    %v592 = vadd.f32 %v424, %v591
    %v593 = vlaneseq
    %v594 = vshrl.u32 %v593, 7
    %v595 = vsub.s32 0, %v594
    %v596 = vrot.slane %v592, %v595
    %v597 = vmul.f32 %v596, %v19
    %v598 = vmul.f32 %v596, %v24
    %v599 = vmul.f32 %v596, %v29
    %v600 = vmul.f32 %v596, %v34
    %v601 = vadd.f32 %v118, %v597
    %v602 = vadd.f32 %v122, %v598
    %v603 = vadd.f32 %v126, %v599
    %v604 = vadd.f32 %v130, %v600
    %v605 = vlaneseq
    %v606 = vshrl.u32 %v605, 7
    %v607 = vsub.s32 1, %v606
    %v608 = vrot.slane %v592, %v607
    %v609 = vmul.f32 %v608, %v38
    %v610 = vmul.f32 %v608, %v42
    %v611 = vmul.f32 %v608, %v46
    %v612 = vmul.f32 %v608, %v50
    %v613 = vadd.f32 %v601, %v609
    %v614 = vadd.f32 %v602, %v610
    %v615 = vadd.f32 %v603, %v611
    %v616 = vadd.f32 %v604, %v612
    %v617 = vlaneseq
    %v618 = vshrl.u32 %v617, 7
    %v619 = vsub.s32 2, %v618
    %v620 = vrot.slane %v592, %v619
    %v621 = vmul.f32 %v620, %v54
    %v622 = vmul.f32 %v620, %v58
    %v623 = vmul.f32 %v620, %v62
    %v624 = vmul.f32 %v620, %v66
    %v625 = vadd.f32 %v613, %v621
    %v626 = vadd.f32 %v614, %v622
    %v627 = vadd.f32 %v615, %v623
    %v628 = vadd.f32 %v616, %v624
    %v629 = vlaneseq
    %v630 = vshrl.u32 %v629, 7
    %v631 = vsub.s32 3, %v630
    %v632 = vrot.slane %v592, %v631
    %v633 = vmul.f32 %v632, %v70
    %v634 = vmul.f32 %v632, %v74
    %v635 = vmul.f32 %v632, %v78
    %v636 = vmul.f32 %v632, %v82
    %v637 = vadd.f32 %v625, %v633
    %v638 = vadd.f32 %v626, %v634
    %v639 = vadd.f32 %v627, %v635
    %v640 = vadd.f32 %v628, %v636
    %v641 = vlaneseq
    %v642 = vshrl.u32 %v641, 7
    %v643 = vsub.s32 4, %v642
    %v644 = vrot.slane %v592, %v643
    %v645 = vmul.f32 %v644, %v86
    %v646 = vmul.f32 %v644, %v90
    %v647 = vmul.f32 %v644, %v94
    %v648 = vmul.f32 %v644, %v98
    %v649 = vadd.f32 %v637, %v645
    %v650 = vadd.f32 %v638, %v646
    %v651 = vadd.f32 %v639, %v647
    %v652 = vadd.f32 %v640, %v648
    %v653 = vlaneseq
    %v654 = vshrl.u32 %v653, 7
    %v655 = vsub.s32 5, %v654
    %v656 = vrot.slane %v592, %v655
    %v657 = vmul.f32 %v656, %v102
    %v658 = vmul.f32 %v656, %v106
    %v659 = vmul.f32 %v656, %v110
    %v660 = vmul.f32 %v656, %v114
    %v661 = vadd.f32 %v649, %v657
    %v662 = vadd.f32 %v650, %v658
    %v663 = vadd.f32 %v651, %v659
    %v664 = vadd.f32 %v652, %v660
    %v665 = vmax.f32 %v661, 0.0
    %v666 = vmax.f32 %v662, 0.0
    %v667 = vmax.f32 %v663, 0.0
    %v668 = vmax.f32 %v664, 0.0
    %v669 = vmul.f32 %v665, %v239
    %v670 = vmul.f32 %v666, %v243
    %v671 = vmul.f32 %v667, %v247
    %v672 = vmul.f32 %v668, %v251
    %v673 = vadd.f32 %v669, %v670
    %v674 = vadd.f32 %v673, %v671
    %v675 = vadd.f32 %v674, %v672
    %v676 = vrot.slane %v675, 4
    %v677 = vadd.f32 %v675, %v676
    %v678 = vrot.slane %v677, 2
    %v679 = vadd.f32 %v677, %v678
    %v680 = vrot.slane %v679, 1
    %v681 = vadd.f32 %v679, %v680
    %v682 = vmul.f32 %v681, %v147
    %v683 = vadd.f32 %v134, %v682
    %v684 = vmul.f32 %v665, %v270
    %v685 = vmul.f32 %v666, %v274
    %v686 = vmul.f32 %v667, %v278
    %v687 = vmul.f32 %v668, %v282
    %v688 = vadd.f32 %v684, %v685
    %v689 = vadd.f32 %v688, %v686
    %v690 = vadd.f32 %v689, %v687
    %v691 = vrot.slane %v690, 4
    %v692 = vadd.f32 %v690, %v691
    %v693 = vrot.slane %v692, 2
    %v694 = vadd.f32 %v692, %v693
    %v695 = vrot.slane %v694, 1
    %v696 = vadd.f32 %v694, %v695
    %v697 = vmul.f32 %v696, %v149
    %v698 = vadd.f32 %v683, %v697
    %v699 = vmul.f32 %v665, %v301
    %v700 = vmul.f32 %v666, %v305
    %v701 = vmul.f32 %v667, %v309
    %v702 = vmul.f32 %v668, %v313
    %v703 = vadd.f32 %v699, %v700
    %v704 = vadd.f32 %v703, %v701
    %v705 = vadd.f32 %v704, %v702
    %v706 = vrot.slane %v705, 4
    %v707 = vadd.f32 %v705, %v706
    %v708 = vrot.slane %v707, 2
    %v709 = vadd.f32 %v707, %v708
    %v710 = vrot.slane %v709, 1
    %v711 = vadd.f32 %v709, %v710
    %v712 = vmul.f32 %v711, %v151
    %v713 = vadd.f32 %v698, %v712
    %v714 = vmul.f32 %v665, %v332
    %v715 = vmul.f32 %v666, %v336
    %v716 = vmul.f32 %v667, %v340
    %v717 = vmul.f32 %v668, %v344
    %v718 = vadd.f32 %v714, %v715
    %v719 = vadd.f32 %v718, %v716
    %v720 = vadd.f32 %v719, %v717
    %v721 = vrot.slane %v720, 4
    %v722 = vadd.f32 %v720, %v721
    %v723 = vrot.slane %v722, 2
    %v724 = vadd.f32 %v722, %v723
    %v725 = vrot.slane %v724, 1
    %v726 = vadd.f32 %v724, %v725
    %v727 = vmul.f32 %v726, %v153
    %v728 = vadd.f32 %v713, %v727
    %v729 = vmul.f32 %v665, %v363
    %v730 = vmul.f32 %v666, %v367
    %v731 = vmul.f32 %v667, %v371
    %v732 = vmul.f32 %v668, %v375
    %v733 = vadd.f32 %v729, %v730
    %v734 = vadd.f32 %v733, %v731
    %v735 = vadd.f32 %v734, %v732
    %v736 = vrot.slane %v735, 4
    %v737 = vadd.f32 %v735, %v736
    %v738 = vrot.slane %v737, 2
    %v739 = vadd.f32 %v737, %v738
    %v740 = vrot.slane %v739, 1
    %v741 = vadd.f32 %v739, %v740
    %v742 = vmul.f32 %v741, %v155
    %v743 = vadd.f32 %v728, %v742
    %v744 = vmul.f32 %v665, %v394
    %v745 = vmul.f32 %v666, %v398
    %v746 = vmul.f32 %v667, %v402
    %v747 = vmul.f32 %v668, %v406
    %v748 = vadd.f32 %v744, %v745
    %v749 = vadd.f32 %v748, %v746
    %v750 = vadd.f32 %v749, %v747
    %v751 = vrot.slane %v750, 4
    %v752 = vadd.f32 %v750, %v751
    %v753 = vrot.slane %v752, 2
    %v754 = vadd.f32 %v752, %v753
    %v755 = vrot.slane %v754, 1
    %v756 = vadd.f32 %v754, %v755
    %v757 = vmul.f32 %v756, %v157
    %v758 = vadd.f32 %v743, %v757
    %v759 = vmul.f32 %v758, 0.1
    %v760 = vadd.f32 %v592, %v759
    %v761 = vlaneseq
    %v762 = vshrl.u32 %v761, 7
    %v763 = vsub.s32 0, %v762
    %v764 = vrot.slane %v760, %v763
    %v765 = vmul.f32 %v764, %v19
    %v766 = vmul.f32 %v764, %v24
    %v767 = vmul.f32 %v764, %v29
    %v768 = vmul.f32 %v764, %v34
    %v769 = vadd.f32 %v118, %v765
    %v770 = vadd.f32 %v122, %v766
    %v771 = vadd.f32 %v126, %v767
    %v772 = vadd.f32 %v130, %v768
    %v773 = vlaneseq
    %v774 = vshrl.u32 %v773, 7
    %v775 = vsub.s32 1, %v774
    %v776 = vrot.slane %v760, %v775
    %v777 = vmul.f32 %v776, %v38
    %v778 = vmul.f32 %v776, %v42
    %v779 = vmul.f32 %v776, %v46
    %v780 = vmul.f32 %v776, %v50
    %v781 = vadd.f32 %v769, %v777
    %v782 = vadd.f32 %v770, %v778
    %v783 = vadd.f32 %v771, %v779
    %v784 = vadd.f32 %v772, %v780
    %v785 = vlaneseq
    %v786 = vshrl.u32 %v785, 7
    %v787 = vsub.s32 2, %v786
    %v788 = vrot.slane %v760, %v787
    %v789 = vmul.f32 %v788, %v54
    %v790 = vmul.f32 %v788, %v58
    %v791 = vmul.f32 %v788, %v62
    %v792 = vmul.f32 %v788, %v66
    %v793 = vadd.f32 %v781, %v789
    %v794 = vadd.f32 %v782, %v790
    %v795 = vadd.f32 %v783, %v791
    %v796 = vadd.f32 %v784, %v792
    %v797 = vlaneseq
    %v798 = vshrl.u32 %v797, 7
    %v799 = vsub.s32 3, %v798
    %v800 = vrot.slane %v760, %v799
    %v801 = vmul.f32 %v800, %v70
    %v802 = vmul.f32 %v800, %v74
    %v803 = vmul.f32 %v800, %v78
    %v804 = vmul.f32 %v800, %v82
    %v805 = vadd.f32 %v793, %v801
    %v806 = vadd.f32 %v794, %v802
    %v807 = vadd.f32 %v795, %v803
    %v808 = vadd.f32 %v796, %v804
    %v809 = vlaneseq
    %v810 = vshrl.u32 %v809, 7
    %v811 = vsub.s32 4, %v810
    %v812 = vrot.slane %v760, %v811
    %v813 = vmul.f32 %v812, %v86
    %v814 = vmul.f32 %v812, %v90
    %v815 = vmul.f32 %v812, %v94
    %v816 = vmul.f32 %v812, %v98
    %v817 = vadd.f32 %v805, %v813
    %v818 = vadd.f32 %v806, %v814
    %v819 = vadd.f32 %v807, %v815
    %v820 = vadd.f32 %v808, %v816
    %v821 = vlaneseq
    %v822 = vshrl.u32 %v821, 7
    %v823 = vsub.s32 5, %v822
    %v824 = vrot.slane %v760, %v823
    %v825 = vmul.f32 %v824, %v102
    %v826 = vmul.f32 %v824, %v106
    %v827 = vmul.f32 %v824, %v110
    %v828 = vmul.f32 %v824, %v114
    %v829 = vadd.f32 %v817, %v825
    %v830 = vadd.f32 %v818, %v826
    %v831 = vadd.f32 %v819, %v827
    %v832 = vadd.f32 %v820, %v828
    %v833 = vmax.f32 %v829, 0.0
    %v834 = vmax.f32 %v830, 0.0
    %v835 = vmax.f32 %v831, 0.0
    %v836 = vmax.f32 %v832, 0.0
    %v837 = vmul.f32 %v833, %v239
    %v838 = vmul.f32 %v834, %v243
    %v839 = vmul.f32 %v835, %v247
    %v840 = vmul.f32 %v836, %v251
    %v841 = vadd.f32 %v837, %v838
    %v842 = vadd.f32 %v841, %v839
    %v843 = vadd.f32 %v842, %v840
    %v844 = vrot.slane %v843, 4
    %v845 = vadd.f32 %v843, %v844
    %v846 = vrot.slane %v845, 2
    %v847 = vadd.f32 %v845, %v846
    %v848 = vrot.slane %v847, 1
    %v849 = vadd.f32 %v847, %v848
    %v850 = vmul.f32 %v849, %v147
    %v851 = vadd.f32 %v134, %v850
    %v852 = vmul.f32 %v833, %v270
    %v853 = vmul.f32 %v834, %v274
    %v854 = vmul.f32 %v835, %v278
    %v855 = vmul.f32 %v836, %v282
    %v856 = vadd.f32 %v852, %v853
    %v857 = vadd.f32 %v856, %v854
    %v858 = vadd.f32 %v857, %v855
    %v859 = vrot.slane %v858, 4
    %v860 = vadd.f32 %v858, %v859
    %v861 = vrot.slane %v860, 2
    %v862 = vadd.f32 %v860, %v861
    %v863 = vrot.slane %v862, 1
    %v864 = vadd.f32 %v862, %v863
    %v865 = vmul.f32 %v864, %v149
    %v866 = vadd.f32 %v851, %v865
    %v867 = vmul.f32 %v833, %v301
    %v868 = vmul.f32 %v834, %v305
    %v869 = vmul.f32 %v835, %v309
    %v870 = vmul.f32 %v836, %v313
    %v871 = vadd.f32 %v867, %v868
    %v872 = vadd.f32 %v871, %v869
    %v873 = vadd.f32 %v872, %v870
    %v874 = vrot.slane %v873, 4
    %v875 = vadd.f32 %v873, %v874
    %v876 = vrot.slane %v875, 2
    %v877 = vadd.f32 %v875, %v876
    %v878 = vrot.slane %v877, 1
    %v879 = vadd.f32 %v877, %v878
    %v880 = vmul.f32 %v879, %v151
    %v881 = vadd.f32 %v866, %v880
    %v882 = vmul.f32 %v833, %v332
    %v883 = vmul.f32 %v834, %v336
    %v884 = vmul.f32 %v835, %v340
    %v885 = vmul.f32 %v836, %v344
    %v886 = vadd.f32 %v882, %v883
    %v887 = vadd.f32 %v886, %v884
    %v888 = vadd.f32 %v887, %v885
    %v889 = vrot.slane %v888, 4
    %v890 = vadd.f32 %v888, %v889
    %v891 = vrot.slane %v890, 2
    %v892 = vadd.f32 %v890, %v891
    %v893 = vrot.slane %v892, 1
    %v894 = vadd.f32 %v892, %v893
    %v895 = vmul.f32 %v894, %v153
    %v896 = vadd.f32 %v881, %v895
    %v897 = vmul.f32 %v833, %v363
    %v898 = vmul.f32 %v834, %v367
    %v899 = vmul.f32 %v835, %v371
    %v900 = vmul.f32 %v836, %v375
    %v901 = vadd.f32 %v897, %v898
    %v902 = vadd.f32 %v901, %v899
    %v903 = vadd.f32 %v902, %v900
    %v904 = vrot.slane %v903, 4
    %v905 = vadd.f32 %v903, %v904
    %v906 = vrot.slane %v905, 2
    %v907 = vadd.f32 %v905, %v906
    %v908 = vrot.slane %v907, 1
    %v909 = vadd.f32 %v907, %v908
    %v910 = vmul.f32 %v909, %v155
    %v911 = vadd.f32 %v896, %v910
    %v912 = vmul.f32 %v833, %v394
    %v913 = vmul.f32 %v834, %v398
    %v914 = vmul.f32 %v835, %v402
    %v915 = vmul.f32 %v836, %v406
    %v916 = vadd.f32 %v912, %v913
    %v917 = vadd.f32 %v916, %v914
    %v918 = vadd.f32 %v917, %v915
    %v919 = vrot.slane %v918, 4
    %v920 = vadd.f32 %v918, %v919
    %v921 = vrot.slane %v920, 2
    %v922 = vadd.f32 %v920, %v921
    %v923 = vrot.slane %v922, 1
    %v924 = vadd.f32 %v922, %v923
    %v925 = vmul.f32 %v924, %v157
    %v926 = vadd.f32 %v911, %v925
    %v927 = vmul.f32 %v926, 0.1
    %v928 = vadd.f32 %v760, %v927
    %v929 = vlaneseq
    %v930 = vshrl.u32 %v929, 7
    %v931 = vsub.s32 0, %v930
    %v932 = vrot.slane %v928, %v931
    %v933 = vmul.f32 %v932, %v19
    %v934 = vmul.f32 %v932, %v24
    %v935 = vmul.f32 %v932, %v29
    %v936 = vmul.f32 %v932, %v34
    %v937 = vadd.f32 %v118, %v933
    %v938 = vadd.f32 %v122, %v934
    %v939 = vadd.f32 %v126, %v935
    %v940 = vadd.f32 %v130, %v936
    %v941 = vlaneseq
    %v942 = vshrl.u32 %v941, 7
    %v943 = vsub.s32 1, %v942
    %v944 = vrot.slane %v928, %v943
    %v945 = vmul.f32 %v944, %v38
    %v946 = vmul.f32 %v944, %v42
    %v947 = vmul.f32 %v944, %v46
    %v948 = vmul.f32 %v944, %v50
    %v949 = vadd.f32 %v937, %v945
    %v950 = vadd.f32 %v938, %v946
    %v951 = vadd.f32 %v939, %v947
    %v952 = vadd.f32 %v940, %v948
    %v953 = vlaneseq
    %v954 = vshrl.u32 %v953, 7
    %v955 = vsub.s32 2, %v954
    %v956 = vrot.slane %v928, %v955
    %v957 = vmul.f32 %v956, %v54
    %v958 = vmul.f32 %v956, %v58
    %v959 = vmul.f32 %v956, %v62
    %v960 = vmul.f32 %v956, %v66
    %v961 = vadd.f32 %v949, %v957
    %v962 = vadd.f32 %v950, %v958
    %v963 = vadd.f32 %v951, %v959
    %v964 = vadd.f32 %v952, %v960
    %v965 = vlaneseq
    %v966 = vshrl.u32 %v965, 7
    %v967 = vsub.s32 3, %v966
    %v968 = vrot.slane %v928, %v967
    %v969 = vmul.f32 %v968, %v70
    %v970 = vmul.f32 %v968, %v74
    %v971 = vmul.f32 %v968, %v78
    %v972 = vmul.f32 %v968, %v82
    %v973 = vadd.f32 %v961, %v969
    %v974 = vadd.f32 %v962, %v970
    %v975 = vadd.f32 %v963, %v971
    %v976 = vadd.f32 %v964, %v972
    %v977 = vlaneseq
    %v978 = vshrl.u32 %v977, 7
    %v979 = vsub.s32 4, %v978
    %v980 = vrot.slane %v928, %v979
    %v981 = vmul.f32 %v980, %v86
    %v982 = vmul.f32 %v980, %v90
    %v983 = vmul.f32 %v980, %v94
    %v984 = vmul.f32 %v980, %v98
    %v985 = vadd.f32 %v973, %v981
    %v986 = vadd.f32 %v974, %v982
    %v987 = vadd.f32 %v975, %v983
    %v988 = vadd.f32 %v976, %v984
    %v989 = vlaneseq
    %v990 = vshrl.u32 %v989, 7
    %v991 = vsub.s32 5, %v990
    %v992 = vrot.slane %v928, %v991
    %v993 = vmul.f32 %v992, %v102
    %v994 = vmul.f32 %v992, %v106
    %v995 = vmul.f32 %v992, %v110
    %v996 = vmul.f32 %v992, %v114
    %v997 = vadd.f32 %v985, %v993
    %v998 = vadd.f32 %v986, %v994
    %v999 = vadd.f32 %v987, %v995
    %v1000 = vadd.f32 %v988, %v996
    %v1001 = vmax.f32 %v997, 0.0
    %v1002 = vmax.f32 %v998, 0.0
    %v1003 = vmax.f32 %v999, 0.0
    %v1004 = vmax.f32 %v1000, 0.0
    %v1005 = vmul.f32 %v1001, %v239
    %v1006 = vmul.f32 %v1002, %v243
    %v1007 = vmul.f32 %v1003, %v247
    %v1008 = vmul.f32 %v1004, %v251
    %v1009 = vadd.f32 %v1005, %v1006
    %v1010 = vadd.f32 %v1009, %v1007
    %v1011 = vadd.f32 %v1010, %v1008
    %v1012 = vrot.slane %v1011, 4
    %v1013 = vadd.f32 %v1011, %v1012
    %v1014 = vrot.slane %v1013, 2
    %v1015 = vadd.f32 %v1013, %v1014
    %v1016 = vrot.slane %v1015, 1
    %v1017 = vadd.f32 %v1015, %v1016
    %v1018 = vmul.f32 %v1017, %v147
    %v1019 = vadd.f32 %v134, %v1018
    %v1020 = vmul.f32 %v1001, %v270
    %v1021 = vmul.f32 %v1002, %v274
    %v1022 = vmul.f32 %v1003, %v278
    %v1023 = vmul.f32 %v1004, %v282
    %v1024 = vadd.f32 %v1020, %v1021
    %v1025 = vadd.f32 %v1024, %v1022
    %v1026 = vadd.f32 %v1025, %v1023
    %v1027 = vrot.slane %v1026, 4
    %v1028 = vadd.f32 %v1026, %v1027
    %v1029 = vrot.slane %v1028, 2
    %v1030 = vadd.f32 %v1028, %v1029
    %v1031 = vrot.slane %v1030, 1
    %v1032 = vadd.f32 %v1030, %v1031
    %v1033 = vmul.f32 %v1032, %v149
    %v1034 = vadd.f32 %v1019, %v1033
    %v1035 = vmul.f32 %v1001, %v301
    %v1036 = vmul.f32 %v1002, %v305
    %v1037 = vmul.f32 %v1003, %v309
    %v1038 = vmul.f32 %v1004, %v313
    %v1039 = vadd.f32 %v1035, %v1036
    %v1040 = vadd.f32 %v1039, %v1037
    %v1041 = vadd.f32 %v1040, %v1038
    %v1042 = vrot.slane %v1041, 4
    %v1043 = vadd.f32 %v1041, %v1042
    %v1044 = vrot.slane %v1043, 2
    %v1045 = vadd.f32 %v1043, %v1044
    %v1046 = vrot.slane %v1045, 1
    %v1047 = vadd.f32 %v1045, %v1046
    %v1048 = vmul.f32 %v1047, %v151
    %v1049 = vadd.f32 %v1034, %v1048
    %v1050 = vmul.f32 %v1001, %v332
    %v1051 = vmul.f32 %v1002, %v336
    %v1052 = vmul.f32 %v1003, %v340
    %v1053 = vmul.f32 %v1004, %v344
    %v1054 = vadd.f32 %v1050, %v1051
    %v1055 = vadd.f32 %v1054, %v1052
    %v1056 = vadd.f32 %v1055, %v1053
    %v1057 = vrot.slane %v1056, 4
    %v1058 = vadd.f32 %v1056, %v1057
    %v1059 = vrot.slane %v1058, 2
    %v1060 = vadd.f32 %v1058, %v1059
    %v1061 = vrot.slane %v1060, 1
    %v1062 = vadd.f32 %v1060, %v1061
    %v1063 = vmul.f32 %v1062, %v153
    %v1064 = vadd.f32 %v1049, %v1063
    %v1065 = vmul.f32 %v1001, %v363
    %v1066 = vmul.f32 %v1002, %v367
    %v1067 = vmul.f32 %v1003, %v371
    %v1068 = vmul.f32 %v1004, %v375
    %v1069 = vadd.f32 %v1065, %v1066
    %v1070 = vadd.f32 %v1069, %v1067
    %v1071 = vadd.f32 %v1070, %v1068
    %v1072 = vrot.slane %v1071, 4
    %v1073 = vadd.f32 %v1071, %v1072
    %v1074 = vrot.slane %v1073, 2
    %v1075 = vadd.f32 %v1073, %v1074
    %v1076 = vrot.slane %v1075, 1
    %v1077 = vadd.f32 %v1075, %v1076
    %v1078 = vmul.f32 %v1077, %v155
    %v1079 = vadd.f32 %v1064, %v1078
    %v1080 = vmul.f32 %v1001, %v394
    %v1081 = vmul.f32 %v1002, %v398
    %v1082 = vmul.f32 %v1003, %v402
    %v1083 = vmul.f32 %v1004, %v406
    %v1084 = vadd.f32 %v1080, %v1081
    %v1085 = vadd.f32 %v1084, %v1082
    %v1086 = vadd.f32 %v1085, %v1083
    %v1087 = vrot.slane %v1086, 4
    %v1088 = vadd.f32 %v1086, %v1087
    %v1089 = vrot.slane %v1088, 2
    %v1090 = vadd.f32 %v1088, %v1089
    %v1091 = vrot.slane %v1090, 1
    %v1092 = vadd.f32 %v1090, %v1091
    %v1093 = vmul.f32 %v1092, %v157
    %v1094 = vadd.f32 %v1079, %v1093
    %v1095 = vmul.f32 %v1094, 0.1
    %v1096 = vadd.f32 %v928, %v1095
    %v1097 = vlaneseq
    %v1098 = vshrl.u32 %v1097, 7
    %v1099 = vsub.s32 0, %v1098
    %v1100 = vrot.slane %v1096, %v1099
    %v1101 = vmul.f32 %v1100, %v19
    %v1102 = vmul.f32 %v1100, %v24
    %v1103 = vmul.f32 %v1100, %v29
    %v1104 = vmul.f32 %v1100, %v34
    %v1105 = vadd.f32 %v118, %v1101
    %v1106 = vadd.f32 %v122, %v1102
    %v1107 = vadd.f32 %v126, %v1103
    %v1108 = vadd.f32 %v130, %v1104
    %v1109 = vlaneseq
    %v1110 = vshrl.u32 %v1109, 7
    %v1111 = vsub.s32 1, %v1110
    %v1112 = vrot.slane %v1096, %v1111
    %v1113 = vmul.f32 %v1112, %v38
    %v1114 = vmul.f32 %v1112, %v42
    %v1115 = vmul.f32 %v1112, %v46
    %v1116 = vmul.f32 %v1112, %v50
    %v1117 = vadd.f32 %v1105, %v1113
    %v1118 = vadd.f32 %v1106, %v1114
    %v1119 = vadd.f32 %v1107, %v1115
    %v1120 = vadd.f32 %v1108, %v1116
    %v1121 = vlaneseq
    %v1122 = vshrl.u32 %v1121, 7
    %v1123 = vsub.s32 2, %v1122
    %v1124 = vrot.slane %v1096, %v1123
    %v1125 = vmul.f32 %v1124, %v54
    %v1126 = vmul.f32 %v1124, %v58
    %v1127 = vmul.f32 %v1124, %v62
    %v1128 = vmul.f32 %v1124, %v66
    %v1129 = vadd.f32 %v1117, %v1125
    %v1130 = vadd.f32 %v1118, %v1126
    %v1131 = vadd.f32 %v1119, %v1127
    %v1132 = vadd.f32 %v1120, %v1128
    %v1133 = vlaneseq
    %v1134 = vshrl.u32 %v1133, 7
    %v1135 = vsub.s32 3, %v1134
    %v1136 = vrot.slane %v1096, %v1135
    %v1137 = vmul.f32 %v1136, %v70
    %v1138 = vmul.f32 %v1136, %v74
    %v1139 = vmul.f32 %v1136, %v78
    %v1140 = vmul.f32 %v1136, %v82
    %v1141 = vadd.f32 %v1129, %v1137
    %v1142 = vadd.f32 %v1130, %v1138
    %v1143 = vadd.f32 %v1131, %v1139
    %v1144 = vadd.f32 %v1132, %v1140
    %v1145 = vlaneseq
    %v1146 = vshrl.u32 %v1145, 7
    %v1147 = vsub.s32 4, %v1146
    %v1148 = vrot.slane %v1096, %v1147
    %v1149 = vmul.f32 %v1148, %v86
    %v1150 = vmul.f32 %v1148, %v90
    %v1151 = vmul.f32 %v1148, %v94
    %v1152 = vmul.f32 %v1148, %v98
    %v1153 = vadd.f32 %v1141, %v1149
    %v1154 = vadd.f32 %v1142, %v1150
    %v1155 = vadd.f32 %v1143, %v1151
    %v1156 = vadd.f32 %v1144, %v1152
    %v1157 = vlaneseq
    %v1158 = vshrl.u32 %v1157, 7
    %v1159 = vsub.s32 5, %v1158
    %v1160 = vrot.slane %v1096, %v1159
    %v1161 = vmul.f32 %v1160, %v102
    %v1162 = vmul.f32 %v1160, %v106
    %v1163 = vmul.f32 %v1160, %v110
    %v1164 = vmul.f32 %v1160, %v114
    %v1165 = vadd.f32 %v1153, %v1161
    %v1166 = vadd.f32 %v1154, %v1162
    %v1167 = vadd.f32 %v1155, %v1163
    %v1168 = vadd.f32 %v1156, %v1164
    %v1169 = vmax.f32 %v1165, 0.0
    %v1170 = vmax.f32 %v1166, 0.0
    %v1171 = vmax.f32 %v1167, 0.0
    %v1172 = vmax.f32 %v1168, 0.0
    %v1173 = vmul.f32 %v1169, %v239
    %v1174 = vmul.f32 %v1170, %v243
    %v1175 = vmul.f32 %v1171, %v247
    %v1176 = vmul.f32 %v1172, %v251
    %v1177 = vadd.f32 %v1173, %v1174
    %v1178 = vadd.f32 %v1177, %v1175
    %v1179 = vadd.f32 %v1178, %v1176
    %v1180 = vrot.slane %v1179, 4
    %v1181 = vadd.f32 %v1179, %v1180
    %v1182 = vrot.slane %v1181, 2
    %v1183 = vadd.f32 %v1181, %v1182
    %v1184 = vrot.slane %v1183, 1
    %v1185 = vadd.f32 %v1183, %v1184
    %v1186 = vmul.f32 %v1185, %v147
    %v1187 = vadd.f32 %v134, %v1186
    %v1188 = vmul.f32 %v1169, %v270
    %v1189 = vmul.f32 %v1170, %v274
    %v1190 = vmul.f32 %v1171, %v278
    %v1191 = vmul.f32 %v1172, %v282
    %v1192 = vadd.f32 %v1188, %v1189
    %v1193 = vadd.f32 %v1192, %v1190
    %v1194 = vadd.f32 %v1193, %v1191
    %v1195 = vrot.slane %v1194, 4
    %v1196 = vadd.f32 %v1194, %v1195
    %v1197 = vrot.slane %v1196, 2
    %v1198 = vadd.f32 %v1196, %v1197
    %v1199 = vrot.slane %v1198, 1
    %v1200 = vadd.f32 %v1198, %v1199
    %v1201 = vmul.f32 %v1200, %v149
    %v1202 = vadd.f32 %v1187, %v1201
    %v1203 = vmul.f32 %v1169, %v301
    %v1204 = vmul.f32 %v1170, %v305
    %v1205 = vmul.f32 %v1171, %v309
    %v1206 = vmul.f32 %v1172, %v313
    %v1207 = vadd.f32 %v1203, %v1204
    %v1208 = vadd.f32 %v1207, %v1205
    %v1209 = vadd.f32 %v1208, %v1206
    %v1210 = vrot.slane %v1209, 4
    %v1211 = vadd.f32 %v1209, %v1210
    %v1212 = vrot.slane %v1211, 2
    %v1213 = vadd.f32 %v1211, %v1212
    %v1214 = vrot.slane %v1213, 1
    %v1215 = vadd.f32 %v1213, %v1214
    %v1216 = vmul.f32 %v1215, %v151
    %v1217 = vadd.f32 %v1202, %v1216
    %v1218 = vmul.f32 %v1169, %v332
    %v1219 = vmul.f32 %v1170, %v336
    %v1220 = vmul.f32 %v1171, %v340
    %v1221 = vmul.f32 %v1172, %v344
    %v1222 = vadd.f32 %v1218, %v1219
    %v1223 = vadd.f32 %v1222, %v1220
    %v1224 = vadd.f32 %v1223, %v1221
    %v1225 = vrot.slane %v1224, 4
    %v1226 = vadd.f32 %v1224, %v1225
    %v1227 = vrot.slane %v1226, 2
    %v1228 = vadd.f32 %v1226, %v1227
    %v1229 = vrot.slane %v1228, 1
    %v1230 = vadd.f32 %v1228, %v1229
    %v1231 = vmul.f32 %v1230, %v153
    %v1232 = vadd.f32 %v1217, %v1231
    %v1233 = vmul.f32 %v1169, %v363
    %v1234 = vmul.f32 %v1170, %v367
    %v1235 = vmul.f32 %v1171, %v371
    %v1236 = vmul.f32 %v1172, %v375
    %v1237 = vadd.f32 %v1233, %v1234
    %v1238 = vadd.f32 %v1237, %v1235
    %v1239 = vadd.f32 %v1238, %v1236
    %v1240 = vrot.slane %v1239, 4
    %v1241 = vadd.f32 %v1239, %v1240
    %v1242 = vrot.slane %v1241, 2
    %v1243 = vadd.f32 %v1241, %v1242
    %v1244 = vrot.slane %v1243, 1
    %v1245 = vadd.f32 %v1243, %v1244
    %v1246 = vmul.f32 %v1245, %v155
    %v1247 = vadd.f32 %v1232, %v1246
    %v1248 = vmul.f32 %v1169, %v394
    %v1249 = vmul.f32 %v1170, %v398
    %v1250 = vmul.f32 %v1171, %v402
    %v1251 = vmul.f32 %v1172, %v406
    %v1252 = vadd.f32 %v1248, %v1249
    %v1253 = vadd.f32 %v1252, %v1250
    %v1254 = vadd.f32 %v1253, %v1251
    %v1255 = vrot.slane %v1254, 4
    %v1256 = vadd.f32 %v1254, %v1255
    %v1257 = vrot.slane %v1256, 2
    %v1258 = vadd.f32 %v1256, %v1257
    %v1259 = vrot.slane %v1258, 1
    %v1260 = vadd.f32 %v1258, %v1259
    %v1261 = vmul.f32 %v1260, %v157
    %v1262 = vadd.f32 %v1247, %v1261
    %v1263 = vmul.f32 %v1262, 0.1
    %v1264 = vadd.f32 %v1096, %v1263
    %v1265 = vlaneseq
    %v1266 = vshrl.u32 %v1265, 7
    %v1267 = vsub.s32 0, %v1266
    %v1268 = vrot.slane %v1264, %v1267
    %v1269 = vmul.f32 %v1268, %v19
    %v1270 = vmul.f32 %v1268, %v24
    %v1271 = vmul.f32 %v1268, %v29
    %v1272 = vmul.f32 %v1268, %v34
    %v1273 = vadd.f32 %v118, %v1269
    %v1274 = vadd.f32 %v122, %v1270
    %v1275 = vadd.f32 %v126, %v1271
    %v1276 = vadd.f32 %v130, %v1272
    %v1277 = vlaneseq
    %v1278 = vshrl.u32 %v1277, 7
    %v1279 = vsub.s32 1, %v1278
    %v1280 = vrot.slane %v1264, %v1279
    %v1281 = vmul.f32 %v1280, %v38
    %v1282 = vmul.f32 %v1280, %v42
    %v1283 = vmul.f32 %v1280, %v46
    %v1284 = vmul.f32 %v1280, %v50
    %v1285 = vadd.f32 %v1273, %v1281
    %v1286 = vadd.f32 %v1274, %v1282
    %v1287 = vadd.f32 %v1275, %v1283
    %v1288 = vadd.f32 %v1276, %v1284
    %v1289 = vlaneseq
    %v1290 = vshrl.u32 %v1289, 7
    %v1291 = vsub.s32 2, %v1290
    %v1292 = vrot.slane %v1264, %v1291
    %v1293 = vmul.f32 %v1292, %v54
    %v1294 = vmul.f32 %v1292, %v58
    %v1295 = vmul.f32 %v1292, %v62
    %v1296 = vmul.f32 %v1292, %v66
    %v1297 = vadd.f32 %v1285, %v1293
    %v1298 = vadd.f32 %v1286, %v1294
    %v1299 = vadd.f32 %v1287, %v1295
    %v1300 = vadd.f32 %v1288, %v1296
    %v1301 = vlaneseq
    %v1302 = vshrl.u32 %v1301, 7
    %v1303 = vsub.s32 3, %v1302
    %v1304 = vrot.slane %v1264, %v1303
    %v1305 = vmul.f32 %v1304, %v70
    %v1306 = vmul.f32 %v1304, %v74
    %v1307 = vmul.f32 %v1304, %v78
    %v1308 = vmul.f32 %v1304, %v82
    %v1309 = vadd.f32 %v1297, %v1305
    %v1310 = vadd.f32 %v1298, %v1306
    %v1311 = vadd.f32 %v1299, %v1307
    %v1312 = vadd.f32 %v1300, %v1308
    %v1313 = vlaneseq
    %v1314 = vshrl.u32 %v1313, 7
    %v1315 = vsub.s32 4, %v1314
    %v1316 = vrot.slane %v1264, %v1315
    %v1317 = vmul.f32 %v1316, %v86
    %v1318 = vmul.f32 %v1316, %v90
    %v1319 = vmul.f32 %v1316, %v94
    %v1320 = vmul.f32 %v1316, %v98
    %v1321 = vadd.f32 %v1309, %v1317
    %v1322 = vadd.f32 %v1310, %v1318
    %v1323 = vadd.f32 %v1311, %v1319
    %v1324 = vadd.f32 %v1312, %v1320
    %v1325 = vlaneseq
    %v1326 = vshrl.u32 %v1325, 7
    %v1327 = vsub.s32 5, %v1326
    %v1328 = vrot.slane %v1264, %v1327
    %v1329 = vmul.f32 %v1328, %v102
    %v1330 = vmul.f32 %v1328, %v106
    %v1331 = vmul.f32 %v1328, %v110
    %v1332 = vmul.f32 %v1328, %v114
    %v1333 = vadd.f32 %v1321, %v1329
    %v1334 = vadd.f32 %v1322, %v1330
    %v1335 = vadd.f32 %v1323, %v1331
    %v1336 = vadd.f32 %v1324, %v1332
    %v1337 = vmax.f32 %v1333, 0.0
    %v1338 = vmax.f32 %v1334, 0.0
    %v1339 = vmax.f32 %v1335, 0.0
    %v1340 = vmax.f32 %v1336, 0.0
    %v1341 = vmul.f32 %v1337, %v239
    %v1342 = vmul.f32 %v1338, %v243
    %v1343 = vmul.f32 %v1339, %v247
    %v1344 = vmul.f32 %v1340, %v251
    %v1345 = vadd.f32 %v1341, %v1342
    %v1346 = vadd.f32 %v1345, %v1343
    %v1347 = vadd.f32 %v1346, %v1344
    %v1348 = vrot.slane %v1347, 4
    %v1349 = vadd.f32 %v1347, %v1348
    %v1350 = vrot.slane %v1349, 2
    %v1351 = vadd.f32 %v1349, %v1350
    %v1352 = vrot.slane %v1351, 1
    %v1353 = vadd.f32 %v1351, %v1352
    %v1354 = vmul.f32 %v1353, %v147
    %v1355 = vadd.f32 %v134, %v1354
    %v1356 = vmul.f32 %v1337, %v270
    %v1357 = vmul.f32 %v1338, %v274
    %v1358 = vmul.f32 %v1339, %v278
    %v1359 = vmul.f32 %v1340, %v282
    %v1360 = vadd.f32 %v1356, %v1357
    %v1361 = vadd.f32 %v1360, %v1358
    %v1362 = vadd.f32 %v1361, %v1359
    %v1363 = vrot.slane %v1362, 4
    %v1364 = vadd.f32 %v1362, %v1363
    %v1365 = vrot.slane %v1364, 2
    %v1366 = vadd.f32 %v1364, %v1365
    %v1367 = vrot.slane %v1366, 1
    %v1368 = vadd.f32 %v1366, %v1367
    %v1369 = vmul.f32 %v1368, %v149
    %v1370 = vadd.f32 %v1355, %v1369
    %v1371 = vmul.f32 %v1337, %v301
    %v1372 = vmul.f32 %v1338, %v305
    %v1373 = vmul.f32 %v1339, %v309
    %v1374 = vmul.f32 %v1340, %v313
    %v1375 = vadd.f32 %v1371, %v1372
    %v1376 = vadd.f32 %v1375, %v1373
    %v1377 = vadd.f32 %v1376, %v1374
    %v1378 = vrot.slane %v1377, 4
    %v1379 = vadd.f32 %v1377, %v1378
    %v1380 = vrot.slane %v1379, 2
    %v1381 = vadd.f32 %v1379, %v1380
    %v1382 = vrot.slane %v1381, 1
    %v1383 = vadd.f32 %v1381, %v1382
    %v1384 = vmul.f32 %v1383, %v151
    %v1385 = vadd.f32 %v1370, %v1384
    %v1386 = vmul.f32 %v1337, %v332
    %v1387 = vmul.f32 %v1338, %v336
    %v1388 = vmul.f32 %v1339, %v340
    %v1389 = vmul.f32 %v1340, %v344
    %v1390 = vadd.f32 %v1386, %v1387
    %v1391 = vadd.f32 %v1390, %v1388
    %v1392 = vadd.f32 %v1391, %v1389
    %v1393 = vrot.slane %v1392, 4
    %v1394 = vadd.f32 %v1392, %v1393
    %v1395 = vrot.slane %v1394, 2
    %v1396 = vadd.f32 %v1394, %v1395
    %v1397 = vrot.slane %v1396, 1
    %v1398 = vadd.f32 %v1396, %v1397
    %v1399 = vmul.f32 %v1398, %v153
    %v1400 = vadd.f32 %v1385, %v1399
    %v1401 = vmul.f32 %v1337, %v363
    %v1402 = vmul.f32 %v1338, %v367
    %v1403 = vmul.f32 %v1339, %v371
    %v1404 = vmul.f32 %v1340, %v375
    %v1405 = vadd.f32 %v1401, %v1402
    %v1406 = vadd.f32 %v1405, %v1403
    %v1407 = vadd.f32 %v1406, %v1404
    %v1408 = vrot.slane %v1407, 4
    %v1409 = vadd.f32 %v1407, %v1408
    %v1410 = vrot.slane %v1409, 2
    %v1411 = vadd.f32 %v1409, %v1410
    %v1412 = vrot.slane %v1411, 1
    %v1413 = vadd.f32 %v1411, %v1412
    %v1414 = vmul.f32 %v1413, %v155
    %v1415 = vadd.f32 %v1400, %v1414
    %v1416 = vmul.f32 %v1337, %v394
    %v1417 = vmul.f32 %v1338, %v398
    %v1418 = vmul.f32 %v1339, %v402
    %v1419 = vmul.f32 %v1340, %v406
    %v1420 = vadd.f32 %v1416, %v1417
    %v1421 = vadd.f32 %v1420, %v1418
    %v1422 = vadd.f32 %v1421, %v1419
    %v1423 = vrot.slane %v1422, 4
    %v1424 = vadd.f32 %v1422, %v1423
    %v1425 = vrot.slane %v1424, 2
    %v1426 = vadd.f32 %v1424, %v1425
    %v1427 = vrot.slane %v1426, 1
    %v1428 = vadd.f32 %v1426, %v1427
    %v1429 = vmul.f32 %v1428, %v157
    %v1430 = vadd.f32 %v1415, %v1429
    %v1431 = vmul.f32 %v1430, 0.1
    %v1432 = vadd.f32 %v1264, %v1431
    %v1433 = vlaneseq
    %v1434 = vshrl.u32 %v1433, 7
    %v1435 = vsub.s32 0, %v1434
    %v1436 = vrot.slane %v1432, %v1435
    %v1437 = vmul.f32 %v1436, %v19
    %v1438 = vmul.f32 %v1436, %v24
    %v1439 = vmul.f32 %v1436, %v29
    %v1440 = vmul.f32 %v1436, %v34
    %v1441 = vadd.f32 %v118, %v1437
    %v1442 = vadd.f32 %v122, %v1438
    %v1443 = vadd.f32 %v126, %v1439
    %v1444 = vadd.f32 %v130, %v1440
    %v1445 = vlaneseq
    %v1446 = vshrl.u32 %v1445, 7
    %v1447 = vsub.s32 1, %v1446
    %v1448 = vrot.slane %v1432, %v1447
    %v1449 = vmul.f32 %v1448, %v38
    %v1450 = vmul.f32 %v1448, %v42
    %v1451 = vmul.f32 %v1448, %v46
    %v1452 = vmul.f32 %v1448, %v50
    %v1453 = vadd.f32 %v1441, %v1449
    %v1454 = vadd.f32 %v1442, %v1450
    %v1455 = vadd.f32 %v1443, %v1451
    %v1456 = vadd.f32 %v1444, %v1452
    %v1457 = vlaneseq
    %v1458 = vshrl.u32 %v1457, 7
    %v1459 = vsub.s32 2, %v1458
    %v1460 = vrot.slane %v1432, %v1459
    %v1461 = vmul.f32 %v1460, %v54
    %v1462 = vmul.f32 %v1460, %v58
    %v1463 = vmul.f32 %v1460, %v62
    %v1464 = vmul.f32 %v1460, %v66
    %v1465 = vadd.f32 %v1453, %v1461
    %v1466 = vadd.f32 %v1454, %v1462
    %v1467 = vadd.f32 %v1455, %v1463
    %v1468 = vadd.f32 %v1456, %v1464
    %v1469 = vlaneseq
    %v1470 = vshrl.u32 %v1469, 7
    %v1471 = vsub.s32 3, %v1470
    %v1472 = vrot.slane %v1432, %v1471
    %v1473 = vmul.f32 %v1472, %v70
    %v1474 = vmul.f32 %v1472, %v74
    %v1475 = vmul.f32 %v1472, %v78
    %v1476 = vmul.f32 %v1472, %v82
    %v1477 = vadd.f32 %v1465, %v1473
    %v1478 = vadd.f32 %v1466, %v1474
    %v1479 = vadd.f32 %v1467, %v1475
    %v1480 = vadd.f32 %v1468, %v1476
    %v1481 = vlaneseq
    %v1482 = vshrl.u32 %v1481, 7
    %v1483 = vsub.s32 4, %v1482
    %v1484 = vrot.slane %v1432, %v1483
    %v1485 = vmul.f32 %v1484, %v86
    %v1486 = vmul.f32 %v1484, %v90
    %v1487 = vmul.f32 %v1484, %v94
    %v1488 = vmul.f32 %v1484, %v98
    %v1489 = vadd.f32 %v1477, %v1485
    %v1490 = vadd.f32 %v1478, %v1486
    %v1491 = vadd.f32 %v1479, %v1487
    %v1492 = vadd.f32 %v1480, %v1488
    %v1493 = vlaneseq
    %v1494 = vshrl.u32 %v1493, 7
    %v1495 = vsub.s32 5, %v1494
    %v1496 = vrot.slane %v1432, %v1495
    %v1497 = vmul.f32 %v1496, %v102
    %v1498 = vmul.f32 %v1496, %v106
    %v1499 = vmul.f32 %v1496, %v110
    %v1500 = vmul.f32 %v1496, %v114
    %v1501 = vadd.f32 %v1489, %v1497
    %v1502 = vadd.f32 %v1490, %v1498
    %v1503 = vadd.f32 %v1491, %v1499
    %v1504 = vadd.f32 %v1492, %v1500
    %v1505 = vmax.f32 %v1501, 0.0
    %v1506 = vmax.f32 %v1502, 0.0
    %v1507 = vmax.f32 %v1503, 0.0
    %v1508 = vmax.f32 %v1504, 0.0
    %v1509 = vmul.f32 %v1505, %v239
    %v1510 = vmul.f32 %v1506, %v243
    %v1511 = vmul.f32 %v1507, %v247
    %v1512 = vmul.f32 %v1508, %v251
    %v1513 = vadd.f32 %v1509, %v1510
    %v1514 = vadd.f32 %v1513, %v1511
    %v1515 = vadd.f32 %v1514, %v1512
    %v1516 = vrot.slane %v1515, 4
    %v1517 = vadd.f32 %v1515, %v1516
    %v1518 = vrot.slane %v1517, 2
    %v1519 = vadd.f32 %v1517, %v1518
    %v1520 = vrot.slane %v1519, 1
    %v1521 = vadd.f32 %v1519, %v1520
    %v1522 = vmul.f32 %v1521, %v147
    %v1523 = vadd.f32 %v134, %v1522
    %v1524 = vmul.f32 %v1505, %v270
    %v1525 = vmul.f32 %v1506, %v274
    %v1526 = vmul.f32 %v1507, %v278
    %v1527 = vmul.f32 %v1508, %v282
    %v1528 = vadd.f32 %v1524, %v1525
    %v1529 = vadd.f32 %v1528, %v1526
    %v1530 = vadd.f32 %v1529, %v1527
    %v1531 = vrot.slane %v1530, 4
    %v1532 = vadd.f32 %v1530, %v1531
    %v1533 = vrot.slane %v1532, 2
    %v1534 = vadd.f32 %v1532, %v1533
    %v1535 = vrot.slane %v1534, 1
    %v1536 = vadd.f32 %v1534, %v1535
    %v1537 = vmul.f32 %v1536, %v149
    %v1538 = vadd.f32 %v1523, %v1537
    %v1539 = vmul.f32 %v1505, %v301
    %v1540 = vmul.f32 %v1506, %v305
    %v1541 = vmul.f32 %v1507, %v309
    %v1542 = vmul.f32 %v1508, %v313
    %v1543 = vadd.f32 %v1539, %v1540
    %v1544 = vadd.f32 %v1543, %v1541
    %v1545 = vadd.f32 %v1544, %v1542
    %v1546 = vrot.slane %v1545, 4
    %v1547 = vadd.f32 %v1545, %v1546
    %v1548 = vrot.slane %v1547, 2
    %v1549 = vadd.f32 %v1547, %v1548
    %v1550 = vrot.slane %v1549, 1
    %v1551 = vadd.f32 %v1549, %v1550
    %v1552 = vmul.f32 %v1551, %v151
    %v1553 = vadd.f32 %v1538, %v1552
    %v1554 = vmul.f32 %v1505, %v332
    %v1555 = vmul.f32 %v1506, %v336
    %v1556 = vmul.f32 %v1507, %v340
    %v1557 = vmul.f32 %v1508, %v344
    %v1558 = vadd.f32 %v1554, %v1555
    %v1559 = vadd.f32 %v1558, %v1556
    %v1560 = vadd.f32 %v1559, %v1557
    %v1561 = vrot.slane %v1560, 4
    %v1562 = vadd.f32 %v1560, %v1561
    %v1563 = vrot.slane %v1562, 2
    %v1564 = vadd.f32 %v1562, %v1563
    %v1565 = vrot.slane %v1564, 1
    %v1566 = vadd.f32 %v1564, %v1565
    %v1567 = vmul.f32 %v1566, %v153
    %v1568 = vadd.f32 %v1553, %v1567
    %v1569 = vmul.f32 %v1505, %v363
    %v1570 = vmul.f32 %v1506, %v367
    %v1571 = vmul.f32 %v1507, %v371
    %v1572 = vmul.f32 %v1508, %v375
    %v1573 = vadd.f32 %v1569, %v1570
    %v1574 = vadd.f32 %v1573, %v1571
    %v1575 = vadd.f32 %v1574, %v1572
    %v1576 = vrot.slane %v1575, 4
    %v1577 = vadd.f32 %v1575, %v1576
    %v1578 = vrot.slane %v1577, 2
    %v1579 = vadd.f32 %v1577, %v1578
    %v1580 = vrot.slane %v1579, 1
    %v1581 = vadd.f32 %v1579, %v1580
    %v1582 = vmul.f32 %v1581, %v155
    %v1583 = vadd.f32 %v1568, %v1582
    %v1584 = vmul.f32 %v1505, %v394
    %v1585 = vmul.f32 %v1506, %v398
    %v1586 = vmul.f32 %v1507, %v402
    %v1587 = vmul.f32 %v1508, %v406
    %v1588 = vadd.f32 %v1584, %v1585
    %v1589 = vadd.f32 %v1588, %v1586
    %v1590 = vadd.f32 %v1589, %v1587
    %v1591 = vrot.slane %v1590, 4
    %v1592 = vadd.f32 %v1590, %v1591
    %v1593 = vrot.slane %v1592, 2
    %v1594 = vadd.f32 %v1592, %v1593
    %v1595 = vrot.slane %v1594, 1
    %v1596 = vadd.f32 %v1594, %v1595
    %v1597 = vmul.f32 %v1596, %v157
    %v1598 = vadd.f32 %v1583, %v1597
    %v1599 = vmul.f32 %v1598, 0.1
    %v1600 = vadd.f32 %v1432, %v1599
    %v1601 = vlaneseq
    %v1602 = vshrl.u32 %v1601, 7
    %v1603 = vsub.s32 0, %v1602
    %v1604 = vrot.slane %v1600, %v1603
    %v1605 = vmul.f32 %v1604, %v19
    %v1606 = vmul.f32 %v1604, %v24
    %v1607 = vmul.f32 %v1604, %v29
    %v1608 = vmul.f32 %v1604, %v34
    %v1609 = vadd.f32 %v118, %v1605
    %v1610 = vadd.f32 %v122, %v1606
    %v1611 = vadd.f32 %v126, %v1607
    %v1612 = vadd.f32 %v130, %v1608
    %v1613 = vlaneseq
    %v1614 = vshrl.u32 %v1613, 7
    %v1615 = vsub.s32 1, %v1614
    %v1616 = vrot.slane %v1600, %v1615
    %v1617 = vmul.f32 %v1616, %v38
    %v1618 = vmul.f32 %v1616, %v42
    %v1619 = vmul.f32 %v1616, %v46
    %v1620 = vmul.f32 %v1616, %v50
    %v1621 = vadd.f32 %v1609, %v1617
    %v1622 = vadd.f32 %v1610, %v1618
    %v1623 = vadd.f32 %v1611, %v1619
    %v1624 = vadd.f32 %v1612, %v1620
    %v1625 = vlaneseq
    %v1626 = vshrl.u32 %v1625, 7
    %v1627 = vsub.s32 2, %v1626
    %v1628 = vrot.slane %v1600, %v1627
    %v1629 = vmul.f32 %v1628, %v54
    %v1630 = vmul.f32 %v1628, %v58
    %v1631 = vmul.f32 %v1628, %v62
    %v1632 = vmul.f32 %v1628, %v66
    %v1633 = vadd.f32 %v1621, %v1629
    %v1634 = vadd.f32 %v1622, %v1630
    %v1635 = vadd.f32 %v1623, %v1631
    %v1636 = vadd.f32 %v1624, %v1632
    %v1637 = vlaneseq
    %v1638 = vshrl.u32 %v1637, 7
    %v1639 = vsub.s32 3, %v1638
    %v1640 = vrot.slane %v1600, %v1639
    %v1641 = vmul.f32 %v1640, %v70
    %v1642 = vmul.f32 %v1640, %v74
    %v1643 = vmul.f32 %v1640, %v78
    %v1644 = vmul.f32 %v1640, %v82
    %v1645 = vadd.f32 %v1633, %v1641
    %v1646 = vadd.f32 %v1634, %v1642
    %v1647 = vadd.f32 %v1635, %v1643
    %v1648 = vadd.f32 %v1636, %v1644
    %v1649 = vlaneseq
    %v1650 = vshrl.u32 %v1649, 7
    %v1651 = vsub.s32 4, %v1650
    %v1652 = vrot.slane %v1600, %v1651
    %v1653 = vmul.f32 %v1652, %v86
    %v1654 = vmul.f32 %v1652, %v90
    %v1655 = vmul.f32 %v1652, %v94
    %v1656 = vmul.f32 %v1652, %v98
    %v1657 = vadd.f32 %v1645, %v1653
    %v1658 = vadd.f32 %v1646, %v1654
    %v1659 = vadd.f32 %v1647, %v1655
    %v1660 = vadd.f32 %v1648, %v1656
    %v1661 = vlaneseq
    %v1662 = vshrl.u32 %v1661, 7
    %v1663 = vsub.s32 5, %v1662
    %v1664 = vrot.slane %v1600, %v1663
    %v1665 = vmul.f32 %v1664, %v102
    %v1666 = vmul.f32 %v1664, %v106
    %v1667 = vmul.f32 %v1664, %v110
    %v1668 = vmul.f32 %v1664, %v114
    %v1669 = vadd.f32 %v1657, %v1665
    %v1670 = vadd.f32 %v1658, %v1666
    %v1671 = vadd.f32 %v1659, %v1667
    %v1672 = vadd.f32 %v1660, %v1668
    %v1673 = vmax.f32 %v1669, 0.0
    %v1674 = vmax.f32 %v1670, 0.0
    %v1675 = vmax.f32 %v1671, 0.0
    %v1676 = vmax.f32 %v1672, 0.0
    %v1677 = vmul.f32 %v1673, %v239
    %v1678 = vmul.f32 %v1674, %v243
    %v1679 = vmul.f32 %v1675, %v247
    %v1680 = vmul.f32 %v1676, %v251
    %v1681 = vadd.f32 %v1677, %v1678
    %v1682 = vadd.f32 %v1681, %v1679
    %v1683 = vadd.f32 %v1682, %v1680
    %v1684 = vrot.slane %v1683, 4
    %v1685 = vadd.f32 %v1683, %v1684
    %v1686 = vrot.slane %v1685, 2
    %v1687 = vadd.f32 %v1685, %v1686
    %v1688 = vrot.slane %v1687, 1
    %v1689 = vadd.f32 %v1687, %v1688
    %v1690 = vmul.f32 %v1689, %v147
    %v1691 = vadd.f32 %v134, %v1690
    %v1692 = vmul.f32 %v1673, %v270
    %v1693 = vmul.f32 %v1674, %v274
    %v1694 = vmul.f32 %v1675, %v278
    %v1695 = vmul.f32 %v1676, %v282
    %v1696 = vadd.f32 %v1692, %v1693
    %v1697 = vadd.f32 %v1696, %v1694
    %v1698 = vadd.f32 %v1697, %v1695
    %v1699 = vrot.slane %v1698, 4
    %v1700 = vadd.f32 %v1698, %v1699
    %v1701 = vrot.slane %v1700, 2
    %v1702 = vadd.f32 %v1700, %v1701
    %v1703 = vrot.slane %v1702, 1
    %v1704 = vadd.f32 %v1702, %v1703
    %v1705 = vmul.f32 %v1704, %v149
    %v1706 = vadd.f32 %v1691, %v1705
    %v1707 = vmul.f32 %v1673, %v301
    %v1708 = vmul.f32 %v1674, %v305
    %v1709 = vmul.f32 %v1675, %v309
    %v1710 = vmul.f32 %v1676, %v313
    %v1711 = vadd.f32 %v1707, %v1708
    %v1712 = vadd.f32 %v1711, %v1709
    %v1713 = vadd.f32 %v1712, %v1710
    %v1714 = vrot.slane %v1713, 4
    %v1715 = vadd.f32 %v1713, %v1714
    %v1716 = vrot.slane %v1715, 2
    %v1717 = vadd.f32 %v1715, %v1716
    %v1718 = vrot.slane %v1717, 1
    %v1719 = vadd.f32 %v1717, %v1718
    %v1720 = vmul.f32 %v1719, %v151
    %v1721 = vadd.f32 %v1706, %v1720
    %v1722 = vmul.f32 %v1673, %v332
    %v1723 = vmul.f32 %v1674, %v336
    %v1724 = vmul.f32 %v1675, %v340
    %v1725 = vmul.f32 %v1676, %v344
    %v1726 = vadd.f32 %v1722, %v1723
    %v1727 = vadd.f32 %v1726, %v1724
    %v1728 = vadd.f32 %v1727, %v1725
    %v1729 = vrot.slane %v1728, 4
    %v1730 = vadd.f32 %v1728, %v1729
    %v1731 = vrot.slane %v1730, 2
    %v1732 = vadd.f32 %v1730, %v1731
    %v1733 = vrot.slane %v1732, 1
    %v1734 = vadd.f32 %v1732, %v1733
    %v1735 = vmul.f32 %v1734, %v153
    %v1736 = vadd.f32 %v1721, %v1735
    %v1737 = vmul.f32 %v1673, %v363
    %v1738 = vmul.f32 %v1674, %v367
    %v1739 = vmul.f32 %v1675, %v371
    %v1740 = vmul.f32 %v1676, %v375
    %v1741 = vadd.f32 %v1737, %v1738
    %v1742 = vadd.f32 %v1741, %v1739
    %v1743 = vadd.f32 %v1742, %v1740
    %v1744 = vrot.slane %v1743, 4
    %v1745 = vadd.f32 %v1743, %v1744
    %v1746 = vrot.slane %v1745, 2
    %v1747 = vadd.f32 %v1745, %v1746
    %v1748 = vrot.slane %v1747, 1
    %v1749 = vadd.f32 %v1747, %v1748
    %v1750 = vmul.f32 %v1749, %v155
    %v1751 = vadd.f32 %v1736, %v1750
    %v1752 = vmul.f32 %v1673, %v394
    %v1753 = vmul.f32 %v1674, %v398
    %v1754 = vmul.f32 %v1675, %v402
    %v1755 = vmul.f32 %v1676, %v406
    %v1756 = vadd.f32 %v1752, %v1753
    %v1757 = vadd.f32 %v1756, %v1754
    %v1758 = vadd.f32 %v1757, %v1755
    %v1759 = vrot.slane %v1758, 4
    %v1760 = vadd.f32 %v1758, %v1759
    %v1761 = vrot.slane %v1760, 2
    %v1762 = vadd.f32 %v1760, %v1761
    %v1763 = vrot.slane %v1762, 1
    %v1764 = vadd.f32 %v1762, %v1763
    %v1765 = vmul.f32 %v1764, %v157
    %v1766 = vadd.f32 %v1751, %v1765
    %v1767 = vmul.f32 %v1766, 0.1
    %v1768 = vadd.f32 %v1600, %v1767
    %v1769 = vlaneseq
    %v1770 = vshrl.u32 %v1769, 7
    %v1771 = vsub.s32 0, %v1770
    %v1772 = vrot.slane %v1768, %v1771
    %v1773 = vmul.f32 %v1772, %v19
    %v1774 = vmul.f32 %v1772, %v24
    %v1775 = vmul.f32 %v1772, %v29
    %v1776 = vmul.f32 %v1772, %v34
    %v1777 = vadd.f32 %v118, %v1773
    %v1778 = vadd.f32 %v122, %v1774
    %v1779 = vadd.f32 %v126, %v1775
    %v1780 = vadd.f32 %v130, %v1776
    %v1781 = vlaneseq
    %v1782 = vshrl.u32 %v1781, 7
    %v1783 = vsub.s32 1, %v1782
    %v1784 = vrot.slane %v1768, %v1783
    %v1785 = vmul.f32 %v1784, %v38
    %v1786 = vmul.f32 %v1784, %v42
    %v1787 = vmul.f32 %v1784, %v46
    %v1788 = vmul.f32 %v1784, %v50
    %v1789 = vadd.f32 %v1777, %v1785
    %v1790 = vadd.f32 %v1778, %v1786
    %v1791 = vadd.f32 %v1779, %v1787
    %v1792 = vadd.f32 %v1780, %v1788
    %v1793 = vlaneseq
    %v1794 = vshrl.u32 %v1793, 7
    %v1795 = vsub.s32 2, %v1794
    %v1796 = vrot.slane %v1768, %v1795
    %v1797 = vmul.f32 %v1796, %v54
    %v1798 = vmul.f32 %v1796, %v58
    %v1799 = vmul.f32 %v1796, %v62
    %v1800 = vmul.f32 %v1796, %v66
    %v1801 = vadd.f32 %v1789, %v1797
    %v1802 = vadd.f32 %v1790, %v1798
    %v1803 = vadd.f32 %v1791, %v1799
    %v1804 = vadd.f32 %v1792, %v1800
    %v1805 = vlaneseq
    %v1806 = vshrl.u32 %v1805, 7
    %v1807 = vsub.s32 3, %v1806
    %v1808 = vrot.slane %v1768, %v1807
    %v1809 = vmul.f32 %v1808, %v70
    %v1810 = vmul.f32 %v1808, %v74
    %v1811 = vmul.f32 %v1808, %v78
    %v1812 = vmul.f32 %v1808, %v82
    %v1813 = vadd.f32 %v1801, %v1809
    %v1814 = vadd.f32 %v1802, %v1810
    %v1815 = vadd.f32 %v1803, %v1811
    %v1816 = vadd.f32 %v1804, %v1812
    %v1817 = vlaneseq
    %v1818 = vshrl.u32 %v1817, 7
    %v1819 = vsub.s32 4, %v1818
    %v1820 = vrot.slane %v1768, %v1819
    %v1821 = vmul.f32 %v1820, %v86
    %v1822 = vmul.f32 %v1820, %v90
    %v1823 = vmul.f32 %v1820, %v94
    %v1824 = vmul.f32 %v1820, %v98
    %v1825 = vadd.f32 %v1813, %v1821
    %v1826 = vadd.f32 %v1814, %v1822
    %v1827 = vadd.f32 %v1815, %v1823
    %v1828 = vadd.f32 %v1816, %v1824
    %v1829 = vlaneseq
    %v1830 = vshrl.u32 %v1829, 7
    %v1831 = vsub.s32 5, %v1830
    %v1832 = vrot.slane %v1768, %v1831
    %v1833 = vmul.f32 %v1832, %v102
    %v1834 = vmul.f32 %v1832, %v106
    %v1835 = vmul.f32 %v1832, %v110
    %v1836 = vmul.f32 %v1832, %v114
    %v1837 = vadd.f32 %v1825, %v1833
    %v1838 = vadd.f32 %v1826, %v1834
    %v1839 = vadd.f32 %v1827, %v1835
    %v1840 = vadd.f32 %v1828, %v1836
    %v1841 = vmax.f32 %v1837, 0.0
    %v1842 = vmax.f32 %v1838, 0.0
    %v1843 = vmax.f32 %v1839, 0.0
    %v1844 = vmax.f32 %v1840, 0.0
    %v1845 = vmul.f32 %v1841, %v239
    %v1846 = vmul.f32 %v1842, %v243
    %v1847 = vmul.f32 %v1843, %v247
    %v1848 = vmul.f32 %v1844, %v251
    %v1849 = vadd.f32 %v1845, %v1846
    %v1850 = vadd.f32 %v1849, %v1847
    %v1851 = vadd.f32 %v1850, %v1848
    %v1852 = vrot.slane %v1851, 4
    %v1853 = vadd.f32 %v1851, %v1852
    %v1854 = vrot.slane %v1853, 2
    %v1855 = vadd.f32 %v1853, %v1854
    %v1856 = vrot.slane %v1855, 1
    %v1857 = vadd.f32 %v1855, %v1856
    %v1858 = vmul.f32 %v1857, %v147
    %v1859 = vadd.f32 %v134, %v1858
    %v1860 = vmul.f32 %v1841, %v270
    %v1861 = vmul.f32 %v1842, %v274
    %v1862 = vmul.f32 %v1843, %v278
    %v1863 = vmul.f32 %v1844, %v282
    %v1864 = vadd.f32 %v1860, %v1861
    %v1865 = vadd.f32 %v1864, %v1862
    %v1866 = vadd.f32 %v1865, %v1863
    %v1867 = vrot.slane %v1866, 4
    %v1868 = vadd.f32 %v1866, %v1867
    %v1869 = vrot.slane %v1868, 2
    %v1870 = vadd.f32 %v1868, %v1869
    %v1871 = vrot.slane %v1870, 1
    %v1872 = vadd.f32 %v1870, %v1871
    %v1873 = vmul.f32 %v1872, %v149
    %v1874 = vadd.f32 %v1859, %v1873
    %v1875 = vmul.f32 %v1841, %v301
    %v1876 = vmul.f32 %v1842, %v305
    %v1877 = vmul.f32 %v1843, %v309
    %v1878 = vmul.f32 %v1844, %v313
    %v1879 = vadd.f32 %v1875, %v1876
    %v1880 = vadd.f32 %v1879, %v1877
    %v1881 = vadd.f32 %v1880, %v1878
    %v1882 = vrot.slane %v1881, 4
    %v1883 = vadd.f32 %v1881, %v1882
    %v1884 = vrot.slane %v1883, 2
    %v1885 = vadd.f32 %v1883, %v1884
    %v1886 = vrot.slane %v1885, 1
    %v1887 = vadd.f32 %v1885, %v1886
    %v1888 = vmul.f32 %v1887, %v151
    %v1889 = vadd.f32 %v1874, %v1888
    %v1890 = vmul.f32 %v1841, %v332
    %v1891 = vmul.f32 %v1842, %v336
    %v1892 = vmul.f32 %v1843, %v340
    %v1893 = vmul.f32 %v1844, %v344
    %v1894 = vadd.f32 %v1890, %v1891
    %v1895 = vadd.f32 %v1894, %v1892
    %v1896 = vadd.f32 %v1895, %v1893
    %v1897 = vrot.slane %v1896, 4
    %v1898 = vadd.f32 %v1896, %v1897
    %v1899 = vrot.slane %v1898, 2
    %v1900 = vadd.f32 %v1898, %v1899
    %v1901 = vrot.slane %v1900, 1
    %v1902 = vadd.f32 %v1900, %v1901
    %v1903 = vmul.f32 %v1902, %v153
    %v1904 = vadd.f32 %v1889, %v1903
    %v1905 = vmul.f32 %v1841, %v363
    %v1906 = vmul.f32 %v1842, %v367
    %v1907 = vmul.f32 %v1843, %v371
    %v1908 = vmul.f32 %v1844, %v375
    %v1909 = vadd.f32 %v1905, %v1906
    %v1910 = vadd.f32 %v1909, %v1907
    %v1911 = vadd.f32 %v1910, %v1908
    %v1912 = vrot.slane %v1911, 4
    %v1913 = vadd.f32 %v1911, %v1912
    %v1914 = vrot.slane %v1913, 2
    %v1915 = vadd.f32 %v1913, %v1914
    %v1916 = vrot.slane %v1915, 1
    %v1917 = vadd.f32 %v1915, %v1916
    %v1918 = vmul.f32 %v1917, %v155
    %v1919 = vadd.f32 %v1904, %v1918
    %v1920 = vmul.f32 %v1841, %v394
    %v1921 = vmul.f32 %v1842, %v398
    %v1922 = vmul.f32 %v1843, %v402
    %v1923 = vmul.f32 %v1844, %v406
    %v1924 = vadd.f32 %v1920, %v1921
    %v1925 = vadd.f32 %v1924, %v1922
    %v1926 = vadd.f32 %v1925, %v1923
    %v1927 = vrot.slane %v1926, 4
    %v1928 = vadd.f32 %v1926, %v1927
    %v1929 = vrot.slane %v1928, 2
    %v1930 = vadd.f32 %v1928, %v1929
    %v1931 = vrot.slane %v1930, 1
    %v1932 = vadd.f32 %v1930, %v1931
    %v1933 = vmul.f32 %v1932, %v157
    %v1934 = vadd.f32 %v1919, %v1933
    %v1935 = vmul.f32 %v1934, 0.1
    %v1936 = vadd.f32 %v1768, %v1935
    %v1937 = vmul.f32 %v1936, %v138
    %v1938 = vrot.slane %v1937, 4
    %v1939 = vadd.f32 %v1937, %v1938
    %v1940 = vrot.slane %v1939, 2
    %v1941 = vadd.f32 %v1939, %v1940
    %v1942 = vrot.slane %v1941, 1
    %v1943 = vadd.f32 %v1941, %v1942
    %v1944 = vadd.f32 %v1943, %v142
    %v1945 = vlaneseq
    %v1946 = vshrl.u32 %v1945, 7
    %v1947 = vsub.s32 0, %v1946
    %v1948 = vrot.slane %v1944, %v1947
    %v1949 = vmul.f32 %v1948, %v159
    %v1950 = vadd.f32 %v1936, %v1949
    %1951 = vst [vmem:[#allocation2] sm:$0xff] %v1950
    // Predicated region
    $region10: #{tpu_custom_call.1} parent=1 // pred_check
      _
    $region11: #{tpu_custom_call.1} parent=1 // pred_check_branch
      %1953 = sbr.rel (0) target = $region13
    $region12: #{tpu_custom_call.1} parent=1 // pred_region
      %s1955 = ssub.s32 128, 128
      %1956 = vsyncadd [#allocation3], %s1955
      %s1958 = sshll.u32 [#allocation2], 4
      %s1959 = int_to_ptr.vmem [resolvable:$true] %s1958
      %1961 = dma.vmem_to_hbm [thread:$0]  %s1959, 128, %s2, [#allocation3]
    $region13: #{tpu_custom_call.1} parent=1 // pred_fallthru
      _
    // Predicated region
    $region14: #{tpu_custom_call.1} parent=1 // pred_check
      _
    $region15: #{tpu_custom_call.1} parent=1 // pred_check_branch
      %1963 = sbr.rel (0) target = $region17
    $region16: #{tpu_custom_call.1} parent=1 // pred_region
      %1964 = dma.done [#allocation3], 128
    $region17: #{tpu_custom_call.1} parent=1 // pred_fallthru
      _
    %1965 = vsyncpa [#allocation3], 1

</llo_original>
